<compile_context>
chip_gen: v7x
topology: tpu7x:2x2x1
jax: 0.10.0
libtpu: 0.0.40
codegen_flags: <defaults>
</compile_context>

<pallas_src>
import jax
import jax.numpy as jnp
from jax.experimental import pallas as pl
from jax.experimental.pallas import tpu as pltpu

# ---- model hyper-parameters (small, consistent with config['word_dim']) ----
VOCAB = 100
VOCAB_PAD = 128          # lane-aligned embedding table (rows >= VOCAB are zero)
BATCH = 2
SEQ = 8                  # sequence length (sublane-friendly)
WORD_DIM = 32            # config['word_dim']
NUM_HEADS = 4
HEAD_DIM = WORD_DIM // NUM_HEADS
FFN_DIM = 64
NUM_LAYERS = 2
EPS = 1e-6
BS = BATCH * SEQ

# packed per-layer weight slab column offsets: [Wqkv | Wo | W1 | W2^T]
_OFF_QKV = 0
_OFF_WO = 3 * WORD_DIM
_OFF_W1 = 4 * WORD_DIM
_OFF_W2T = 4 * WORD_DIM + FFN_DIM
_SLAB_COLS = 4 * WORD_DIM + 2 * FFN_DIM


# ------------------------------ fused kernel --------------------------------
def fused_word_encoder_kernel(ids_ref, mask_ref, emb_ref, w_ref, ln_ref,
                              out_ref):
    f32 = jnp.float32
    bf16 = jnp.bfloat16
    D, F, Dh = WORD_DIM, FFN_DIM, HEAD_DIM

    # ---- embedding lookup: one-hot (BS, 128) bf16 @ (128, D) bf16 on MXU ----
    ids = ids_ref[...]                                            # (BS, 1) i32
    iota_v = jax.lax.broadcasted_iota(jnp.int32, (BS, VOCAB_PAD), 1)
    one_hot = (iota_v == ids).astype(bf16)                        # (BS, 128)
    x = jnp.dot(one_hot, emb_ref[...], preferred_element_type=f32)  # (BS, D)

    # ---- attention-mask bias, built ONCE (hoisted out of the layer loop) ----
    neg = (1.0 - mask_ref[...]) * -1e9                            # (B, S) f32
    bias_all = jnp.concatenate(
        [jnp.broadcast_to(neg[b:b + 1, :], (NUM_HEADS * SEQ, SEQ))
         for b in range(BATCH)], axis=0)                          # (B*H*S, S)

    for l in range(NUM_LAYERS):                                   # static unroll
        wl = w_ref[l]                                             # (D, slab) bf16
        wqkv = wl[:, _OFF_QKV:_OFF_WO]                            # (D, 3D)
        wo = wl[:, _OFF_WO:_OFF_W1]                               # (D, D)
        w1 = wl[:, _OFF_W1:_OFF_W2T]                              # (D, F)
        w2t = wl[:, _OFF_W2T:_SLAB_COLS]                          # (D, F) = W2^T
        ln1 = ln_ref[2 * l:2 * l + 1, :].astype(f32)              # (1, D)
        ln2 = ln_ref[2 * l + 1:2 * l + 2, :].astype(f32)          # (1, D)

        # ---- self-attention sub-block (pre-RMSNorm) ----
        var = jnp.mean(x * x, axis=-1, keepdims=True)
        h = (x * jax.lax.rsqrt(var + EPS) * ln1).astype(bf16)     # (BS, D) bf16
        qkv = jnp.dot(h, wqkv, preferred_element_type=f32)        # (BS, 3D) f32
        # (1/sqrt(d_k) is folded into the Q columns of wqkv at init time.)

        # per-(batch, head) scores stacked on sublanes -> one wide softmax pass.
        # dot_general contracts dim 1 of both operands: no k.T transposes.
        score_blocks = []
        for b in range(BATCH):
            r0 = b * SEQ
            for hh in range(NUM_HEADS):
                c = hh * Dh
                q_bh = qkv[r0:r0 + SEQ, c:c + Dh].astype(bf16)
                k_bh = qkv[r0:r0 + SEQ, D + c:D + c + Dh].astype(bf16)
                score_blocks.append(jax.lax.dot_general(
                    q_bh, k_bh, (((1,), (1,)), ((), ())),
                    preferred_element_type=f32))                  # (S, S)
        s_all = jnp.concatenate(score_blocks, axis=0) + bias_all  # (B*H*S, S)

        s_all = s_all - jnp.max(s_all, axis=-1, keepdims=True)
        p_all = jnp.exp(s_all)
        p_all = (p_all / jnp.sum(p_all, axis=-1, keepdims=True)).astype(bf16)

        # per-head contexts, heads concatenated on lanes, batches on sublanes;
        # a single W_o projection per layer.
        ctx_rows = []
        for b in range(BATCH):
            r0 = b * SEQ
            ctx_heads = []
            for hh in range(NUM_HEADS):
                c = hh * Dh
                blk = (b * NUM_HEADS + hh) * SEQ
                p_bh = p_all[blk:blk + SEQ, :]                    # (S, S) bf16
                v_bh = qkv[r0:r0 + SEQ,
                           2 * D + c:2 * D + c + Dh].astype(bf16)
                ctx_heads.append(jnp.dot(p_bh, v_bh,
                                         preferred_element_type=f32))
            ctx_rows.append(jnp.concatenate(ctx_heads, axis=1))   # (S, D)
        ctx = jnp.concatenate(ctx_rows, axis=0).astype(bf16)      # (BS, D)
        x = x + jnp.dot(ctx, wo, preferred_element_type=f32)

        # ---- feed-forward sub-block (pre-RMSNorm, ReLU) ----
        var2 = jnp.mean(x * x, axis=-1, keepdims=True)
        h2 = (x * jax.lax.rsqrt(var2 + EPS) * ln2).astype(bf16)
        f = jnp.maximum(jnp.dot(h2, w1, preferred_element_type=f32),
                        0.0).astype(bf16)
        x = x + jax.lax.dot_general(f, w2t, (((1,), (1,)), ((), ())),
                                    preferred_element_type=f32)

    # ---- final RMSNorm ----
    lnf = ln_ref[2 * NUM_LAYERS:2 * NUM_LAYERS + 1, :].astype(f32)
    var = jnp.mean(x * x, axis=-1, keepdims=True)
    out_ref[...] = (x * jax.lax.rsqrt(var + EPS) * lnf).astype(out_ref.dtype)


# --------------------------- pallas_call wrapper -----------------------------
_VMEM_SPEC = pl.BlockSpec(memory_space=pltpu.MemorySpace.VMEM)


@jax.jit
def word_encoder_forward(params, input_ids, attention_mask):
    """Equivalent of WordEncoder.forward for encoder_type in ['t5','longformer3']:
    returns last_hidden_state of shape (B, S, word_dim)."""
    ids2 = input_ids.reshape(BS, 1).astype(jnp.int32)
    mask_f = attention_mask.astype(jnp.float32)                   # (B, S)

    out_flat = pl.pallas_call(
        fused_word_encoder_kernel,
        out_shape=jax.ShapeDtypeStruct((BS, WORD_DIM), jnp.float32),
        # No grid: single invocation, all operands fully VMEM resident
        # (~40 KB of bf16 weights + ~2 KB activations); works on v5e/v6e/v7x.
        # TODO(synk): if BATCH/SEQ grow, add a batch grid with
        # dimension_semantics=("parallel",) to use the second v7x TensorCore.
        in_specs=[_VMEM_SPEC] * 5,
        out_specs=_VMEM_SPEC,
        cost_estimate=pl.CostEstimate(flops=700_000, transcendentals=1_200,
                                      bytes_accessed=45_000),
    )(ids2, mask_f, params["emb"], params["w"], params["ln"])

    return out_flat.reshape(BATCH, SEQ, WORD_DIM)


# --------------------------- parameter init ---------------------------------
def init_params(key):
    """bf16-stored packed weights; norm/softmax math stays f32 in-kernel."""
    def nrm(k, shape, scale=0.02):
        return (jax.random.normal(k, shape, dtype=jnp.float32) * scale
                ).astype(jnp.bfloat16)

    keys = jax.random.split(key, 1 + NUM_LAYERS * 6)

    # lane-aligned (128, D) embedding table, rows >= VOCAB are zero
    emb = jnp.zeros((VOCAB_PAD, WORD_DIM), jnp.bfloat16)
    emb = emb.at[:VOCAB].set(nrm(keys[0], (VOCAB, WORD_DIM), 1.0))

    attn_scale = 1.0 / (HEAD_DIM ** 0.5)
    layer_slabs = []
    ki = 1
    for _ in range(NUM_LAYERS):
        # fold 1/sqrt(d_k) into the Q projection at init time
        wq = (jax.random.normal(keys[ki + 0], (WORD_DIM, WORD_DIM),
                                dtype=jnp.float32) * 0.02 * attn_scale
              ).astype(jnp.bfloat16)
        wk = nrm(keys[ki + 1], (WORD_DIM, WORD_DIM))
        wv = nrm(keys[ki + 2], (WORD_DIM, WORD_DIM))
        wo = nrm(keys[ki + 3], (WORD_DIM, WORD_DIM))
        w1 = nrm(keys[ki + 4], (WORD_DIM, FFN_DIM))
        w2 = nrm(keys[ki + 5], (FFN_DIM, WORD_DIM))
        # packed layer slab: [Wq|Wk|Wv | Wo | W1 | W2^T] along the lane axis
        layer_slabs.append(jnp.concatenate([wq, wk, wv, wo, w1, w2.T], axis=1))
        ki += 6

    return {
        "emb": emb,                                                # (128, D)
        "w": jnp.stack(layer_slabs),                               # (L, D, 256)
        "ln": jnp.ones((2 * NUM_LAYERS + 1, WORD_DIM), jnp.bfloat16),
    }


# --------------------------- pure-JAX reference ------------------------------
def reference_forward(params, input_ids, attention_mask):
    """Same math / precision policy in plain jnp (correctness check)."""
    f32, bf16 = jnp.float32, jnp.bfloat16
    D, F, Dh, H = WORD_DIM, FFN_DIM, HEAD_DIM, NUM_HEADS

    x = params["emb"].astype(f32)[input_ids.reshape(-1)]           # (BS, D)
    bias = (1.0 - attention_mask.astype(f32)) * -1e9               # (B, S)

    for l in range(NUM_LAYERS):
        wl = params["w"][l]
        wqkv = wl[:, _OFF_QKV:_OFF_WO]
        wo = wl[:, _OFF_WO:_OFF_W1]
        w1 = wl[:, _OFF_W1:_OFF_W2T]
        w2t = wl[:, _OFF_W2T:_SLAB_COLS]
        ln1 = params["ln"][2 * l].astype(f32)
        ln2 = params["ln"][2 * l + 1].astype(f32)

        var = jnp.mean(x * x, axis=-1, keepdims=True)
        h = (x * jax.lax.rsqrt(var + EPS) * ln1).astype(bf16)
        qkv = jnp.dot(h, wqkv, preferred_element_type=f32)
        q = qkv[:, :D].reshape(BATCH, SEQ, H, Dh).transpose(0, 2, 1, 3)
        k = qkv[:, D:2 * D].reshape(BATCH, SEQ, H, Dh).transpose(0, 2, 1, 3)
        v = qkv[:, 2 * D:].reshape(BATCH, SEQ, H, Dh).transpose(0, 2, 1, 3)
        s = jnp.einsum('bhqd,bhkd->bhqk', q.astype(bf16), k.astype(bf16),
                       preferred_element_type=f32)
        s = s + bias[:, None, None, :]
        p = jax.nn.softmax(s, axis=-1).astype(bf16)
        ctx = jnp.einsum('bhqk,bhkd->bhqd', p, v.astype(bf16),
                         preferred_element_type=f32)
        ctx = ctx.transpose(0, 2, 1, 3).reshape(BS, D).astype(bf16)
        x = x + jnp.dot(ctx, wo, preferred_element_type=f32)

        var2 = jnp.mean(x * x, axis=-1, keepdims=True)
        h2 = (x * jax.lax.rsqrt(var2 + EPS) * ln2).astype(bf16)
        f = jnp.maximum(jnp.dot(h2, w1, preferred_element_type=f32),
                        0.0).astype(bf16)
        x = x + jnp.dot(f, w2t.T.astype(bf16), preferred_element_type=f32)

    lnf = params["ln"][2 * NUM_LAYERS].astype(f32)
    var = jnp.mean(x * x, axis=-1, keepdims=True)
    return (x * jax.lax.rsqrt(var + EPS) * lnf).reshape(BATCH, SEQ, WORD_DIM)


# TODO(synk): the 'elmo'/'bert'-family branches depend on Python tokenizers,
# pretrained checkpoints and ragged long_out re-packing of variable-length
# docs; they have no clean Pallas equivalent and are not implemented here.

if __name__ == "__main__":
    key = jax.random.PRNGKey(0)
    params = init_params(key)

    # deterministic example "token" dict (as would come from a tokenizer)
    ids_key = jax.random.fold_in(key, 123)
    input_ids = jax.random.randint(ids_key, (BATCH, SEQ), 0, VOCAB,
                                   dtype=jnp.int32)
    # second sequence has 2 padding positions at the end
    attention_mask = jnp.array(
        [[1, 1, 1, 1, 1, 1, 1, 1],
         [1, 1, 1, 1, 1, 1, 0, 0]], dtype=jnp.int32)

    out = word_encoder_forward(params, input_ids, attention_mask)
    out = jax.block_until_ready(out)

    assert out.shape == (BATCH, SEQ, WORD_DIM)
    assert jnp.all(jnp.isfinite(out))

    ref = jax.block_until_ready(
        reference_forward(params, input_ids, attention_mask))
    assert jnp.allclose(out, ref, atol=5e-2, rtol=5e-2), (
        f"max abs diff {jnp.max(jnp.abs(out - ref))}")

    print("KERNEL_OK")
</pallas_src>

<mosaic_0001>
module attributes {stable_mosaic.version = 11 : i64} {
  func.func @fused_word_encoder_kernel(%arg0: memref<16x1xi32, #tpu.memory_space<vmem>>, %arg1: memref<2x8xf32, #tpu.memory_space<vmem>>, %arg2: memref<128x32xbf16, #tpu.memory_space<vmem>>, %arg3: memref<2x32x256xbf16, #tpu.memory_space<vmem>>, %arg4: memref<5x32xbf16, #tpu.memory_space<vmem>>, %arg5: memref<16x32xf32, #tpu.memory_space<vmem>>) attributes {dimension_semantics = [], scalar_prefetch = 0 : i64, scratch_operands = 0 : i64, tpu.core_type = #tpu.core_type<tc>} {
    %c0 = arith.constant 0 : index
    %c0_0 = arith.constant 0 : index
    %0 = vector.load %arg0[%c0, %c0_0] : memref<16x1xi32, #tpu.memory_space<vmem>>, vector<16x1xi32>
    %1 = tpu.iota {dimensions = array<i32: 1>} : vector<16x128xi32>
    %2 = vector.broadcast %0 : vector<16x1xi32> to vector<16x128xi32>
    %3 = arith.cmpi eq, %1, %2 : vector<16x128xi32>
    %4 = arith.extui %3 : vector<16x128xi1> to vector<16x128xi32>
    %5 = arith.sitofp %4 : vector<16x128xi32> to vector<16x128xf32>
    %6 = arith.truncf %5 : vector<16x128xf32> to vector<16x128xbf16>
    %c0_1 = arith.constant 0 : index
    %c0_2 = arith.constant 0 : index
    %7 = vector.load %arg2[%c0_1, %c0_2] : memref<128x32xbf16, #tpu.memory_space<vmem>>, vector<128x32xbf16>
    %cst = arith.constant dense<0.000000e+00> : vector<16x32xf32>
    %8 = tpu.matmul %6, %7, %cst {dimension_numbers = #tpu.dot_dimension_numbers<[1], [0], [0], [1], [0, 0, 1, 1], [], []>} : vector<16x128xbf16>, vector<128x32xbf16>, vector<16x32xf32> -> vector<16x32xf32>
    %c0_3 = arith.constant 0 : index
    %c0_4 = arith.constant 0 : index
    %9 = vector.load %arg1[%c0_3, %c0_4] : memref<2x8xf32, #tpu.memory_space<vmem>>, vector<2x8xf32>
    %cst_5 = arith.constant 1.000000e+00 : f32
    %10 = vector.broadcast %cst_5 : f32 to vector<2x8xf32>
    %11 = arith.subf %10, %9 : vector<2x8xf32>
    %cst_6 = arith.constant -1.000000e+09 : f32
    %12 = vector.broadcast %cst_6 : f32 to vector<2x8xf32>
    %13 = arith.mulf %11, %12 : vector<2x8xf32>
    %14 = vector.extract_strided_slice %13 {offsets = [0, 0], sizes = [1, 8], strides = [1, 1]} : vector<2x8xf32> to vector<1x8xf32>
    %15 = vector.shape_cast %14 : vector<1x8xf32> to vector<1x8xf32>
    %16 = vector.broadcast %15 : vector<1x8xf32> to vector<32x8xf32>
    %17 = vector.extract_strided_slice %13 {offsets = [1, 0], sizes = [1, 8], strides = [1, 1]} : vector<2x8xf32> to vector<1x8xf32>
    %18 = vector.shape_cast %17 : vector<1x8xf32> to vector<1x8xf32>
    %19 = vector.broadcast %18 : vector<1x8xf32> to vector<32x8xf32>
    %20 = tpu.concatenate %16, %19 in 0 : vector<32x8xf32>, vector<32x8xf32> -> vector<64x8xf32>
    %c0_7 = arith.constant 0 : index
    %c0_8 = arith.constant 0 : index
    %c0_9 = arith.constant 0 : index
    %21 = vector.load %arg3[%c0_7, %c0_8, %c0_9] : memref<2x32x256xbf16, #tpu.memory_space<vmem>>, vector<1x32x256xbf16>
    %22 = vector.shape_cast %21 : vector<1x32x256xbf16> to vector<32x256xbf16>
    %23 = vector.extract_strided_slice %22 {offsets = [0, 0], sizes = [32, 96], strides = [1, 1]} : vector<32x256xbf16> to vector<32x96xbf16>
    %24 = vector.extract_strided_slice %22 {offsets = [0, 96], sizes = [32, 32], strides = [1, 1]} : vector<32x256xbf16> to vector<32x32xbf16>
    %25 = vector.extract_strided_slice %22 {offsets = [0, 128], sizes = [32, 64], strides = [1, 1]} : vector<32x256xbf16> to vector<32x64xbf16>
    %26 = vector.extract_strided_slice %22 {offsets = [0, 192], sizes = [32, 64], strides = [1, 1]} : vector<32x256xbf16> to vector<32x64xbf16>
    %c0_10 = arith.constant 0 : index
    %c0_11 = arith.constant 0 : index
    %27 = vector.load %arg4[%c0_10, %c0_11] : memref<5x32xbf16, #tpu.memory_space<vmem>>, vector<1x32xbf16>
    %28 = arith.extf %27 : vector<1x32xbf16> to vector<1x32xf32>
    %c1 = arith.constant 1 : index
    %c0_12 = arith.constant 0 : index
    %29 = vector.load %arg4[%c1, %c0_12] : memref<5x32xbf16, #tpu.memory_space<vmem>>, vector<1x32xbf16>
    %30 = arith.extf %29 : vector<1x32xbf16> to vector<1x32xf32>
    %31 = arith.mulf %8, %8 : vector<16x32xf32>
    %cst_13 = arith.constant dense<0.000000e+00> : vector<16xf32>
    %32 = vector.multi_reduction <add>, %31, %cst_13 [1] : vector<16x32xf32> to vector<16xf32>
    %33 = vector.shape_cast %32 : vector<16xf32> to vector<16x1xf32>
    %cst_14 = arith.constant 3.200000e+01 : f32
    %34 = vector.broadcast %cst_14 : f32 to vector<16x1xf32>
    %35 = arith.divf %33, %34 : vector<16x1xf32>
    %cst_15 = arith.constant 9.99999997E-7 : f32
    %36 = vector.broadcast %cst_15 : f32 to vector<16x1xf32>
    %37 = arith.addf %35, %36 : vector<16x1xf32>
    %38 = math.rsqrt %37 : vector<16x1xf32>
    %39 = vector.broadcast %38 : vector<16x1xf32> to vector<16x32xf32>
    %40 = arith.mulf %8, %39 : vector<16x32xf32>
    %41 = vector.broadcast %28 : vector<1x32xf32> to vector<16x32xf32>
    %42 = arith.mulf %40, %41 : vector<16x32xf32>
    %43 = arith.truncf %42 : vector<16x32xf32> to vector<16x32xbf16>
    %cst_16 = arith.constant dense<0.000000e+00> : vector<16x96xf32>
    %44 = tpu.matmul %43, %23, %cst_16 {dimension_numbers = #tpu.dot_dimension_numbers<[1], [0], [0], [1], [0, 0, 1, 1], [], []>} : vector<16x32xbf16>, vector<32x96xbf16>, vector<16x96xf32> -> vector<16x96xf32>
    %45 = vector.extract_strided_slice %44 {offsets = [0, 0], sizes = [8, 8], strides = [1, 1]} : vector<16x96xf32> to vector<8x8xf32>
    %46 = arith.truncf %45 : vector<8x8xf32> to vector<8x8xbf16>
    %47 = vector.extract_strided_slice %44 {offsets = [0, 32], sizes = [8, 8], strides = [1, 1]} : vector<16x96xf32> to vector<8x8xf32>
    %48 = arith.truncf %47 : vector<8x8xf32> to vector<8x8xbf16>
    %cst_17 = arith.constant dense<0.000000e+00> : vector<8x8xf32>
    %49 = tpu.matmul %46, %48, %cst_17 {dimension_numbers = #tpu.dot_dimension_numbers<[1], [1], [0], [0], [0, 0, 1, 0], [], []>} : vector<8x8xbf16>, vector<8x8xbf16>, vector<8x8xf32> -> vector<8x8xf32>
    %50 = vector.extract_strided_slice %44 {offsets = [0, 8], sizes = [8, 8], strides = [1, 1]} : vector<16x96xf32> to vector<8x8xf32>
    %51 = arith.truncf %50 : vector<8x8xf32> to vector<8x8xbf16>
    %52 = vector.extract_strided_slice %44 {offsets = [0, 40], sizes = [8, 8], strides = [1, 1]} : vector<16x96xf32> to vector<8x8xf32>
    %53 = arith.truncf %52 : vector<8x8xf32> to vector<8x8xbf16>
    %cst_18 = arith.constant dense<0.000000e+00> : vector<8x8xf32>
    %54 = tpu.matmul %51, %53, %cst_18 {dimension_numbers = #tpu.dot_dimension_numbers<[1], [1], [0], [0], [0, 0, 1, 0], [], []>} : vector<8x8xbf16>, vector<8x8xbf16>, vector<8x8xf32> -> vector<8x8xf32>
    %55 = vector.extract_strided_slice %44 {offsets = [0, 16], sizes = [8, 8], strides = [1, 1]} : vector<16x96xf32> to vector<8x8xf32>
    %56 = arith.truncf %55 : vector<8x8xf32> to vector<8x8xbf16>
    %57 = vector.extract_strided_slice %44 {offsets = [0, 48], sizes = [8, 8], strides = [1, 1]} : vector<16x96xf32> to vector<8x8xf32>
    %58 = arith.truncf %57 : vector<8x8xf32> to vector<8x8xbf16>
    %cst_19 = arith.constant dense<0.000000e+00> : vector<8x8xf32>
    %59 = tpu.matmul %56, %58, %cst_19 {dimension_numbers = #tpu.dot_dimension_numbers<[1], [1], [0], [0], [0, 0, 1, 0], [], []>} : vector<8x8xbf16>, vector<8x8xbf16>, vector<8x8xf32> -> vector<8x8xf32>
    %60 = vector.extract_strided_slice %44 {offsets = [0, 24], sizes = [8, 8], strides = [1, 1]} : vector<16x96xf32> to vector<8x8xf32>
    %61 = arith.truncf %60 : vector<8x8xf32> to vector<8x8xbf16>
    %62 = vector.extract_strided_slice %44 {offsets = [0, 56], sizes = [8, 8], strides = [1, 1]} : vector<16x96xf32> to vector<8x8xf32>
    %63 = arith.truncf %62 : vector<8x8xf32> to vector<8x8xbf16>
    %cst_20 = arith.constant dense<0.000000e+00> : vector<8x8xf32>
    %64 = tpu.matmul %61, %63, %cst_20 {dimension_numbers = #tpu.dot_dimension_numbers<[1], [1], [0], [0], [0, 0, 1, 0], [], []>} : vector<8x8xbf16>, vector<8x8xbf16>, vector<8x8xf32> -> vector<8x8xf32>
    %65 = vector.extract_strided_slice %44 {offsets = [8, 0], sizes = [8, 8], strides = [1, 1]} : vector<16x96xf32> to vector<8x8xf32>
    %66 = arith.truncf %65 : vector<8x8xf32> to vector<8x8xbf16>
    %67 = vector.extract_strided_slice %44 {offsets = [8, 32], sizes = [8, 8], strides = [1, 1]} : vector<16x96xf32> to vector<8x8xf32>
    %68 = arith.truncf %67 : vector<8x8xf32> to vector<8x8xbf16>
    %cst_21 = arith.constant dense<0.000000e+00> : vector<8x8xf32>
    %69 = tpu.matmul %66, %68, %cst_21 {dimension_numbers = #tpu.dot_dimension_numbers<[1], [1], [0], [0], [0, 0, 1, 0], [], []>} : vector<8x8xbf16>, vector<8x8xbf16>, vector<8x8xf32> -> vector<8x8xf32>
    %70 = vector.extract_strided_slice %44 {offsets = [8, 8], sizes = [8, 8], strides = [1, 1]} : vector<16x96xf32> to vector<8x8xf32>
    %71 = arith.truncf %70 : vector<8x8xf32> to vector<8x8xbf16>
    %72 = vector.extract_strided_slice %44 {offsets = [8, 40], sizes = [8, 8], strides = [1, 1]} : vector<16x96xf32> to vector<8x8xf32>
    %73 = arith.truncf %72 : vector<8x8xf32> to vector<8x8xbf16>
    %cst_22 = arith.constant dense<0.000000e+00> : vector<8x8xf32>
    %74 = tpu.matmul %71, %73, %cst_22 {dimension_numbers = #tpu.dot_dimension_numbers<[1], [1], [0], [0], [0, 0, 1, 0], [], []>} : vector<8x8xbf16>, vector<8x8xbf16>, vector<8x8xf32> -> vector<8x8xf32>
    %75 = vector.extract_strided_slice %44 {offsets = [8, 16], sizes = [8, 8], strides = [1, 1]} : vector<16x96xf32> to vector<8x8xf32>
    %76 = arith.truncf %75 : vector<8x8xf32> to vector<8x8xbf16>
    %77 = vector.extract_strided_slice %44 {offsets = [8, 48], sizes = [8, 8], strides = [1, 1]} : vector<16x96xf32> to vector<8x8xf32>
    %78 = arith.truncf %77 : vector<8x8xf32> to vector<8x8xbf16>
    %cst_23 = arith.constant dense<0.000000e+00> : vector<8x8xf32>
    %79 = tpu.matmul %76, %78, %cst_23 {dimension_numbers = #tpu.dot_dimension_numbers<[1], [1], [0], [0], [0, 0, 1, 0], [], []>} : vector<8x8xbf16>, vector<8x8xbf16>, vector<8x8xf32> -> vector<8x8xf32>
    %80 = vector.extract_strided_slice %44 {offsets = [8, 24], sizes = [8, 8], strides = [1, 1]} : vector<16x96xf32> to vector<8x8xf32>
    %81 = arith.truncf %80 : vector<8x8xf32> to vector<8x8xbf16>
    %82 = vector.extract_strided_slice %44 {offsets = [8, 56], sizes = [8, 8], strides = [1, 1]} : vector<16x96xf32> to vector<8x8xf32>
    %83 = arith.truncf %82 : vector<8x8xf32> to vector<8x8xbf16>
    %cst_24 = arith.constant dense<0.000000e+00> : vector<8x8xf32>
    %84 = tpu.matmul %81, %83, %cst_24 {dimension_numbers = #tpu.dot_dimension_numbers<[1], [1], [0], [0], [0, 0, 1, 0], [], []>} : vector<8x8xbf16>, vector<8x8xbf16>, vector<8x8xf32> -> vector<8x8xf32>
    %85 = tpu.concatenate %49, %54, %59, %64, %69, %74, %79, %84 in 0 : vector<8x8xf32>, vector<8x8xf32>, vector<8x8xf32>, vector<8x8xf32>, vector<8x8xf32>, vector<8x8xf32>, vector<8x8xf32>, vector<8x8xf32> -> vector<64x8xf32>
    %86 = arith.addf %85, %20 : vector<64x8xf32>
    %cst_25 = arith.constant dense<0xFF800000> : vector<64xf32>
    %87 = vector.multi_reduction <maximumf>, %86, %cst_25 [1] : vector<64x8xf32> to vector<64xf32>
    %88 = vector.shape_cast %87 : vector<64xf32> to vector<64x1xf32>
    %89 = vector.broadcast %88 : vector<64x1xf32> to vector<64x8xf32>
    %90 = arith.subf %86, %89 : vector<64x8xf32>
    %91 = math.exp %90 : vector<64x8xf32>
    %cst_26 = arith.constant dense<0.000000e+00> : vector<64xf32>
    %92 = vector.multi_reduction <add>, %91, %cst_26 [1] : vector<64x8xf32> to vector<64xf32>
    %93 = vector.shape_cast %92 : vector<64xf32> to vector<64x1xf32>
    %94 = vector.broadcast %93 : vector<64x1xf32> to vector<64x8xf32>
    %95 = arith.divf %91, %94 : vector<64x8xf32>
    %96 = arith.truncf %95 : vector<64x8xf32> to vector<64x8xbf16>
    %97 = vector.extract_strided_slice %96 {offsets = [0, 0], sizes = [8, 8], strides = [1, 1]} : vector<64x8xbf16> to vector<8x8xbf16>
    %98 = vector.extract_strided_slice %44 {offsets = [0, 64], sizes = [8, 8], strides = [1, 1]} : vector<16x96xf32> to vector<8x8xf32>
    %99 = arith.truncf %98 : vector<8x8xf32> to vector<8x8xbf16>
    %cst_27 = arith.constant dense<0.000000e+00> : vector<8x8xf32>
    %100 = tpu.matmul %97, %99, %cst_27 {dimension_numbers = #tpu.dot_dimension_numbers<[1], [0], [0], [1], [0, 0, 1, 1], [], []>} : vector<8x8xbf16>, vector<8x8xbf16>, vector<8x8xf32> -> vector<8x8xf32>
    %101 = vector.extract_strided_slice %96 {offsets = [8, 0], sizes = [8, 8], strides = [1, 1]} : vector<64x8xbf16> to vector<8x8xbf16>
    %102 = vector.extract_strided_slice %44 {offsets = [0, 72], sizes = [8, 8], strides = [1, 1]} : vector<16x96xf32> to vector<8x8xf32>
    %103 = arith.truncf %102 : vector<8x8xf32> to vector<8x8xbf16>
    %cst_28 = arith.constant dense<0.000000e+00> : vector<8x8xf32>
    %104 = tpu.matmul %101, %103, %cst_28 {dimension_numbers = #tpu.dot_dimension_numbers<[1], [0], [0], [1], [0, 0, 1, 1], [], []>} : vector<8x8xbf16>, vector<8x8xbf16>, vector<8x8xf32> -> vector<8x8xf32>
    %105 = vector.extract_strided_slice %96 {offsets = [16, 0], sizes = [8, 8], strides = [1, 1]} : vector<64x8xbf16> to vector<8x8xbf16>
    %106 = vector.extract_strided_slice %44 {offsets = [0, 80], sizes = [8, 8], strides = [1, 1]} : vector<16x96xf32> to vector<8x8xf32>
    %107 = arith.truncf %106 : vector<8x8xf32> to vector<8x8xbf16>
    %cst_29 = arith.constant dense<0.000000e+00> : vector<8x8xf32>
    %108 = tpu.matmul %105, %107, %cst_29 {dimension_numbers = #tpu.dot_dimension_numbers<[1], [0], [0], [1], [0, 0, 1, 1], [], []>} : vector<8x8xbf16>, vector<8x8xbf16>, vector<8x8xf32> -> vector<8x8xf32>
    %109 = vector.extract_strided_slice %96 {offsets = [24, 0], sizes = [8, 8], strides = [1, 1]} : vector<64x8xbf16> to vector<8x8xbf16>
    %110 = vector.extract_strided_slice %44 {offsets = [0, 88], sizes = [8, 8], strides = [1, 1]} : vector<16x96xf32> to vector<8x8xf32>
    %111 = arith.truncf %110 : vector<8x8xf32> to vector<8x8xbf16>
    %cst_30 = arith.constant dense<0.000000e+00> : vector<8x8xf32>
    %112 = tpu.matmul %109, %111, %cst_30 {dimension_numbers = #tpu.dot_dimension_numbers<[1], [0], [0], [1], [0, 0, 1, 1], [], []>} : vector<8x8xbf16>, vector<8x8xbf16>, vector<8x8xf32> -> vector<8x8xf32>
    %113 = tpu.concatenate %100, %104, %108, %112 in 1 : vector<8x8xf32>, vector<8x8xf32>, vector<8x8xf32>, vector<8x8xf32> -> vector<8x32xf32>
    %114 = vector.extract_strided_slice %96 {offsets = [32, 0], sizes = [8, 8], strides = [1, 1]} : vector<64x8xbf16> to vector<8x8xbf16>
    %115 = vector.extract_strided_slice %44 {offsets = [8, 64], sizes = [8, 8], strides = [1, 1]} : vector<16x96xf32> to vector<8x8xf32>
    %116 = arith.truncf %115 : vector<8x8xf32> to vector<8x8xbf16>
    %cst_31 = arith.constant dense<0.000000e+00> : vector<8x8xf32>
    %117 = tpu.matmul %114, %116, %cst_31 {dimension_numbers = #tpu.dot_dimension_numbers<[1], [0], [0], [1], [0, 0, 1, 1], [], []>} : vector<8x8xbf16>, vector<8x8xbf16>, vector<8x8xf32> -> vector<8x8xf32>
    %118 = vector.extract_strided_slice %96 {offsets = [40, 0], sizes = [8, 8], strides = [1, 1]} : vector<64x8xbf16> to vector<8x8xbf16>
    %119 = vector.extract_strided_slice %44 {offsets = [8, 72], sizes = [8, 8], strides = [1, 1]} : vector<16x96xf32> to vector<8x8xf32>
    %120 = arith.truncf %119 : vector<8x8xf32> to vector<8x8xbf16>
    %cst_32 = arith.constant dense<0.000000e+00> : vector<8x8xf32>
    %121 = tpu.matmul %118, %120, %cst_32 {dimension_numbers = #tpu.dot_dimension_numbers<[1], [0], [0], [1], [0, 0, 1, 1], [], []>} : vector<8x8xbf16>, vector<8x8xbf16>, vector<8x8xf32> -> vector<8x8xf32>
    %122 = vector.extract_strided_slice %96 {offsets = [48, 0], sizes = [8, 8], strides = [1, 1]} : vector<64x8xbf16> to vector<8x8xbf16>
    %123 = vector.extract_strided_slice %44 {offsets = [8, 80], sizes = [8, 8], strides = [1, 1]} : vector<16x96xf32> to vector<8x8xf32>
    %124 = arith.truncf %123 : vector<8x8xf32> to vector<8x8xbf16>
    %cst_33 = arith.constant dense<0.000000e+00> : vector<8x8xf32>
    %125 = tpu.matmul %122, %124, %cst_33 {dimension_numbers = #tpu.dot_dimension_numbers<[1], [0], [0], [1], [0, 0, 1, 1], [], []>} : vector<8x8xbf16>, vector<8x8xbf16>, vector<8x8xf32> -> vector<8x8xf32>
    %126 = vector.extract_strided_slice %96 {offsets = [56, 0], sizes = [8, 8], strides = [1, 1]} : vector<64x8xbf16> to vector<8x8xbf16>
    %127 = vector.extract_strided_slice %44 {offsets = [8, 88], sizes = [8, 8], strides = [1, 1]} : vector<16x96xf32> to vector<8x8xf32>
    %128 = arith.truncf %127 : vector<8x8xf32> to vector<8x8xbf16>
    %cst_34 = arith.constant dense<0.000000e+00> : vector<8x8xf32>
    %129 = tpu.matmul %126, %128, %cst_34 {dimension_numbers = #tpu.dot_dimension_numbers<[1], [0], [0], [1], [0, 0, 1, 1], [], []>} : vector<8x8xbf16>, vector<8x8xbf16>, vector<8x8xf32> -> vector<8x8xf32>
    %130 = tpu.concatenate %117, %121, %125, %129 in 1 : vector<8x8xf32>, vector<8x8xf32>, vector<8x8xf32>, vector<8x8xf32> -> vector<8x32xf32>
    %131 = tpu.concatenate %113, %130 in 0 : vector<8x32xf32>, vector<8x32xf32> -> vector<16x32xf32>
    %132 = arith.truncf %131 : vector<16x32xf32> to vector<16x32xbf16>
    %cst_35 = arith.constant dense<0.000000e+00> : vector<16x32xf32>
    %133 = tpu.matmul %132, %24, %cst_35 {dimension_numbers = #tpu.dot_dimension_numbers<[1], [0], [0], [1], [0, 0, 1, 1], [], []>} : vector<16x32xbf16>, vector<32x32xbf16>, vector<16x32xf32> -> vector<16x32xf32>
    %134 = arith.addf %8, %133 : vector<16x32xf32>
    %135 = arith.mulf %134, %134 : vector<16x32xf32>
    %cst_36 = arith.constant dense<0.000000e+00> : vector<16xf32>
    %136 = vector.multi_reduction <add>, %135, %cst_36 [1] : vector<16x32xf32> to vector<16xf32>
    %137 = vector.shape_cast %136 : vector<16xf32> to vector<16x1xf32>
    %cst_37 = arith.constant 3.200000e+01 : f32
    %138 = vector.broadcast %cst_37 : f32 to vector<16x1xf32>
    %139 = arith.divf %137, %138 : vector<16x1xf32>
    %cst_38 = arith.constant 9.99999997E-7 : f32
    %140 = vector.broadcast %cst_38 : f32 to vector<16x1xf32>
    %141 = arith.addf %139, %140 : vector<16x1xf32>
    %142 = math.rsqrt %141 : vector<16x1xf32>
    %143 = vector.broadcast %142 : vector<16x1xf32> to vector<16x32xf32>
    %144 = arith.mulf %134, %143 : vector<16x32xf32>
    %145 = vector.broadcast %30 : vector<1x32xf32> to vector<16x32xf32>
    %146 = arith.mulf %144, %145 : vector<16x32xf32>
    %147 = arith.truncf %146 : vector<16x32xf32> to vector<16x32xbf16>
    %cst_39 = arith.constant dense<0.000000e+00> : vector<16x64xf32>
    %148 = tpu.matmul %147, %25, %cst_39 {dimension_numbers = #tpu.dot_dimension_numbers<[1], [0], [0], [1], [0, 0, 1, 1], [], []>} : vector<16x32xbf16>, vector<32x64xbf16>, vector<16x64xf32> -> vector<16x64xf32>
    %cst_40 = arith.constant 0.000000e+00 : f32
    %149 = vector.broadcast %cst_40 : f32 to vector<16x64xf32>
    %150 = arith.maximumf %148, %149 : vector<16x64xf32>
    %151 = arith.truncf %150 : vector<16x64xf32> to vector<16x64xbf16>
    %cst_41 = arith.constant dense<0.000000e+00> : vector<16x32xf32>
    %152 = tpu.matmul %151, %26, %cst_41 {dimension_numbers = #tpu.dot_dimension_numbers<[1], [1], [0], [0], [0, 0, 1, 0], [], []>} : vector<16x64xbf16>, vector<32x64xbf16>, vector<16x32xf32> -> vector<16x32xf32>
    %153 = arith.addf %134, %152 : vector<16x32xf32>
    %c1_42 = arith.constant 1 : index
    %c0_43 = arith.constant 0 : index
    %c0_44 = arith.constant 0 : index
    %154 = vector.load %arg3[%c1_42, %c0_43, %c0_44] : memref<2x32x256xbf16, #tpu.memory_space<vmem>>, vector<1x32x256xbf16>
    %155 = vector.shape_cast %154 : vector<1x32x256xbf16> to vector<32x256xbf16>
    %156 = vector.extract_strided_slice %155 {offsets = [0, 0], sizes = [32, 96], strides = [1, 1]} : vector<32x256xbf16> to vector<32x96xbf16>
    %157 = vector.extract_strided_slice %155 {offsets = [0, 96], sizes = [32, 32], strides = [1, 1]} : vector<32x256xbf16> to vector<32x32xbf16>
    %158 = vector.extract_strided_slice %155 {offsets = [0, 128], sizes = [32, 64], strides = [1, 1]} : vector<32x256xbf16> to vector<32x64xbf16>
    %159 = vector.extract_strided_slice %155 {offsets = [0, 192], sizes = [32, 64], strides = [1, 1]} : vector<32x256xbf16> to vector<32x64xbf16>
    %c2 = arith.constant 2 : index
    %c0_45 = arith.constant 0 : index
    %160 = vector.load %arg4[%c2, %c0_45] : memref<5x32xbf16, #tpu.memory_space<vmem>>, vector<1x32xbf16>
    %161 = arith.extf %160 : vector<1x32xbf16> to vector<1x32xf32>
    %c3 = arith.constant 3 : index
    %c0_46 = arith.constant 0 : index
    %162 = vector.load %arg4[%c3, %c0_46] : memref<5x32xbf16, #tpu.memory_space<vmem>>, vector<1x32xbf16>
    %163 = arith.extf %162 : vector<1x32xbf16> to vector<1x32xf32>
    %164 = arith.mulf %153, %153 : vector<16x32xf32>
    %cst_47 = arith.constant dense<0.000000e+00> : vector<16xf32>
    %165 = vector.multi_reduction <add>, %164, %cst_47 [1] : vector<16x32xf32> to vector<16xf32>
    %166 = vector.shape_cast %165 : vector<16xf32> to vector<16x1xf32>
    %cst_48 = arith.constant 3.200000e+01 : f32
    %167 = vector.broadcast %cst_48 : f32 to vector<16x1xf32>
    %168 = arith.divf %166, %167 : vector<16x1xf32>
    %cst_49 = arith.constant 9.99999997E-7 : f32
    %169 = vector.broadcast %cst_49 : f32 to vector<16x1xf32>
    %170 = arith.addf %168, %169 : vector<16x1xf32>
    %171 = math.rsqrt %170 : vector<16x1xf32>
    %172 = vector.broadcast %171 : vector<16x1xf32> to vector<16x32xf32>
    %173 = arith.mulf %153, %172 : vector<16x32xf32>
    %174 = vector.broadcast %161 : vector<1x32xf32> to vector<16x32xf32>
    %175 = arith.mulf %173, %174 : vector<16x32xf32>
    %176 = arith.truncf %175 : vector<16x32xf32> to vector<16x32xbf16>
    %cst_50 = arith.constant dense<0.000000e+00> : vector<16x96xf32>
    %177 = tpu.matmul %176, %156, %cst_50 {dimension_numbers = #tpu.dot_dimension_numbers<[1], [0], [0], [1], [0, 0, 1, 1], [], []>} : vector<16x32xbf16>, vector<32x96xbf16>, vector<16x96xf32> -> vector<16x96xf32>
    %178 = vector.extract_strided_slice %177 {offsets = [0, 0], sizes = [8, 8], strides = [1, 1]} : vector<16x96xf32> to vector<8x8xf32>
    %179 = arith.truncf %178 : vector<8x8xf32> to vector<8x8xbf16>
    %180 = vector.extract_strided_slice %177 {offsets = [0, 32], sizes = [8, 8], strides = [1, 1]} : vector<16x96xf32> to vector<8x8xf32>
    %181 = arith.truncf %180 : vector<8x8xf32> to vector<8x8xbf16>
    %cst_51 = arith.constant dense<0.000000e+00> : vector<8x8xf32>
    %182 = tpu.matmul %179, %181, %cst_51 {dimension_numbers = #tpu.dot_dimension_numbers<[1], [1], [0], [0], [0, 0, 1, 0], [], []>} : vector<8x8xbf16>, vector<8x8xbf16>, vector<8x8xf32> -> vector<8x8xf32>
    %183 = vector.extract_strided_slice %177 {offsets = [0, 8], sizes = [8, 8], strides = [1, 1]} : vector<16x96xf32> to vector<8x8xf32>
    %184 = arith.truncf %183 : vector<8x8xf32> to vector<8x8xbf16>
    %185 = vector.extract_strided_slice %177 {offsets = [0, 40], sizes = [8, 8], strides = [1, 1]} : vector<16x96xf32> to vector<8x8xf32>
    %186 = arith.truncf %185 : vector<8x8xf32> to vector<8x8xbf16>
    %cst_52 = arith.constant dense<0.000000e+00> : vector<8x8xf32>
    %187 = tpu.matmul %184, %186, %cst_52 {dimension_numbers = #tpu.dot_dimension_numbers<[1], [1], [0], [0], [0, 0, 1, 0], [], []>} : vector<8x8xbf16>, vector<8x8xbf16>, vector<8x8xf32> -> vector<8x8xf32>
    %188 = vector.extract_strided_slice %177 {offsets = [0, 16], sizes = [8, 8], strides = [1, 1]} : vector<16x96xf32> to vector<8x8xf32>
    %189 = arith.truncf %188 : vector<8x8xf32> to vector<8x8xbf16>
    %190 = vector.extract_strided_slice %177 {offsets = [0, 48], sizes = [8, 8], strides = [1, 1]} : vector<16x96xf32> to vector<8x8xf32>
    %191 = arith.truncf %190 : vector<8x8xf32> to vector<8x8xbf16>
    %cst_53 = arith.constant dense<0.000000e+00> : vector<8x8xf32>
    %192 = tpu.matmul %189, %191, %cst_53 {dimension_numbers = #tpu.dot_dimension_numbers<[1], [1], [0], [0], [0, 0, 1, 0], [], []>} : vector<8x8xbf16>, vector<8x8xbf16>, vector<8x8xf32> -> vector<8x8xf32>
    %193 = vector.extract_strided_slice %177 {offsets = [0, 24], sizes = [8, 8], strides = [1, 1]} : vector<16x96xf32> to vector<8x8xf32>
    %194 = arith.truncf %193 : vector<8x8xf32> to vector<8x8xbf16>
    %195 = vector.extract_strided_slice %177 {offsets = [0, 56], sizes = [8, 8], strides = [1, 1]} : vector<16x96xf32> to vector<8x8xf32>
    %196 = arith.truncf %195 : vector<8x8xf32> to vector<8x8xbf16>
    %cst_54 = arith.constant dense<0.000000e+00> : vector<8x8xf32>
    %197 = tpu.matmul %194, %196, %cst_54 {dimension_numbers = #tpu.dot_dimension_numbers<[1], [1], [0], [0], [0, 0, 1, 0], [], []>} : vector<8x8xbf16>, vector<8x8xbf16>, vector<8x8xf32> -> vector<8x8xf32>
    %198 = vector.extract_strided_slice %177 {offsets = [8, 0], sizes = [8, 8], strides = [1, 1]} : vector<16x96xf32> to vector<8x8xf32>
    %199 = arith.truncf %198 : vector<8x8xf32> to vector<8x8xbf16>
    %200 = vector.extract_strided_slice %177 {offsets = [8, 32], sizes = [8, 8], strides = [1, 1]} : vector<16x96xf32> to vector<8x8xf32>
    %201 = arith.truncf %200 : vector<8x8xf32> to vector<8x8xbf16>
    %cst_55 = arith.constant dense<0.000000e+00> : vector<8x8xf32>
    %202 = tpu.matmul %199, %201, %cst_55 {dimension_numbers = #tpu.dot_dimension_numbers<[1], [1], [0], [0], [0, 0, 1, 0], [], []>} : vector<8x8xbf16>, vector<8x8xbf16>, vector<8x8xf32> -> vector<8x8xf32>
    %203 = vector.extract_strided_slice %177 {offsets = [8, 8], sizes = [8, 8], strides = [1, 1]} : vector<16x96xf32> to vector<8x8xf32>
    %204 = arith.truncf %203 : vector<8x8xf32> to vector<8x8xbf16>
    %205 = vector.extract_strided_slice %177 {offsets = [8, 40], sizes = [8, 8], strides = [1, 1]} : vector<16x96xf32> to vector<8x8xf32>
    %206 = arith.truncf %205 : vector<8x8xf32> to vector<8x8xbf16>
    %cst_56 = arith.constant dense<0.000000e+00> : vector<8x8xf32>
    %207 = tpu.matmul %204, %206, %cst_56 {dimension_numbers = #tpu.dot_dimension_numbers<[1], [1], [0], [0], [0, 0, 1, 0], [], []>} : vector<8x8xbf16>, vector<8x8xbf16>, vector<8x8xf32> -> vector<8x8xf32>
    %208 = vector.extract_strided_slice %177 {offsets = [8, 16], sizes = [8, 8], strides = [1, 1]} : vector<16x96xf32> to vector<8x8xf32>
    %209 = arith.truncf %208 : vector<8x8xf32> to vector<8x8xbf16>
    %210 = vector.extract_strided_slice %177 {offsets = [8, 48], sizes = [8, 8], strides = [1, 1]} : vector<16x96xf32> to vector<8x8xf32>
    %211 = arith.truncf %210 : vector<8x8xf32> to vector<8x8xbf16>
    %cst_57 = arith.constant dense<0.000000e+00> : vector<8x8xf32>
    %212 = tpu.matmul %209, %211, %cst_57 {dimension_numbers = #tpu.dot_dimension_numbers<[1], [1], [0], [0], [0, 0, 1, 0], [], []>} : vector<8x8xbf16>, vector<8x8xbf16>, vector<8x8xf32> -> vector<8x8xf32>
    %213 = vector.extract_strided_slice %177 {offsets = [8, 24], sizes = [8, 8], strides = [1, 1]} : vector<16x96xf32> to vector<8x8xf32>
    %214 = arith.truncf %213 : vector<8x8xf32> to vector<8x8xbf16>
    %215 = vector.extract_strided_slice %177 {offsets = [8, 56], sizes = [8, 8], strides = [1, 1]} : vector<16x96xf32> to vector<8x8xf32>
    %216 = arith.truncf %215 : vector<8x8xf32> to vector<8x8xbf16>
    %cst_58 = arith.constant dense<0.000000e+00> : vector<8x8xf32>
    %217 = tpu.matmul %214, %216, %cst_58 {dimension_numbers = #tpu.dot_dimension_numbers<[1], [1], [0], [0], [0, 0, 1, 0], [], []>} : vector<8x8xbf16>, vector<8x8xbf16>, vector<8x8xf32> -> vector<8x8xf32>
    %218 = tpu.concatenate %182, %187, %192, %197, %202, %207, %212, %217 in 0 : vector<8x8xf32>, vector<8x8xf32>, vector<8x8xf32>, vector<8x8xf32>, vector<8x8xf32>, vector<8x8xf32>, vector<8x8xf32>, vector<8x8xf32> -> vector<64x8xf32>
    %219 = arith.addf %218, %20 : vector<64x8xf32>
    %cst_59 = arith.constant dense<0xFF800000> : vector<64xf32>
    %220 = vector.multi_reduction <maximumf>, %219, %cst_59 [1] : vector<64x8xf32> to vector<64xf32>
    %221 = vector.shape_cast %220 : vector<64xf32> to vector<64x1xf32>
    %222 = vector.broadcast %221 : vector<64x1xf32> to vector<64x8xf32>
    %223 = arith.subf %219, %222 : vector<64x8xf32>
    %224 = math.exp %223 : vector<64x8xf32>
    %cst_60 = arith.constant dense<0.000000e+00> : vector<64xf32>
    %225 = vector.multi_reduction <add>, %224, %cst_60 [1] : vector<64x8xf32> to vector<64xf32>
    %226 = vector.shape_cast %225 : vector<64xf32> to vector<64x1xf32>
    %227 = vector.broadcast %226 : vector<64x1xf32> to vector<64x8xf32>
    %228 = arith.divf %224, %227 : vector<64x8xf32>
    %229 = arith.truncf %228 : vector<64x8xf32> to vector<64x8xbf16>
    %230 = vector.extract_strided_slice %229 {offsets = [0, 0], sizes = [8, 8], strides = [1, 1]} : vector<64x8xbf16> to vector<8x8xbf16>
    %231 = vector.extract_strided_slice %177 {offsets = [0, 64], sizes = [8, 8], strides = [1, 1]} : vector<16x96xf32> to vector<8x8xf32>
    %232 = arith.truncf %231 : vector<8x8xf32> to vector<8x8xbf16>
    %cst_61 = arith.constant dense<0.000000e+00> : vector<8x8xf32>
    %233 = tpu.matmul %230, %232, %cst_61 {dimension_numbers = #tpu.dot_dimension_numbers<[1], [0], [0], [1], [0, 0, 1, 1], [], []>} : vector<8x8xbf16>, vector<8x8xbf16>, vector<8x8xf32> -> vector<8x8xf32>
    %234 = vector.extract_strided_slice %229 {offsets = [8, 0], sizes = [8, 8], strides = [1, 1]} : vector<64x8xbf16> to vector<8x8xbf16>
    %235 = vector.extract_strided_slice %177 {offsets = [0, 72], sizes = [8, 8], strides = [1, 1]} : vector<16x96xf32> to vector<8x8xf32>
    %236 = arith.truncf %235 : vector<8x8xf32> to vector<8x8xbf16>
    %cst_62 = arith.constant dense<0.000000e+00> : vector<8x8xf32>
    %237 = tpu.matmul %234, %236, %cst_62 {dimension_numbers = #tpu.dot_dimension_numbers<[1], [0], [0], [1], [0, 0, 1, 1], [], []>} : vector<8x8xbf16>, vector<8x8xbf16>, vector<8x8xf32> -> vector<8x8xf32>
    %238 = vector.extract_strided_slice %229 {offsets = [16, 0], sizes = [8, 8], strides = [1, 1]} : vector<64x8xbf16> to vector<8x8xbf16>
    %239 = vector.extract_strided_slice %177 {offsets = [0, 80], sizes = [8, 8], strides = [1, 1]} : vector<16x96xf32> to vector<8x8xf32>
    %240 = arith.truncf %239 : vector<8x8xf32> to vector<8x8xbf16>
    %cst_63 = arith.constant dense<0.000000e+00> : vector<8x8xf32>
    %241 = tpu.matmul %238, %240, %cst_63 {dimension_numbers = #tpu.dot_dimension_numbers<[1], [0], [0], [1], [0, 0, 1, 1], [], []>} : vector<8x8xbf16>, vector<8x8xbf16>, vector<8x8xf32> -> vector<8x8xf32>
    %242 = vector.extract_strided_slice %229 {offsets = [24, 0], sizes = [8, 8], strides = [1, 1]} : vector<64x8xbf16> to vector<8x8xbf16>
    %243 = vector.extract_strided_slice %177 {offsets = [0, 88], sizes = [8, 8], strides = [1, 1]} : vector<16x96xf32> to vector<8x8xf32>
    %244 = arith.truncf %243 : vector<8x8xf32> to vector<8x8xbf16>
    %cst_64 = arith.constant dense<0.000000e+00> : vector<8x8xf32>
    %245 = tpu.matmul %242, %244, %cst_64 {dimension_numbers = #tpu.dot_dimension_numbers<[1], [0], [0], [1], [0, 0, 1, 1], [], []>} : vector<8x8xbf16>, vector<8x8xbf16>, vector<8x8xf32> -> vector<8x8xf32>
    %246 = tpu.concatenate %233, %237, %241, %245 in 1 : vector<8x8xf32>, vector<8x8xf32>, vector<8x8xf32>, vector<8x8xf32> -> vector<8x32xf32>
    %247 = vector.extract_strided_slice %229 {offsets = [32, 0], sizes = [8, 8], strides = [1, 1]} : vector<64x8xbf16> to vector<8x8xbf16>
    %248 = vector.extract_strided_slice %177 {offsets = [8, 64], sizes = [8, 8], strides = [1, 1]} : vector<16x96xf32> to vector<8x8xf32>
    %249 = arith.truncf %248 : vector<8x8xf32> to vector<8x8xbf16>
    %cst_65 = arith.constant dense<0.000000e+00> : vector<8x8xf32>
    %250 = tpu.matmul %247, %249, %cst_65 {dimension_numbers = #tpu.dot_dimension_numbers<[1], [0], [0], [1], [0, 0, 1, 1], [], []>} : vector<8x8xbf16>, vector<8x8xbf16>, vector<8x8xf32> -> vector<8x8xf32>
    %251 = vector.extract_strided_slice %229 {offsets = [40, 0], sizes = [8, 8], strides = [1, 1]} : vector<64x8xbf16> to vector<8x8xbf16>
    %252 = vector.extract_strided_slice %177 {offsets = [8, 72], sizes = [8, 8], strides = [1, 1]} : vector<16x96xf32> to vector<8x8xf32>
    %253 = arith.truncf %252 : vector<8x8xf32> to vector<8x8xbf16>
    %cst_66 = arith.constant dense<0.000000e+00> : vector<8x8xf32>
    %254 = tpu.matmul %251, %253, %cst_66 {dimension_numbers = #tpu.dot_dimension_numbers<[1], [0], [0], [1], [0, 0, 1, 1], [], []>} : vector<8x8xbf16>, vector<8x8xbf16>, vector<8x8xf32> -> vector<8x8xf32>
    %255 = vector.extract_strided_slice %229 {offsets = [48, 0], sizes = [8, 8], strides = [1, 1]} : vector<64x8xbf16> to vector<8x8xbf16>
    %256 = vector.extract_strided_slice %177 {offsets = [8, 80], sizes = [8, 8], strides = [1, 1]} : vector<16x96xf32> to vector<8x8xf32>
    %257 = arith.truncf %256 : vector<8x8xf32> to vector<8x8xbf16>
    %cst_67 = arith.constant dense<0.000000e+00> : vector<8x8xf32>
    %258 = tpu.matmul %255, %257, %cst_67 {dimension_numbers = #tpu.dot_dimension_numbers<[1], [0], [0], [1], [0, 0, 1, 1], [], []>} : vector<8x8xbf16>, vector<8x8xbf16>, vector<8x8xf32> -> vector<8x8xf32>
    %259 = vector.extract_strided_slice %229 {offsets = [56, 0], sizes = [8, 8], strides = [1, 1]} : vector<64x8xbf16> to vector<8x8xbf16>
    %260 = vector.extract_strided_slice %177 {offsets = [8, 88], sizes = [8, 8], strides = [1, 1]} : vector<16x96xf32> to vector<8x8xf32>
    %261 = arith.truncf %260 : vector<8x8xf32> to vector<8x8xbf16>
    %cst_68 = arith.constant dense<0.000000e+00> : vector<8x8xf32>
    %262 = tpu.matmul %259, %261, %cst_68 {dimension_numbers = #tpu.dot_dimension_numbers<[1], [0], [0], [1], [0, 0, 1, 1], [], []>} : vector<8x8xbf16>, vector<8x8xbf16>, vector<8x8xf32> -> vector<8x8xf32>
    %263 = tpu.concatenate %250, %254, %258, %262 in 1 : vector<8x8xf32>, vector<8x8xf32>, vector<8x8xf32>, vector<8x8xf32> -> vector<8x32xf32>
    %264 = tpu.concatenate %246, %263 in 0 : vector<8x32xf32>, vector<8x32xf32> -> vector<16x32xf32>
    %265 = arith.truncf %264 : vector<16x32xf32> to vector<16x32xbf16>
    %cst_69 = arith.constant dense<0.000000e+00> : vector<16x32xf32>
    %266 = tpu.matmul %265, %157, %cst_69 {dimension_numbers = #tpu.dot_dimension_numbers<[1], [0], [0], [1], [0, 0, 1, 1], [], []>} : vector<16x32xbf16>, vector<32x32xbf16>, vector<16x32xf32> -> vector<16x32xf32>
    %267 = arith.addf %153, %266 : vector<16x32xf32>
    %268 = arith.mulf %267, %267 : vector<16x32xf32>
    %cst_70 = arith.constant dense<0.000000e+00> : vector<16xf32>
    %269 = vector.multi_reduction <add>, %268, %cst_70 [1] : vector<16x32xf32> to vector<16xf32>
    %270 = vector.shape_cast %269 : vector<16xf32> to vector<16x1xf32>
    %cst_71 = arith.constant 3.200000e+01 : f32
    %271 = vector.broadcast %cst_71 : f32 to vector<16x1xf32>
    %272 = arith.divf %270, %271 : vector<16x1xf32>
    %cst_72 = arith.constant 9.99999997E-7 : f32
    %273 = vector.broadcast %cst_72 : f32 to vector<16x1xf32>
    %274 = arith.addf %272, %273 : vector<16x1xf32>
    %275 = math.rsqrt %274 : vector<16x1xf32>
    %276 = vector.broadcast %275 : vector<16x1xf32> to vector<16x32xf32>
    %277 = arith.mulf %267, %276 : vector<16x32xf32>
    %278 = vector.broadcast %163 : vector<1x32xf32> to vector<16x32xf32>
    %279 = arith.mulf %277, %278 : vector<16x32xf32>
    %280 = arith.truncf %279 : vector<16x32xf32> to vector<16x32xbf16>
    %cst_73 = arith.constant dense<0.000000e+00> : vector<16x64xf32>
    %281 = tpu.matmul %280, %158, %cst_73 {dimension_numbers = #tpu.dot_dimension_numbers<[1], [0], [0], [1], [0, 0, 1, 1], [], []>} : vector<16x32xbf16>, vector<32x64xbf16>, vector<16x64xf32> -> vector<16x64xf32>
    %cst_74 = arith.constant 0.000000e+00 : f32
    %282 = vector.broadcast %cst_74 : f32 to vector<16x64xf32>
    %283 = arith.maximumf %281, %282 : vector<16x64xf32>
    %284 = arith.truncf %283 : vector<16x64xf32> to vector<16x64xbf16>
    %cst_75 = arith.constant dense<0.000000e+00> : vector<16x32xf32>
    %285 = tpu.matmul %284, %159, %cst_75 {dimension_numbers = #tpu.dot_dimension_numbers<[1], [1], [0], [0], [0, 0, 1, 0], [], []>} : vector<16x64xbf16>, vector<32x64xbf16>, vector<16x32xf32> -> vector<16x32xf32>
    %286 = arith.addf %267, %285 : vector<16x32xf32>
    %c4 = arith.constant 4 : index
    %c0_76 = arith.constant 0 : index
    %287 = vector.load %arg4[%c4, %c0_76] : memref<5x32xbf16, #tpu.memory_space<vmem>>, vector<1x32xbf16>
    %288 = arith.extf %287 : vector<1x32xbf16> to vector<1x32xf32>
    %289 = arith.mulf %286, %286 : vector<16x32xf32>
    %cst_77 = arith.constant dense<0.000000e+00> : vector<16xf32>
    %290 = vector.multi_reduction <add>, %289, %cst_77 [1] : vector<16x32xf32> to vector<16xf32>
    %291 = vector.shape_cast %290 : vector<16xf32> to vector<16x1xf32>
    %cst_78 = arith.constant 3.200000e+01 : f32
    %292 = vector.broadcast %cst_78 : f32 to vector<16x1xf32>
    %293 = arith.divf %291, %292 : vector<16x1xf32>
    %cst_79 = arith.constant 9.99999997E-7 : f32
    %294 = vector.broadcast %cst_79 : f32 to vector<16x1xf32>
    %295 = arith.addf %293, %294 : vector<16x1xf32>
    %296 = math.rsqrt %295 : vector<16x1xf32>
    %297 = vector.broadcast %296 : vector<16x1xf32> to vector<16x32xf32>
    %298 = arith.mulf %286, %297 : vector<16x32xf32>
    %299 = vector.broadcast %288 : vector<1x32xf32> to vector<16x32xf32>
    %300 = arith.mulf %298, %299 : vector<16x32xf32>
    %c0_80 = arith.constant 0 : index
    %c0_81 = arith.constant 0 : index
    %301 = vector.load %arg5[%c0_80, %c0_81] : memref<16x32xf32, #tpu.memory_space<vmem>>, vector<16x32xf32>
    tpu.vector_store %arg5[%c0_80, %c0_81], %300 {strides = array<i32>} : memref<16x32xf32, #tpu.memory_space<vmem>>, vector<16x32xf32>,
    return
  }
}

</mosaic_0001>

<llo_original>
// kernel: word_encoder_forward.1
$region0: #{word_encoder_forward.1}
  #allocation0 [shape = 'u32[]', space=smem, size = 0x4, offset = 0x4, fixed_abs, tag = 'smem constant byte address 0x4 - core index']
  #allocation1 [shape = 'u32[144,128]{1,0:T(1,128)}', space=vmem, size = 0x12000, scoped, tag = 'internal scratch']
  %s0 = inlined_call_operand.vmem [shape: s32[16,1], index: 0, kind: input, shape index: {}]
  %s1 = inlined_call_operand.vmem [shape: f32[2,8], index: 1, kind: input, shape index: {}]
  %s2 = inlined_call_operand.vmem [shape: bf16[128,32], index: 2, kind: input, shape index: {}]
  %s3 = inlined_call_operand.vmem [shape: bf16[2,32,256], index: 3, kind: input, shape index: {}]
  %s4 = inlined_call_operand.vmem [shape: bf16[5,32], index: 4, kind: input, shape index: {}]
  %s5 = inlined_call_operand.hbm [shape: f32[16,32], index: 5, kind: output, shape index: {}]
  %s6 = sld [smem:[#allocation0]]
  $region30: #{word_encoder_forward.1} parent=0
    _
  %s8 = ssub.s32 1, %s6
  %s9 = scalar_select 0, %s8, %s6
  $region1: #{word_encoder_forward.1} parent=0
    #allocation2 [shape = 'u8[8192]{0}', space=vmem, size = 0x2000, scoped, tag = 'output window, operand 0, single buffered']
    #allocation3 [shape = 's32[1]{0}', space=sflag, size = 0x4, scoped, tag = 'scoped memory for word_encoder_forward.1']
    %10 = vsyncpa [#allocation3], 0
    // Predicated region
    $region2: #{word_encoder_forward.1} parent=1 // pred_check
      _
    $region3: #{word_encoder_forward.1} parent=1 // pred_check_branch
      %12 = sbr.rel (0) target = $region5
    $region4: #{word_encoder_forward.1} parent=1 // pred_region
      _
    $region5: #{word_encoder_forward.1} parent=1 // pred_fallthru
      _
    // Predicated region
    $region6: #{word_encoder_forward.1} parent=1 // pred_check
      _
    $region7: #{word_encoder_forward.1} parent=1 // pred_check_branch
      %14 = sbr.rel (0) target = $region9
    $region8: #{word_encoder_forward.1} parent=1 // pred_region
      _
    $region9: #{word_encoder_forward.1} parent=1 // pred_fallthru
      _
    // Predicated region
    $region10: #{word_encoder_forward.1} parent=1 // pred_check
      _
    $region11: #{word_encoder_forward.1} parent=1 // pred_check_branch
      %16 = sbr.rel (0) target = $region13
    $region12: #{word_encoder_forward.1} parent=1 // pred_region
      _
    $region13: #{word_encoder_forward.1} parent=1 // pred_fallthru
      _
    // Predicated region
    $region14: #{word_encoder_forward.1} parent=1 // pred_check
      _
    $region15: #{word_encoder_forward.1} parent=1 // pred_check_branch
      %18 = sbr.rel (0) target = $region17
    $region16: #{word_encoder_forward.1} parent=1 // pred_region
      _
    $region17: #{word_encoder_forward.1} parent=1 // pred_fallthru
      _
    // Predicated region
    $region18: #{word_encoder_forward.1} parent=1 // pred_check
      _
    $region19: #{word_encoder_forward.1} parent=1 // pred_check_branch
      %20 = sbr.rel (0) target = $region21
    $region20: #{word_encoder_forward.1} parent=1 // pred_region
      _
    $region21: #{word_encoder_forward.1} parent=1 // pred_fallthru
      _
    %v22 = vld [vmem:[%s0] sm:$0xff]
    %v23 = vld [vmem:[%s0 + $0x8] sm:$0xff]
    %v24 = vlaneseq
    %v25 = vand.u32 %v24, 127
    %26 = vset.pattern.permute.xlu0 0
    %27 = vperm.xlu0 %26, %v22
    %v28 = vpop.permute.xlu0 %27
    %29 = vset.pattern.permute.xlu0 0
    %30 = vperm.xlu0 %29, %v23
    %v31 = vpop.permute.xlu0 %30
    %vm32 = vcmp.eq.s32.totalorder %v25, %v28
    %vm33 = vcmp.eq.s32.totalorder %v25, %v31
    %v34 = vsel %vm32, 1, 0
    %v35 = vsel %vm33, 1, 0
    %v36 = vcvt.s32.f32 %v34
    %v37 = vcvt.s32.f32 %v35
    %v38 = vpack.c.bf16 %v37, %v36
    %v39 = vld [vmem:[%s2] sm:$0xf]
    %v40 = vld [vmem:[%s2 + $0x4] sm:$0xf]
    %v41 = vld [vmem:[%s2 + $0x8] sm:$0xf]
    %v42 = vld [vmem:[%s2 + $0xc] sm:$0xf]
    %v43 = vld [vmem:[%s2 + $0x10] sm:$0xf]
    %v44 = vld [vmem:[%s2 + $0x14] sm:$0xf]
    %v45 = vld [vmem:[%s2 + $0x18] sm:$0xf]
    %v46 = vld [vmem:[%s2 + $0x1c] sm:$0xf]
    %v47 = vld [vmem:[%s2 + $0x20] sm:$0xf]
    %v48 = vld [vmem:[%s2 + $0x24] sm:$0xf]
    %v49 = vld [vmem:[%s2 + $0x28] sm:$0xf]
    %v50 = vld [vmem:[%s2 + $0x2c] sm:$0xf]
    %v51 = vld [vmem:[%s2 + $0x30] sm:$0xf]
    %v52 = vld [vmem:[%s2 + $0x34] sm:$0xf]
    %v53 = vld [vmem:[%s2 + $0x38] sm:$0xf]
    %v54 = vld [vmem:[%s2 + $0x3c] sm:$0xf]
    %v71 = vunpack.c.l.b16 %v39
    %v72 = vunpack.c.l.b16 %v40
    %v73 = vunpack.c.l.b16 %v41
    %v74 = vunpack.c.l.b16 %v42
    %v75 = vunpack.c.l.b16 %v43
    %v76 = vunpack.c.l.b16 %v44
    %v77 = vunpack.c.l.b16 %v45
    %v78 = vunpack.c.l.b16 %v46
    %v79 = vunpack.c.l.b16 %v47
    %v80 = vunpack.c.l.b16 %v48
    %v81 = vunpack.c.l.b16 %v49
    %v82 = vunpack.c.l.b16 %v50
    %v83 = vunpack.c.l.b16 %v51
    %v84 = vunpack.c.l.b16 %v52
    %v85 = vunpack.c.l.b16 %v53
    %v86 = vunpack.c.l.b16 %v54
    %v87 = vpack.c.b16 %v72, %v71
    %v88 = vpack.c.b16 %v74, %v73
    %v89 = vpack.c.b16 %v76, %v75
    %v90 = vpack.c.b16 %v78, %v77
    %v91 = vpack.c.b16 %v80, %v79
    %v92 = vpack.c.b16 %v82, %v81
    %v93 = vpack.c.b16 %v84, %v83
    %v94 = vpack.c.b16 %v86, %v85
    %103 = vmatprep.subr.bf16.mxu0 0
    %104 = vmatpush1.bf16.msra.mxu0 %v87
    %105 = vmatprep.subr.bf16.mxu0 0
    %106 = vmatpush1.bf16.msra.mxu0 %v88
    %107 = vmatprep.subr.bf16.mxu0 0
    %108 = vmatpush1.bf16.msra.mxu0 %v89
    %109 = vmatprep.subr.bf16.mxu0 0
    %110 = vmatpush1.bf16.msra.mxu0 %v90
    %111 = vmatprep.subr.bf16.mxu0 0
    %112 = vmatpush1.bf16.msra.mxu0 %v91
    %113 = vmatprep.subr.bf16.mxu0 0
    %114 = vmatpush1.bf16.msra.mxu0 %v92
    %115 = vmatprep.subr.bf16.mxu0 0
    %116 = vmatpush1.bf16.msra.mxu0 %v93
    %117 = vmatprep.subr.bf16.mxu0 0
    %118 = vmatpush1.bf16.msra.mxu0 %v94
    %119 = vmatprep.subr.bf16.mxu0 0
    %120 = vmatpush1.bf16.msra.mxu0 0
    %121 = vmatprep.subr.bf16.mxu0 0
    %122 = vmatpush1.bf16.msra.mxu0 0
    %123 = vmatprep.subr.bf16.mxu0 0
    %124 = vmatpush1.bf16.msra.mxu0 0
    %125 = vmatprep.subr.bf16.mxu0 0
    %126 = vmatpush1.bf16.msra.mxu0 0
    %127 = vmatprep.subr.bf16.mxu0 0
    %128 = vmatpush1.bf16.msra.mxu0 0
    %129 = vmatprep.subr.bf16.mxu0 0
    %130 = vmatpush1.bf16.msra.mxu0 0
    %131 = vmatprep.subr.bf16.mxu0 0
    %132 = vmatpush1.bf16.msra.mxu0 0
    %133 = vmatprep.subr.bf16.mxu0 0
    %134 = vmatpush1.bf16.msra.mxu0 0
    %135 = vmatprep.mubr.bf16.mxu0 0
    %136 = vmatmul.mubr.bf16.gmra.mrb[0].mxu0 %v38
    %v137 = vpop.f32.mrb[0].mxu0
    %v138 = vadd.f32 0.0, %v137
    %v139 = vpop.f32.mrb[0].mxu0
    %v140 = vpop.f32.mrb[0].mxu0
    %v141 = vadd.f32 0.0, %v140
    %v142 = vpop.f32.mrb[0].mxu0
    %143 = vdwg.mxu0
    %v144 = vld [vmem:[%s1] sm:$0x3]
    %v145 = vsub.f32 1.0, %v144
    %v146 = vmul.f32 %v145, -1e+09
    %v147 = vlaneseq
    %v148 = vshrl.u32 %v147, 7
    %v149 = vsub.s32 0, %v148
    %v150 = vrot.slane %v146, %v149
    %v151 = vlaneseq
    %v152 = vshrl.u32 %v151, 7
    %v153 = vsub.s32 1, %v152
    %v154 = vrot.slane %v146, %v153
    %v155 = vld [vmem:[%s3] sm:$0xff]
    %v156 = vld [vmem:[%s3 + $0x8] sm:$0xff]
    %v157 = vld [vmem:[%s3 + $0x10] sm:$0xff]
    %v158 = vld [vmem:[%s3 + $0x18] sm:$0xff]
    %v159 = vld [vmem:[%s4] sm:$0x1]
    %v160 = vunpack.c.l.bf16 %v159
    %v161 = vmul.f32 %v138, %v138
    %v162 = vmul.f32 %v141, %v141
    %vm163 = vcmask 261120
    %v164 = vsel %vm163, %v161, 0.0
    %165 = vadd.xlane.f32.xlu0 %v164
    %v166 = vpop.xlane.xlu0 %165
    %v167 = vsel %vm163, %v162, 0.0
    %168 = vadd.xlane.f32.xlu0 %v167
    %v169 = vpop.xlane.xlu0 %168
    %v170 = vrcp.pop 32.0
    %v171 = vmul.f32 %v166, %v170
    %v172 = vmul.f32 %v169, %v170
    %v173 = vadd.f32 %v171, 1e-06
    %v174 = vadd.f32 %v172, 1e-06
    %v175 = vrsqrt.pop %v173
    %v176 = vrsqrt.pop %v174
    %v177 = vmul.f32 %v138, %v175
    %v178 = vmul.f32 %v141, %v176
    %v179 = vlaneseq
    %v180 = vshrl.u32 %v179, 7
    %v181 = vsub.s32 0, %v180
    %v182 = vrot.slane %v160, %v181
    %v183 = vmul.f32 %v177, %v182
    %v184 = vmul.f32 %v178, %v182
    %v185 = vpack.c.bf16 %v184, %v183
    %v190 = vunpack.c.l.b16 %v155
    %v191 = vunpack.c.l.b16 %v156
    %v192 = vunpack.c.l.b16 %v157
    %v193 = vunpack.c.l.b16 %v158
    %v194 = vpack.c.b16 %v191, %v190
    %v195 = vpack.c.b16 %v193, %v192
    %v199 = vsel %vm163, %v185, 0
    %201 = vmatprep.subr.bf16.mxu0 0
    %202 = vmatpush1.bf16.msra.mxu0 %v194
    %203 = vmatprep.subr.bf16.mxu0 0
    %204 = vmatpush1.bf16.msra.mxu0 %v195
    %205 = vmatprep.subr.bf16.mxu0 0
    %206 = vmatpush1.bf16.msra.mxu0 0
    %207 = vmatprep.subr.bf16.mxu0 0
    %208 = vmatpush1.bf16.msra.mxu0 0
    %209 = vmatprep.subr.bf16.mxu0 0
    %210 = vmatpush1.bf16.msra.mxu0 0
    %211 = vmatprep.subr.bf16.mxu0 0
    %212 = vmatpush1.bf16.msra.mxu0 0
    %213 = vmatprep.subr.bf16.mxu0 0
    %214 = vmatpush1.bf16.msra.mxu0 0
    %215 = vmatprep.subr.bf16.mxu0 0
    %216 = vmatpush1.bf16.msra.mxu0 0
    %217 = vmatprep.subr.bf16.mxu0 0
    %218 = vmatpush1.bf16.msra.mxu0 0
    %219 = vmatprep.subr.bf16.mxu0 0
    %220 = vmatpush1.bf16.msra.mxu0 0
    %221 = vmatprep.subr.bf16.mxu0 0
    %222 = vmatpush1.bf16.msra.mxu0 0
    %223 = vmatprep.subr.bf16.mxu0 0
    %224 = vmatpush1.bf16.msra.mxu0 0
    %225 = vmatprep.subr.bf16.mxu0 0
    %226 = vmatpush1.bf16.msra.mxu0 0
    %227 = vmatprep.subr.bf16.mxu0 0
    %228 = vmatpush1.bf16.msra.mxu0 0
    %229 = vmatprep.subr.bf16.mxu0 0
    %230 = vmatpush1.bf16.msra.mxu0 0
    %231 = vmatprep.subr.bf16.mxu0 0
    %232 = vmatpush1.bf16.msra.mxu0 0
    %233 = vmatprep.mubr.bf16.mxu0 0
    %234 = vmatmul.mubr.bf16.gmra.mrb[0].mxu0 %v199
    %v235 = vpop.f32.mrb[0].mxu0
    %v236 = vadd.f32 0.0, %v235
    %v237 = vpop.f32.mrb[0].mxu0
    %v238 = vpop.f32.mrb[0].mxu0
    %v239 = vadd.f32 0.0, %v238
    %v240 = vpop.f32.mrb[0].mxu0
    %241 = vdwg.mxu0
    %v242 = vpack.c.bf16 %v236, %v236
    %244 = vrot.lane.b32.xlu0 %v242, 96
    %v245 = vpop.permute.xlu0 %244
    %vm246 = vcmask 64512
    %v248 = vsel %vm246, %v242, 0
    %v251 = vsel %vm246, %v245, 0
    %253 = vmatprep.subr.bf16.mxu0 0
    %254 = vmatpush1.bf16.xpose.msra.mxu0 %v251
    %255 = vmatprep.subr.bf16.mxu0 0
    %256 = vmatpush1.bf16.xpose.msra.mxu0 0
    %257 = vmatprep.subr.bf16.mxu0 0
    %258 = vmatpush1.bf16.xpose.msra.mxu0 0
    %259 = vmatprep.subr.bf16.mxu0 0
    %260 = vmatpush1.bf16.xpose.msra.mxu0 0
    %261 = vmatprep.subr.bf16.mxu0 0
    %262 = vmatpush1.bf16.xpose.msra.mxu0 0
    %263 = vmatprep.subr.bf16.mxu0 0
    %264 = vmatpush1.bf16.xpose.msra.mxu0 0
    %265 = vmatprep.subr.bf16.mxu0 0
    %266 = vmatpush1.bf16.xpose.msra.mxu0 0
    %267 = vmatprep.subr.bf16.mxu0 0
    %268 = vmatpush1.bf16.xpose.msra.mxu0 0
    %269 = vmatprep.subr.bf16.mxu0 0
    %270 = vmatpush1.bf16.xpose.msra.mxu0 0
    %271 = vmatprep.subr.bf16.mxu0 0
    %272 = vmatpush1.bf16.xpose.msra.mxu0 0
    %273 = vmatprep.subr.bf16.mxu0 0
    %274 = vmatpush1.bf16.xpose.msra.mxu0 0
    %275 = vmatprep.subr.bf16.mxu0 0
    %276 = vmatpush1.bf16.xpose.msra.mxu0 0
    %277 = vmatprep.subr.bf16.mxu0 0
    %278 = vmatpush1.bf16.xpose.msra.mxu0 0
    %279 = vmatprep.subr.bf16.mxu0 0
    %280 = vmatpush1.bf16.xpose.msra.mxu0 0
    %281 = vmatprep.subr.bf16.mxu0 0
    %282 = vmatpush1.bf16.xpose.msra.mxu0 0
    %283 = vmatprep.subr.bf16.mxu0 0
    %284 = vmatpush1.bf16.xpose.msra.mxu0 0
    %285 = vmatprep.mubr.bf16.mxu0 0
    %286 = vmatmul.mubr.bf16.gmra.mrb[0].mxu0 %v248
    %v287 = vpop.f32.mrb[0].mxu0
    %v288 = vadd.f32 0.0, %v287
    %v289 = vpop.f32.mrb[0].mxu0
    %v290 = vpop.f32.mrb[0].mxu0
    %v291 = vpop.f32.mrb[0].mxu0
    %292 = vdwg.mxu0
    %293 = vrot.lane.b32.xlu0 %v242, 120
    %v294 = vpop.permute.xlu0 %293
    %295 = vrot.lane.b32.xlu0 %v242, 88
    %v296 = vpop.permute.xlu0 %295
    %v298 = vsel %vm246, %v294, 0
    %v301 = vsel %vm246, %v296, 0
    %303 = vmatprep.subr.bf16.mxu0 0
    %304 = vmatpush1.bf16.xpose.msra.mxu0 %v301
    %305 = vmatprep.subr.bf16.mxu0 0
    %306 = vmatpush1.bf16.xpose.msra.mxu0 0
    %307 = vmatprep.subr.bf16.mxu0 0
    %308 = vmatpush1.bf16.xpose.msra.mxu0 0
    %309 = vmatprep.subr.bf16.mxu0 0
    %310 = vmatpush1.bf16.xpose.msra.mxu0 0
    %311 = vmatprep.subr.bf16.mxu0 0
    %312 = vmatpush1.bf16.xpose.msra.mxu0 0
    %313 = vmatprep.subr.bf16.mxu0 0
    %314 = vmatpush1.bf16.xpose.msra.mxu0 0
    %315 = vmatprep.subr.bf16.mxu0 0
    %316 = vmatpush1.bf16.xpose.msra.mxu0 0
    %317 = vmatprep.subr.bf16.mxu0 0
    %318 = vmatpush1.bf16.xpose.msra.mxu0 0
    %319 = vmatprep.subr.bf16.mxu0 0
    %320 = vmatpush1.bf16.xpose.msra.mxu0 0
    %321 = vmatprep.subr.bf16.mxu0 0
    %322 = vmatpush1.bf16.xpose.msra.mxu0 0
    %323 = vmatprep.subr.bf16.mxu0 0
    %324 = vmatpush1.bf16.xpose.msra.mxu0 0
    %325 = vmatprep.subr.bf16.mxu0 0
    %326 = vmatpush1.bf16.xpose.msra.mxu0 0
    %327 = vmatprep.subr.bf16.mxu0 0
    %328 = vmatpush1.bf16.xpose.msra.mxu0 0
    %329 = vmatprep.subr.bf16.mxu0 0
    %330 = vmatpush1.bf16.xpose.msra.mxu0 0
    %331 = vmatprep.subr.bf16.mxu0 0
    %332 = vmatpush1.bf16.xpose.msra.mxu0 0
    %333 = vmatprep.subr.bf16.mxu0 0
    %334 = vmatpush1.bf16.xpose.msra.mxu0 0
    %335 = vmatprep.mubr.bf16.mxu0 0
    %336 = vmatmul.mubr.bf16.gmra.mrb[0].mxu0 %v298
    %v337 = vpop.f32.mrb[0].mxu0
    %v338 = vadd.f32 0.0, %v337
    %v339 = vpop.f32.mrb[0].mxu0
    %v340 = vpop.f32.mrb[0].mxu0
    %v341 = vpop.f32.mrb[0].mxu0
    %342 = vdwg.mxu0
    %343 = vrot.lane.b32.xlu0 %v242, 112
    %v344 = vpop.permute.xlu0 %343
    %345 = vrot.lane.b32.xlu0 %v242, 80
    %v346 = vpop.permute.xlu0 %345
    %v348 = vsel %vm246, %v344, 0
    %v351 = vsel %vm246, %v346, 0
    %353 = vmatprep.subr.bf16.mxu0 0
    %354 = vmatpush1.bf16.xpose.msra.mxu0 %v351
    %355 = vmatprep.subr.bf16.mxu0 0
    %356 = vmatpush1.bf16.xpose.msra.mxu0 0
    %357 = vmatprep.subr.bf16.mxu0 0
    %358 = vmatpush1.bf16.xpose.msra.mxu0 0
    %359 = vmatprep.subr.bf16.mxu0 0
    %360 = vmatpush1.bf16.xpose.msra.mxu0 0
    %361 = vmatprep.subr.bf16.mxu0 0
    %362 = vmatpush1.bf16.xpose.msra.mxu0 0
    %363 = vmatprep.subr.bf16.mxu0 0
    %364 = vmatpush1.bf16.xpose.msra.mxu0 0
    %365 = vmatprep.subr.bf16.mxu0 0
    %366 = vmatpush1.bf16.xpose.msra.mxu0 0
    %367 = vmatprep.subr.bf16.mxu0 0
    %368 = vmatpush1.bf16.xpose.msra.mxu0 0
    %369 = vmatprep.subr.bf16.mxu0 0
    %370 = vmatpush1.bf16.xpose.msra.mxu0 0
    %371 = vmatprep.subr.bf16.mxu0 0
    %372 = vmatpush1.bf16.xpose.msra.mxu0 0
    %373 = vmatprep.subr.bf16.mxu0 0
    %374 = vmatpush1.bf16.xpose.msra.mxu0 0
    %375 = vmatprep.subr.bf16.mxu0 0
    %376 = vmatpush1.bf16.xpose.msra.mxu0 0
    %377 = vmatprep.subr.bf16.mxu0 0
    %378 = vmatpush1.bf16.xpose.msra.mxu0 0
    %379 = vmatprep.subr.bf16.mxu0 0
    %380 = vmatpush1.bf16.xpose.msra.mxu0 0
    %381 = vmatprep.subr.bf16.mxu0 0
    %382 = vmatpush1.bf16.xpose.msra.mxu0 0
    %383 = vmatprep.subr.bf16.mxu0 0
    %384 = vmatpush1.bf16.xpose.msra.mxu0 0
    %385 = vmatprep.mubr.bf16.mxu0 0
    %386 = vmatmul.mubr.bf16.gmra.mrb[0].mxu0 %v348
    %v387 = vpop.f32.mrb[0].mxu0
    %v388 = vadd.f32 0.0, %v387
    %v389 = vpop.f32.mrb[0].mxu0
    %v390 = vpop.f32.mrb[0].mxu0
    %v391 = vpop.f32.mrb[0].mxu0
    %392 = vdwg.mxu0
    %393 = vrot.lane.b32.xlu0 %v242, 104
    %v394 = vpop.permute.xlu0 %393
    %395 = vrot.lane.b32.xlu0 %v242, 72
    %v396 = vpop.permute.xlu0 %395
    %v398 = vsel %vm246, %v394, 0
    %v401 = vsel %vm246, %v396, 0
    %403 = vmatprep.subr.bf16.mxu0 0
    %404 = vmatpush1.bf16.xpose.msra.mxu0 %v401
    %405 = vmatprep.subr.bf16.mxu0 0
    %406 = vmatpush1.bf16.xpose.msra.mxu0 0
    %407 = vmatprep.subr.bf16.mxu0 0
    %408 = vmatpush1.bf16.xpose.msra.mxu0 0
    %409 = vmatprep.subr.bf16.mxu0 0
    %410 = vmatpush1.bf16.xpose.msra.mxu0 0
    %411 = vmatprep.subr.bf16.mxu0 0
    %412 = vmatpush1.bf16.xpose.msra.mxu0 0
    %413 = vmatprep.subr.bf16.mxu0 0
    %414 = vmatpush1.bf16.xpose.msra.mxu0 0
    %415 = vmatprep.subr.bf16.mxu0 0
    %416 = vmatpush1.bf16.xpose.msra.mxu0 0
    %417 = vmatprep.subr.bf16.mxu0 0
    %418 = vmatpush1.bf16.xpose.msra.mxu0 0
    %419 = vmatprep.subr.bf16.mxu0 0
    %420 = vmatpush1.bf16.xpose.msra.mxu0 0
    %421 = vmatprep.subr.bf16.mxu0 0
    %422 = vmatpush1.bf16.xpose.msra.mxu0 0
    %423 = vmatprep.subr.bf16.mxu0 0
    %424 = vmatpush1.bf16.xpose.msra.mxu0 0
    %425 = vmatprep.subr.bf16.mxu0 0
    %426 = vmatpush1.bf16.xpose.msra.mxu0 0
    %427 = vmatprep.subr.bf16.mxu0 0
    %428 = vmatpush1.bf16.xpose.msra.mxu0 0
    %429 = vmatprep.subr.bf16.mxu0 0
    %430 = vmatpush1.bf16.xpose.msra.mxu0 0
    %431 = vmatprep.subr.bf16.mxu0 0
    %432 = vmatpush1.bf16.xpose.msra.mxu0 0
    %433 = vmatprep.subr.bf16.mxu0 0
    %434 = vmatpush1.bf16.xpose.msra.mxu0 0
    %435 = vmatprep.mubr.bf16.mxu0 0
    %436 = vmatmul.mubr.bf16.gmra.mrb[0].mxu0 %v398
    %v437 = vpop.f32.mrb[0].mxu0
    %v438 = vadd.f32 0.0, %v437
    %v439 = vpop.f32.mrb[0].mxu0
    %v440 = vpop.f32.mrb[0].mxu0
    %v441 = vpop.f32.mrb[0].mxu0
    %442 = vdwg.mxu0
    %v443 = vpack.c.bf16 %v239, %v239
    %445 = vrot.lane.b32.xlu0 %v443, 96
    %v446 = vpop.permute.xlu0 %445
    %v448 = vsel %vm246, %v443, 0
    %v451 = vsel %vm246, %v446, 0
    %453 = vmatprep.subr.bf16.mxu0 0
    %454 = vmatpush1.bf16.xpose.msra.mxu0 %v451
    %455 = vmatprep.subr.bf16.mxu0 0
    %456 = vmatpush1.bf16.xpose.msra.mxu0 0
    %457 = vmatprep.subr.bf16.mxu0 0
    %458 = vmatpush1.bf16.xpose.msra.mxu0 0
    %459 = vmatprep.subr.bf16.mxu0 0
    %460 = vmatpush1.bf16.xpose.msra.mxu0 0
    %461 = vmatprep.subr.bf16.mxu0 0
    %462 = vmatpush1.bf16.xpose.msra.mxu0 0
    %463 = vmatprep.subr.bf16.mxu0 0
    %464 = vmatpush1.bf16.xpose.msra.mxu0 0
    %465 = vmatprep.subr.bf16.mxu0 0
    %466 = vmatpush1.bf16.xpose.msra.mxu0 0
    %467 = vmatprep.subr.bf16.mxu0 0
    %468 = vmatpush1.bf16.xpose.msra.mxu0 0
    %469 = vmatprep.subr.bf16.mxu0 0
    %470 = vmatpush1.bf16.xpose.msra.mxu0 0
    %471 = vmatprep.subr.bf16.mxu0 0
    %472 = vmatpush1.bf16.xpose.msra.mxu0 0
    %473 = vmatprep.subr.bf16.mxu0 0
    %474 = vmatpush1.bf16.xpose.msra.mxu0 0
    %475 = vmatprep.subr.bf16.mxu0 0
    %476 = vmatpush1.bf16.xpose.msra.mxu0 0
    %477 = vmatprep.subr.bf16.mxu0 0
    %478 = vmatpush1.bf16.xpose.msra.mxu0 0
    %479 = vmatprep.subr.bf16.mxu0 0
    %480 = vmatpush1.bf16.xpose.msra.mxu0 0
    %481 = vmatprep.subr.bf16.mxu0 0
    %482 = vmatpush1.bf16.xpose.msra.mxu0 0
    %483 = vmatprep.subr.bf16.mxu0 0
    %484 = vmatpush1.bf16.xpose.msra.mxu0 0
    %485 = vmatprep.mubr.bf16.mxu0 0
    %486 = vmatmul.mubr.bf16.gmra.mrb[0].mxu0 %v448
    %v487 = vpop.f32.mrb[0].mxu0
    %v488 = vadd.f32 0.0, %v487
    %v489 = vpop.f32.mrb[0].mxu0
    %v490 = vpop.f32.mrb[0].mxu0
    %v491 = vpop.f32.mrb[0].mxu0
    %492 = vdwg.mxu0
    %493 = vrot.lane.b32.xlu0 %v443, 120
    %v494 = vpop.permute.xlu0 %493
    %495 = vrot.lane.b32.xlu0 %v443, 88
    %v496 = vpop.permute.xlu0 %495
    %v498 = vsel %vm246, %v494, 0
    %v501 = vsel %vm246, %v496, 0
    %503 = vmatprep.subr.bf16.mxu0 0
    %504 = vmatpush1.bf16.xpose.msra.mxu0 %v501
    %505 = vmatprep.subr.bf16.mxu0 0
    %506 = vmatpush1.bf16.xpose.msra.mxu0 0
    %507 = vmatprep.subr.bf16.mxu0 0
    %508 = vmatpush1.bf16.xpose.msra.mxu0 0
    %509 = vmatprep.subr.bf16.mxu0 0
    %510 = vmatpush1.bf16.xpose.msra.mxu0 0
    %511 = vmatprep.subr.bf16.mxu0 0
    %512 = vmatpush1.bf16.xpose.msra.mxu0 0
    %513 = vmatprep.subr.bf16.mxu0 0
    %514 = vmatpush1.bf16.xpose.msra.mxu0 0
    %515 = vmatprep.subr.bf16.mxu0 0
    %516 = vmatpush1.bf16.xpose.msra.mxu0 0
    %517 = vmatprep.subr.bf16.mxu0 0
    %518 = vmatpush1.bf16.xpose.msra.mxu0 0
    %519 = vmatprep.subr.bf16.mxu0 0
    %520 = vmatpush1.bf16.xpose.msra.mxu0 0
    %521 = vmatprep.subr.bf16.mxu0 0
    %522 = vmatpush1.bf16.xpose.msra.mxu0 0
    %523 = vmatprep.subr.bf16.mxu0 0
    %524 = vmatpush1.bf16.xpose.msra.mxu0 0
    %525 = vmatprep.subr.bf16.mxu0 0
    %526 = vmatpush1.bf16.xpose.msra.mxu0 0
    %527 = vmatprep.subr.bf16.mxu0 0
    %528 = vmatpush1.bf16.xpose.msra.mxu0 0
    %529 = vmatprep.subr.bf16.mxu0 0
    %530 = vmatpush1.bf16.xpose.msra.mxu0 0
    %531 = vmatprep.subr.bf16.mxu0 0
    %532 = vmatpush1.bf16.xpose.msra.mxu0 0
    %533 = vmatprep.subr.bf16.mxu0 0
    %534 = vmatpush1.bf16.xpose.msra.mxu0 0
    %535 = vmatprep.mubr.bf16.mxu0 0
    %536 = vmatmul.mubr.bf16.gmra.mrb[0].mxu0 %v498
    %v537 = vpop.f32.mrb[0].mxu0
    %v538 = vadd.f32 0.0, %v537
    %v539 = vpop.f32.mrb[0].mxu0
    %v540 = vpop.f32.mrb[0].mxu0
    %v541 = vpop.f32.mrb[0].mxu0
    %542 = vdwg.mxu0
    %543 = vrot.lane.b32.xlu0 %v443, 112
    %v544 = vpop.permute.xlu0 %543
    %545 = vrot.lane.b32.xlu0 %v443, 80
    %v546 = vpop.permute.xlu0 %545
    %v548 = vsel %vm246, %v544, 0
    %v551 = vsel %vm246, %v546, 0
    %553 = vmatprep.subr.bf16.mxu0 0
    %554 = vmatpush1.bf16.xpose.msra.mxu0 %v551
    %555 = vmatprep.subr.bf16.mxu0 0
    %556 = vmatpush1.bf16.xpose.msra.mxu0 0
    %557 = vmatprep.subr.bf16.mxu0 0
    %558 = vmatpush1.bf16.xpose.msra.mxu0 0
    %559 = vmatprep.subr.bf16.mxu0 0
    %560 = vmatpush1.bf16.xpose.msra.mxu0 0
    %561 = vmatprep.subr.bf16.mxu0 0
    %562 = vmatpush1.bf16.xpose.msra.mxu0 0
    %563 = vmatprep.subr.bf16.mxu0 0
    %564 = vmatpush1.bf16.xpose.msra.mxu0 0
    %565 = vmatprep.subr.bf16.mxu0 0
    %566 = vmatpush1.bf16.xpose.msra.mxu0 0
    %567 = vmatprep.subr.bf16.mxu0 0
    %568 = vmatpush1.bf16.xpose.msra.mxu0 0
    %569 = vmatprep.subr.bf16.mxu0 0
    %570 = vmatpush1.bf16.xpose.msra.mxu0 0
    %571 = vmatprep.subr.bf16.mxu0 0
    %572 = vmatpush1.bf16.xpose.msra.mxu0 0
    %573 = vmatprep.subr.bf16.mxu0 0
    %574 = vmatpush1.bf16.xpose.msra.mxu0 0
    %575 = vmatprep.subr.bf16.mxu0 0
    %576 = vmatpush1.bf16.xpose.msra.mxu0 0
    %577 = vmatprep.subr.bf16.mxu0 0
    %578 = vmatpush1.bf16.xpose.msra.mxu0 0
    %579 = vmatprep.subr.bf16.mxu0 0
    %580 = vmatpush1.bf16.xpose.msra.mxu0 0
    %581 = vmatprep.subr.bf16.mxu0 0
    %582 = vmatpush1.bf16.xpose.msra.mxu0 0
    %583 = vmatprep.subr.bf16.mxu0 0
    %584 = vmatpush1.bf16.xpose.msra.mxu0 0
    %585 = vmatprep.mubr.bf16.mxu0 0
    %586 = vmatmul.mubr.bf16.gmra.mrb[0].mxu0 %v548
    %v587 = vpop.f32.mrb[0].mxu0
    %v588 = vadd.f32 0.0, %v587
    %v589 = vpop.f32.mrb[0].mxu0
    %v590 = vpop.f32.mrb[0].mxu0
    %v591 = vpop.f32.mrb[0].mxu0
    %592 = vdwg.mxu0
    %593 = vrot.lane.b32.xlu0 %v443, 104
    %v594 = vpop.permute.xlu0 %593
    %595 = vrot.lane.b32.xlu0 %v443, 72
    %v596 = vpop.permute.xlu0 %595
    %v598 = vsel %vm246, %v594, 0
    %v601 = vsel %vm246, %v596, 0
    %603 = vmatprep.subr.bf16.mxu0 0
    %604 = vmatpush1.bf16.xpose.msra.mxu0 %v601
    %605 = vmatprep.subr.bf16.mxu0 0
    %606 = vmatpush1.bf16.xpose.msra.mxu0 0
    %607 = vmatprep.subr.bf16.mxu0 0
    %608 = vmatpush1.bf16.xpose.msra.mxu0 0
    %609 = vmatprep.subr.bf16.mxu0 0
    %610 = vmatpush1.bf16.xpose.msra.mxu0 0
    %611 = vmatprep.subr.bf16.mxu0 0
    %612 = vmatpush1.bf16.xpose.msra.mxu0 0
    %613 = vmatprep.subr.bf16.mxu0 0
    %614 = vmatpush1.bf16.xpose.msra.mxu0 0
    %615 = vmatprep.subr.bf16.mxu0 0
    %616 = vmatpush1.bf16.xpose.msra.mxu0 0
    %617 = vmatprep.subr.bf16.mxu0 0
    %618 = vmatpush1.bf16.xpose.msra.mxu0 0
    %619 = vmatprep.subr.bf16.mxu0 0
    %620 = vmatpush1.bf16.xpose.msra.mxu0 0
    %621 = vmatprep.subr.bf16.mxu0 0
    %622 = vmatpush1.bf16.xpose.msra.mxu0 0
    %623 = vmatprep.subr.bf16.mxu0 0
    %624 = vmatpush1.bf16.xpose.msra.mxu0 0
    %625 = vmatprep.subr.bf16.mxu0 0
    %626 = vmatpush1.bf16.xpose.msra.mxu0 0
    %627 = vmatprep.subr.bf16.mxu0 0
    %628 = vmatpush1.bf16.xpose.msra.mxu0 0
    %629 = vmatprep.subr.bf16.mxu0 0
    %630 = vmatpush1.bf16.xpose.msra.mxu0 0
    %631 = vmatprep.subr.bf16.mxu0 0
    %632 = vmatpush1.bf16.xpose.msra.mxu0 0
    %633 = vmatprep.subr.bf16.mxu0 0
    %634 = vmatpush1.bf16.xpose.msra.mxu0 0
    %635 = vmatprep.mubr.bf16.mxu0 0
    %636 = vmatmul.mubr.bf16.gmra.mrb[0].mxu0 %v598
    %v637 = vpop.f32.mrb[0].mxu0
    %v638 = vadd.f32 0.0, %v637
    %v639 = vpop.f32.mrb[0].mxu0
    %v640 = vpop.f32.mrb[0].mxu0
    %v641 = vpop.f32.mrb[0].mxu0
    %642 = vdwg.mxu0
    %v643 = vadd.f32 %v288, %v150
    %v644 = vadd.f32 %v338, %v150
    %v645 = vadd.f32 %v388, %v150
    %v646 = vadd.f32 %v438, %v150
    %v647 = vadd.f32 %v488, %v154
    %v648 = vadd.f32 %v538, %v154
    %v649 = vadd.f32 %v588, %v154
    %v650 = vadd.f32 %v638, %v154
    %v651 = vsel %vm246, %v643, -inf
    %652 = vmax.xlane.f32.xlu0 %v651
    %v653 = vpop.xlane.xlu0 %652
    %v654 = vsel %vm246, %v644, -inf
    %655 = vmax.xlane.f32.xlu0 %v654
    %v656 = vpop.xlane.xlu0 %655
    %v657 = vsel %vm246, %v645, -inf
    %658 = vmax.xlane.f32.xlu0 %v657
    %v659 = vpop.xlane.xlu0 %658
    %v660 = vsel %vm246, %v646, -inf
    %661 = vmax.xlane.f32.xlu0 %v660
    %v662 = vpop.xlane.xlu0 %661
    %v663 = vsel %vm246, %v647, -inf
    %664 = vmax.xlane.f32.xlu0 %v663
    %v665 = vpop.xlane.xlu0 %664
    %v666 = vsel %vm246, %v648, -inf
    %667 = vmax.xlane.f32.xlu0 %v666
    %v668 = vpop.xlane.xlu0 %667
    %v669 = vsel %vm246, %v649, -inf
    %670 = vmax.xlane.f32.xlu0 %v669
    %v671 = vpop.xlane.xlu0 %670
    %v672 = vsel %vm246, %v650, -inf
    %673 = vmax.xlane.f32.xlu0 %v672
    %v674 = vpop.xlane.xlu0 %673
    %v675 = vsub.f32 %v643, %v653
    %v676 = vsub.f32 %v644, %v656
    %v677 = vsub.f32 %v645, %v659
    %v678 = vsub.f32 %v646, %v662
    %v679 = vsub.f32 %v647, %v665
    %v680 = vsub.f32 %v648, %v668
    %v681 = vsub.f32 %v649, %v671
    %v682 = vsub.f32 %v650, %v674
    %v683 = vmul.f32 %v675, 1.442695
    %v684 = vpow.pop %v683
    %v685 = vmul.f32 %v676, 1.442695
    %v686 = vpow.pop %v685
    %v687 = vmul.f32 %v677, 1.442695
    %v688 = vpow.pop %v687
    %v689 = vmul.f32 %v678, 1.442695
    %v690 = vpow.pop %v689
    %v691 = vmul.f32 %v679, 1.442695
    %v692 = vpow.pop %v691
    %v693 = vmul.f32 %v680, 1.442695
    %v694 = vpow.pop %v693
    %v695 = vmul.f32 %v681, 1.442695
    %v696 = vpow.pop %v695
    %v697 = vmul.f32 %v682, 1.442695
    %v698 = vpow.pop %v697
    %v699 = vsel %vm246, %v684, 0.0
    %700 = vadd.xlane.f32.xlu0 %v699
    %v701 = vpop.xlane.xlu0 %700
    %v702 = vsel %vm246, %v686, 0.0
    %703 = vadd.xlane.f32.xlu0 %v702
    %v704 = vpop.xlane.xlu0 %703
    %v705 = vsel %vm246, %v688, 0.0
    %706 = vadd.xlane.f32.xlu0 %v705
    %v707 = vpop.xlane.xlu0 %706
    %v708 = vsel %vm246, %v690, 0.0
    %709 = vadd.xlane.f32.xlu0 %v708
    %v710 = vpop.xlane.xlu0 %709
    %v711 = vsel %vm246, %v692, 0.0
    %712 = vadd.xlane.f32.xlu0 %v711
    %v713 = vpop.xlane.xlu0 %712
    %v714 = vsel %vm246, %v694, 0.0
    %715 = vadd.xlane.f32.xlu0 %v714
    %v716 = vpop.xlane.xlu0 %715
    %v717 = vsel %vm246, %v696, 0.0
    %718 = vadd.xlane.f32.xlu0 %v717
    %v719 = vpop.xlane.xlu0 %718
    %v720 = vsel %vm246, %v698, 0.0
    %721 = vadd.xlane.f32.xlu0 %v720
    %v722 = vpop.xlane.xlu0 %721
    %v723 = vrcp.pop %v701
    %v724 = vmul.f32 %v684, %v723
    %v725 = vrcp.pop %v704
    %v726 = vmul.f32 %v686, %v725
    %v727 = vrcp.pop %v707
    %v728 = vmul.f32 %v688, %v727
    %v729 = vrcp.pop %v710
    %v730 = vmul.f32 %v690, %v729
    %v731 = vrcp.pop %v713
    %v732 = vmul.f32 %v692, %v731
    %v733 = vrcp.pop %v716
    %v734 = vmul.f32 %v694, %v733
    %v735 = vrcp.pop %v719
    %v736 = vmul.f32 %v696, %v735
    %v737 = vrcp.pop %v722
    %v738 = vmul.f32 %v698, %v737
    %v739 = vpack.c.bf16 %v726, %v724
    %v740 = vpack.c.bf16 %v730, %v728
    %v741 = vpack.c.bf16 %v734, %v732
    %v742 = vpack.c.bf16 %v738, %v736
    %743 = vrot.lane.b32.xlu0 %v242, 64
    %v744 = vpop.permute.xlu0 %743
    %v746 = vsel %vm246, %v739, 0
    %vm748 = vcmask 1043456
    %v750 = vsel %vm748, %v744, 0
    %752 = vmatprep.subr.bf16.mxu0 0
    %753 = vmatpush1.bf16.msra.mxu0 %v750
    %754 = vmatprep.subr.bf16.mxu0 0
    %755 = vmatpush1.bf16.msra.mxu0 0
    %756 = vmatprep.subr.bf16.mxu0 0
    %757 = vmatpush1.bf16.msra.mxu0 0
    %758 = vmatprep.subr.bf16.mxu0 0
    %759 = vmatpush1.bf16.msra.mxu0 0
    %760 = vmatprep.subr.bf16.mxu0 0
    %761 = vmatpush1.bf16.msra.mxu0 0
    %762 = vmatprep.subr.bf16.mxu0 0
    %763 = vmatpush1.bf16.msra.mxu0 0
    %764 = vmatprep.subr.bf16.mxu0 0
    %765 = vmatpush1.bf16.msra.mxu0 0
    %766 = vmatprep.subr.bf16.mxu0 0
    %767 = vmatpush1.bf16.msra.mxu0 0
    %768 = vmatprep.subr.bf16.mxu0 0
    %769 = vmatpush1.bf16.msra.mxu0 0
    %770 = vmatprep.subr.bf16.mxu0 0
    %771 = vmatpush1.bf16.msra.mxu0 0
    %772 = vmatprep.subr.bf16.mxu0 0
    %773 = vmatpush1.bf16.msra.mxu0 0
    %774 = vmatprep.subr.bf16.mxu0 0
    %775 = vmatpush1.bf16.msra.mxu0 0
    %776 = vmatprep.subr.bf16.mxu0 0
    %777 = vmatpush1.bf16.msra.mxu0 0
    %778 = vmatprep.subr.bf16.mxu0 0
    %779 = vmatpush1.bf16.msra.mxu0 0
    %780 = vmatprep.subr.bf16.mxu0 0
    %781 = vmatpush1.bf16.msra.mxu0 0
    %782 = vmatprep.subr.bf16.mxu0 0
    %783 = vmatpush1.bf16.msra.mxu0 0
    %784 = vmatprep.mubr.bf16.mxu0 0
    %785 = vmatmul.mubr.bf16.gmra.mrb[0].mxu0 %v746
    %v786 = vpop.f32.mrb[0].mxu0
    %v787 = vadd.f32 0.0, %v786
    %v788 = vpop.f32.mrb[0].mxu0
    %v789 = vpop.f32.mrb[0].mxu0
    %v790 = vpop.f32.mrb[0].mxu0
    %791 = vdwg.mxu0
    %v793 = vrot.slane %v739, 4
    %794 = vrot.lane.b32.xlu0 %v242, 56
    %v795 = vpop.permute.xlu0 %794
    %v797 = vsel %vm246, %v793, 0
    %v800 = vsel %vm748, %v795, 0
    %802 = vmatprep.subr.bf16.mxu0 0
    %803 = vmatpush1.bf16.msra.mxu0 %v800
    %804 = vmatprep.subr.bf16.mxu0 0
    %805 = vmatpush1.bf16.msra.mxu0 0
    %806 = vmatprep.subr.bf16.mxu0 0
    %807 = vmatpush1.bf16.msra.mxu0 0
    %808 = vmatprep.subr.bf16.mxu0 0
    %809 = vmatpush1.bf16.msra.mxu0 0
    %810 = vmatprep.subr.bf16.mxu0 0
    %811 = vmatpush1.bf16.msra.mxu0 0
    %812 = vmatprep.subr.bf16.mxu0 0
    %813 = vmatpush1.bf16.msra.mxu0 0
    %814 = vmatprep.subr.bf16.mxu0 0
    %815 = vmatpush1.bf16.msra.mxu0 0
    %816 = vmatprep.subr.bf16.mxu0 0
    %817 = vmatpush1.bf16.msra.mxu0 0
    %818 = vmatprep.subr.bf16.mxu0 0
    %819 = vmatpush1.bf16.msra.mxu0 0
    %820 = vmatprep.subr.bf16.mxu0 0
    %821 = vmatpush1.bf16.msra.mxu0 0
    %822 = vmatprep.subr.bf16.mxu0 0
    %823 = vmatpush1.bf16.msra.mxu0 0
    %824 = vmatprep.subr.bf16.mxu0 0
    %825 = vmatpush1.bf16.msra.mxu0 0
    %826 = vmatprep.subr.bf16.mxu0 0
    %827 = vmatpush1.bf16.msra.mxu0 0
    %828 = vmatprep.subr.bf16.mxu0 0
    %829 = vmatpush1.bf16.msra.mxu0 0
    %830 = vmatprep.subr.bf16.mxu0 0
    %831 = vmatpush1.bf16.msra.mxu0 0
    %832 = vmatprep.subr.bf16.mxu0 0
    %833 = vmatpush1.bf16.msra.mxu0 0
    %834 = vmatprep.mubr.bf16.mxu0 0
    %835 = vmatmul.mubr.bf16.gmra.mrb[0].mxu0 %v797
    %v836 = vpop.f32.mrb[0].mxu0
    %v837 = vadd.f32 0.0, %v836
    %v838 = vpop.f32.mrb[0].mxu0
    %v839 = vpop.f32.mrb[0].mxu0
    %v840 = vpop.f32.mrb[0].mxu0
    %841 = vdwg.mxu0
    %842 = vrot.lane.b32.xlu0 %v242, 48
    %v843 = vpop.permute.xlu0 %842
    %v845 = vsel %vm246, %v740, 0
    %v848 = vsel %vm748, %v843, 0
    %850 = vmatprep.subr.bf16.mxu0 0
    %851 = vmatpush1.bf16.msra.mxu0 %v848
    %852 = vmatprep.subr.bf16.mxu0 0
    %853 = vmatpush1.bf16.msra.mxu0 0
    %854 = vmatprep.subr.bf16.mxu0 0
    %855 = vmatpush1.bf16.msra.mxu0 0
    %856 = vmatprep.subr.bf16.mxu0 0
    %857 = vmatpush1.bf16.msra.mxu0 0
    %858 = vmatprep.subr.bf16.mxu0 0
    %859 = vmatpush1.bf16.msra.mxu0 0
    %860 = vmatprep.subr.bf16.mxu0 0
    %861 = vmatpush1.bf16.msra.mxu0 0
    %862 = vmatprep.subr.bf16.mxu0 0
    %863 = vmatpush1.bf16.msra.mxu0 0
    %864 = vmatprep.subr.bf16.mxu0 0
    %865 = vmatpush1.bf16.msra.mxu0 0
    %866 = vmatprep.subr.bf16.mxu0 0
    %867 = vmatpush1.bf16.msra.mxu0 0
    %868 = vmatprep.subr.bf16.mxu0 0
    %869 = vmatpush1.bf16.msra.mxu0 0
    %870 = vmatprep.subr.bf16.mxu0 0
    %871 = vmatpush1.bf16.msra.mxu0 0
    %872 = vmatprep.subr.bf16.mxu0 0
    %873 = vmatpush1.bf16.msra.mxu0 0
    %874 = vmatprep.subr.bf16.mxu0 0
    %875 = vmatpush1.bf16.msra.mxu0 0
    %876 = vmatprep.subr.bf16.mxu0 0
    %877 = vmatpush1.bf16.msra.mxu0 0
    %878 = vmatprep.subr.bf16.mxu0 0
    %879 = vmatpush1.bf16.msra.mxu0 0
    %880 = vmatprep.subr.bf16.mxu0 0
    %881 = vmatpush1.bf16.msra.mxu0 0
    %882 = vmatprep.mubr.bf16.mxu0 0
    %883 = vmatmul.mubr.bf16.gmra.mrb[0].mxu0 %v845
    %v884 = vpop.f32.mrb[0].mxu0
    %v885 = vadd.f32 0.0, %v884
    %v886 = vpop.f32.mrb[0].mxu0
    %v887 = vpop.f32.mrb[0].mxu0
    %v888 = vpop.f32.mrb[0].mxu0
    %889 = vdwg.mxu0
    %v891 = vrot.slane %v740, 4
    %892 = vrot.lane.b32.xlu0 %v242, 40
    %v893 = vpop.permute.xlu0 %892
    %v895 = vsel %vm246, %v891, 0
    %v898 = vsel %vm748, %v893, 0
    %900 = vmatprep.subr.bf16.mxu0 0
    %901 = vmatpush1.bf16.msra.mxu0 %v898
    %902 = vmatprep.subr.bf16.mxu0 0
    %903 = vmatpush1.bf16.msra.mxu0 0
    %904 = vmatprep.subr.bf16.mxu0 0
    %905 = vmatpush1.bf16.msra.mxu0 0
    %906 = vmatprep.subr.bf16.mxu0 0
    %907 = vmatpush1.bf16.msra.mxu0 0
    %908 = vmatprep.subr.bf16.mxu0 0
    %909 = vmatpush1.bf16.msra.mxu0 0
    %910 = vmatprep.subr.bf16.mxu0 0
    %911 = vmatpush1.bf16.msra.mxu0 0
    %912 = vmatprep.subr.bf16.mxu0 0
    %913 = vmatpush1.bf16.msra.mxu0 0
    %914 = vmatprep.subr.bf16.mxu0 0
    %915 = vmatpush1.bf16.msra.mxu0 0
    %916 = vmatprep.subr.bf16.mxu0 0
    %917 = vmatpush1.bf16.msra.mxu0 0
    %918 = vmatprep.subr.bf16.mxu0 0
    %919 = vmatpush1.bf16.msra.mxu0 0
    %920 = vmatprep.subr.bf16.mxu0 0
    %921 = vmatpush1.bf16.msra.mxu0 0
    %922 = vmatprep.subr.bf16.mxu0 0
    %923 = vmatpush1.bf16.msra.mxu0 0
    %924 = vmatprep.subr.bf16.mxu0 0
    %925 = vmatpush1.bf16.msra.mxu0 0
    %926 = vmatprep.subr.bf16.mxu0 0
    %927 = vmatpush1.bf16.msra.mxu0 0
    %928 = vmatprep.subr.bf16.mxu0 0
    %929 = vmatpush1.bf16.msra.mxu0 0
    %930 = vmatprep.subr.bf16.mxu0 0
    %931 = vmatpush1.bf16.msra.mxu0 0
    %932 = vmatprep.mubr.bf16.mxu0 0
    %933 = vmatmul.mubr.bf16.gmra.mrb[0].mxu0 %v895
    %v934 = vpop.f32.mrb[0].mxu0
    %v935 = vadd.f32 0.0, %v934
    %v936 = vpop.f32.mrb[0].mxu0
    %v937 = vpop.f32.mrb[0].mxu0
    %v938 = vpop.f32.mrb[0].mxu0
    %939 = vdwg.mxu0
    %941 = vrot.lane.b32.xlu0 %v837, 8
    %v942 = vpop.permute.xlu0 %941
    %945 = vrot.lane.b32.xlu0 %v885, 16
    %v946 = vpop.permute.xlu0 %945
    %949 = vrot.lane.b32.xlu0 %v935, 24
    %v950 = vpop.permute.xlu0 %949
    %v952 = vsel %vm246, %v787, %v942
    %vm953 = vcmask 130048
    %v954 = vsel %vm953, %v952, %v946
    %vm955 = vcmask 195584
    %v956 = vsel %vm955, %v954, %v950
    %957 = vrot.lane.b32.xlu0 %v443, 64
    %v958 = vpop.permute.xlu0 %957
    %v960 = vsel %vm246, %v741, 0
    %v963 = vsel %vm748, %v958, 0
    %965 = vmatprep.subr.bf16.mxu0 0
    %966 = vmatpush1.bf16.msra.mxu0 %v963
    %967 = vmatprep.subr.bf16.mxu0 0
    %968 = vmatpush1.bf16.msra.mxu0 0
    %969 = vmatprep.subr.bf16.mxu0 0
    %970 = vmatpush1.bf16.msra.mxu0 0
    %971 = vmatprep.subr.bf16.mxu0 0
    %972 = vmatpush1.bf16.msra.mxu0 0
    %973 = vmatprep.subr.bf16.mxu0 0
    %974 = vmatpush1.bf16.msra.mxu0 0
    %975 = vmatprep.subr.bf16.mxu0 0
    %976 = vmatpush1.bf16.msra.mxu0 0
    %977 = vmatprep.subr.bf16.mxu0 0
    %978 = vmatpush1.bf16.msra.mxu0 0
    %979 = vmatprep.subr.bf16.mxu0 0
    %980 = vmatpush1.bf16.msra.mxu0 0
    %981 = vmatprep.subr.bf16.mxu0 0
    %982 = vmatpush1.bf16.msra.mxu0 0
    %983 = vmatprep.subr.bf16.mxu0 0
    %984 = vmatpush1.bf16.msra.mxu0 0
    %985 = vmatprep.subr.bf16.mxu0 0
    %986 = vmatpush1.bf16.msra.mxu0 0
    %987 = vmatprep.subr.bf16.mxu0 0
    %988 = vmatpush1.bf16.msra.mxu0 0
    %989 = vmatprep.subr.bf16.mxu0 0
    %990 = vmatpush1.bf16.msra.mxu0 0
    %991 = vmatprep.subr.bf16.mxu0 0
    %992 = vmatpush1.bf16.msra.mxu0 0
    %993 = vmatprep.subr.bf16.mxu0 0
    %994 = vmatpush1.bf16.msra.mxu0 0
    %995 = vmatprep.subr.bf16.mxu0 0
    %996 = vmatpush1.bf16.msra.mxu0 0
    %997 = vmatprep.mubr.bf16.mxu0 0
    %998 = vmatmul.mubr.bf16.gmra.mrb[0].mxu0 %v960
    %v999 = vpop.f32.mrb[0].mxu0
    %v1000 = vadd.f32 0.0, %v999
    %v1001 = vpop.f32.mrb[0].mxu0
    %v1002 = vpop.f32.mrb[0].mxu0
    %v1003 = vpop.f32.mrb[0].mxu0
    %1004 = vdwg.mxu0
    %v1006 = vrot.slane %v741, 4
    %1007 = vrot.lane.b32.xlu0 %v443, 56
    %v1008 = vpop.permute.xlu0 %1007
    %v1010 = vsel %vm246, %v1006, 0
    %v1013 = vsel %vm748, %v1008, 0
    %1015 = vmatprep.subr.bf16.mxu0 0
    %1016 = vmatpush1.bf16.msra.mxu0 %v1013
    %1017 = vmatprep.subr.bf16.mxu0 0
    %1018 = vmatpush1.bf16.msra.mxu0 0
    %1019 = vmatprep.subr.bf16.mxu0 0
    %1020 = vmatpush1.bf16.msra.mxu0 0
    %1021 = vmatprep.subr.bf16.mxu0 0
    %1022 = vmatpush1.bf16.msra.mxu0 0
    %1023 = vmatprep.subr.bf16.mxu0 0
    %1024 = vmatpush1.bf16.msra.mxu0 0
    %1025 = vmatprep.subr.bf16.mxu0 0
    %1026 = vmatpush1.bf16.msra.mxu0 0
    %1027 = vmatprep.subr.bf16.mxu0 0
    %1028 = vmatpush1.bf16.msra.mxu0 0
    %1029 = vmatprep.subr.bf16.mxu0 0
    %1030 = vmatpush1.bf16.msra.mxu0 0
    %1031 = vmatprep.subr.bf16.mxu0 0
    %1032 = vmatpush1.bf16.msra.mxu0 0
    %1033 = vmatprep.subr.bf16.mxu0 0
    %1034 = vmatpush1.bf16.msra.mxu0 0
    %1035 = vmatprep.subr.bf16.mxu0 0
    %1036 = vmatpush1.bf16.msra.mxu0 0
    %1037 = vmatprep.subr.bf16.mxu0 0
    %1038 = vmatpush1.bf16.msra.mxu0 0
    %1039 = vmatprep.subr.bf16.mxu0 0
    %1040 = vmatpush1.bf16.msra.mxu0 0
    %1041 = vmatprep.subr.bf16.mxu0 0
    %1042 = vmatpush1.bf16.msra.mxu0 0
    %1043 = vmatprep.subr.bf16.mxu0 0
    %1044 = vmatpush1.bf16.msra.mxu0 0
    %1045 = vmatprep.subr.bf16.mxu0 0
    %1046 = vmatpush1.bf16.msra.mxu0 0
    %1047 = vmatprep.mubr.bf16.mxu0 0
    %1048 = vmatmul.mubr.bf16.gmra.mrb[0].mxu0 %v1010
    %v1049 = vpop.f32.mrb[0].mxu0
    %v1050 = vadd.f32 0.0, %v1049
    %v1051 = vpop.f32.mrb[0].mxu0
    %v1052 = vpop.f32.mrb[0].mxu0
    %v1053 = vpop.f32.mrb[0].mxu0
    %1054 = vdwg.mxu0
    %1055 = vrot.lane.b32.xlu0 %v443, 48
    %v1056 = vpop.permute.xlu0 %1055
    %v1058 = vsel %vm246, %v742, 0
    %v1061 = vsel %vm748, %v1056, 0
    %1063 = vmatprep.subr.bf16.mxu0 0
    %1064 = vmatpush1.bf16.msra.mxu0 %v1061
    %1065 = vmatprep.subr.bf16.mxu0 0
    %1066 = vmatpush1.bf16.msra.mxu0 0
    %1067 = vmatprep.subr.bf16.mxu0 0
    %1068 = vmatpush1.bf16.msra.mxu0 0
    %1069 = vmatprep.subr.bf16.mxu0 0
    %1070 = vmatpush1.bf16.msra.mxu0 0
    %1071 = vmatprep.subr.bf16.mxu0 0
    %1072 = vmatpush1.bf16.msra.mxu0 0
    %1073 = vmatprep.subr.bf16.mxu0 0
    %1074 = vmatpush1.bf16.msra.mxu0 0
    %1075 = vmatprep.subr.bf16.mxu0 0
    %1076 = vmatpush1.bf16.msra.mxu0 0
    %1077 = vmatprep.subr.bf16.mxu0 0
    %1078 = vmatpush1.bf16.msra.mxu0 0
    %1079 = vmatprep.subr.bf16.mxu0 0
    %1080 = vmatpush1.bf16.msra.mxu0 0
    %1081 = vmatprep.subr.bf16.mxu0 0
    %1082 = vmatpush1.bf16.msra.mxu0 0
    %1083 = vmatprep.subr.bf16.mxu0 0
    %1084 = vmatpush1.bf16.msra.mxu0 0
    %1085 = vmatprep.subr.bf16.mxu0 0
    %1086 = vmatpush1.bf16.msra.mxu0 0
    %1087 = vmatprep.subr.bf16.mxu0 0
    %1088 = vmatpush1.bf16.msra.mxu0 0
    %1089 = vmatprep.subr.bf16.mxu0 0
    %1090 = vmatpush1.bf16.msra.mxu0 0
    %1091 = vmatprep.subr.bf16.mxu0 0
    %1092 = vmatpush1.bf16.msra.mxu0 0
    %1093 = vmatprep.subr.bf16.mxu0 0
    %1094 = vmatpush1.bf16.msra.mxu0 0
    %1095 = vmatprep.mubr.bf16.mxu0 0
    %1096 = vmatmul.mubr.bf16.gmra.mrb[0].mxu0 %v1058
    %v1097 = vpop.f32.mrb[0].mxu0
    %v1098 = vadd.f32 0.0, %v1097
    %v1099 = vpop.f32.mrb[0].mxu0
    %v1100 = vpop.f32.mrb[0].mxu0
    %v1101 = vpop.f32.mrb[0].mxu0
    %1102 = vdwg.mxu0
    %v1104 = vrot.slane %v742, 4
    %1105 = vrot.lane.b32.xlu0 %v443, 40
    %v1106 = vpop.permute.xlu0 %1105
    %v1108 = vsel %vm246, %v1104, 0
    %v1111 = vsel %vm748, %v1106, 0
    %1113 = vmatprep.subr.bf16.mxu0 0
    %1114 = vmatpush1.bf16.msra.mxu0 %v1111
    %1115 = vmatprep.subr.bf16.mxu0 0
    %1116 = vmatpush1.bf16.msra.mxu0 0
    %1117 = vmatprep.subr.bf16.mxu0 0
    %1118 = vmatpush1.bf16.msra.mxu0 0
    %1119 = vmatprep.subr.bf16.mxu0 0
    %1120 = vmatpush1.bf16.msra.mxu0 0
    %1121 = vmatprep.subr.bf16.mxu0 0
    %1122 = vmatpush1.bf16.msra.mxu0 0
    %1123 = vmatprep.subr.bf16.mxu0 0
    %1124 = vmatpush1.bf16.msra.mxu0 0
    %1125 = vmatprep.subr.bf16.mxu0 0
    %1126 = vmatpush1.bf16.msra.mxu0 0
    %1127 = vmatprep.subr.bf16.mxu0 0
    %1128 = vmatpush1.bf16.msra.mxu0 0
    %1129 = vmatprep.subr.bf16.mxu0 0
    %1130 = vmatpush1.bf16.msra.mxu0 0
    %1131 = vmatprep.subr.bf16.mxu0 0
    %1132 = vmatpush1.bf16.msra.mxu0 0
    %1133 = vmatprep.subr.bf16.mxu0 0
    %1134 = vmatpush1.bf16.msra.mxu0 0
    %1135 = vmatprep.subr.bf16.mxu0 0
    %1136 = vmatpush1.bf16.msra.mxu0 0
    %1137 = vmatprep.subr.bf16.mxu0 0
    %1138 = vmatpush1.bf16.msra.mxu0 0
    %1139 = vmatprep.subr.bf16.mxu0 0
    %1140 = vmatpush1.bf16.msra.mxu0 0
    %1141 = vmatprep.subr.bf16.mxu0 0
    %1142 = vmatpush1.bf16.msra.mxu0 0
    %1143 = vmatprep.subr.bf16.mxu0 0
    %1144 = vmatpush1.bf16.msra.mxu0 0
    %1145 = vmatprep.mubr.bf16.mxu0 0
    %1146 = vmatmul.mubr.bf16.gmra.mrb[0].mxu0 %v1108
    %v1147 = vpop.f32.mrb[0].mxu0
    %v1148 = vadd.f32 0.0, %v1147
    %v1149 = vpop.f32.mrb[0].mxu0
    %v1150 = vpop.f32.mrb[0].mxu0
    %v1151 = vpop.f32.mrb[0].mxu0
    %1152 = vdwg.mxu0
    %1154 = vrot.lane.b32.xlu0 %v1050, 8
    %v1155 = vpop.permute.xlu0 %1154
    %1158 = vrot.lane.b32.xlu0 %v1098, 16
    %v1159 = vpop.permute.xlu0 %1158
    %1162 = vrot.lane.b32.xlu0 %v1148, 24
    %v1163 = vpop.permute.xlu0 %1162
    %v1165 = vsel %vm246, %v1000, %v1155
    %v1166 = vsel %vm953, %v1165, %v1159
    %v1167 = vsel %vm955, %v1166, %v1163
    %v1168 = vpack.c.bf16 %v1167, %v956
    %1169 = vrot.lane.b32.xlu0 %v194, 32
    %v1170 = vpop.permute.xlu0 %1169
    %1171 = vrot.lane.b32.xlu0 %v195, 32
    %v1172 = vpop.permute.xlu0 %1171
    %v1176 = vsel %vm163, %v1168, 0
    %1178 = vmatprep.subr.bf16.mxu0 0
    %1179 = vmatpush1.bf16.msra.mxu0 %v1170
    %1180 = vmatprep.subr.bf16.mxu0 0
    %1181 = vmatpush1.bf16.msra.mxu0 %v1172
    %1182 = vmatprep.subr.bf16.mxu0 0
    %1183 = vmatpush1.bf16.msra.mxu0 0
    %1184 = vmatprep.subr.bf16.mxu0 0
    %1185 = vmatpush1.bf16.msra.mxu0 0
    %1186 = vmatprep.subr.bf16.mxu0 0
    %1187 = vmatpush1.bf16.msra.mxu0 0
    %1188 = vmatprep.subr.bf16.mxu0 0
    %1189 = vmatpush1.bf16.msra.mxu0 0
    %1190 = vmatprep.subr.bf16.mxu0 0
    %1191 = vmatpush1.bf16.msra.mxu0 0
    %1192 = vmatprep.subr.bf16.mxu0 0
    %1193 = vmatpush1.bf16.msra.mxu0 0
    %1194 = vmatprep.subr.bf16.mxu0 0
    %1195 = vmatpush1.bf16.msra.mxu0 0
    %1196 = vmatprep.subr.bf16.mxu0 0
    %1197 = vmatpush1.bf16.msra.mxu0 0
    %1198 = vmatprep.subr.bf16.mxu0 0
    %1199 = vmatpush1.bf16.msra.mxu0 0
    %1200 = vmatprep.subr.bf16.mxu0 0
    %1201 = vmatpush1.bf16.msra.mxu0 0
    %1202 = vmatprep.subr.bf16.mxu0 0
    %1203 = vmatpush1.bf16.msra.mxu0 0
    %1204 = vmatprep.subr.bf16.mxu0 0
    %1205 = vmatpush1.bf16.msra.mxu0 0
    %1206 = vmatprep.subr.bf16.mxu0 0
    %1207 = vmatpush1.bf16.msra.mxu0 0
    %1208 = vmatprep.subr.bf16.mxu0 0
    %1209 = vmatpush1.bf16.msra.mxu0 0
    %1210 = vmatprep.mubr.bf16.mxu0 0
    %1211 = vmatmul.mubr.bf16.gmra.mrb[0].mxu0 %v1176
    %v1212 = vpop.f32.mrb[0].mxu0
    %v1213 = vadd.f32 0.0, %v1212
    %v1214 = vpop.f32.mrb[0].mxu0
    %v1215 = vpop.f32.mrb[0].mxu0
    %v1216 = vadd.f32 0.0, %v1215
    %v1217 = vpop.f32.mrb[0].mxu0
    %1218 = vdwg.mxu0
    %v1219 = vadd.f32 %v138, %v1213
    %v1220 = vadd.f32 %v141, %v1216
    %v1221 = vmul.f32 %v1219, %v1219
    %v1222 = vmul.f32 %v1220, %v1220
    %v1223 = vsel %vm163, %v1221, 0.0
    %1224 = vadd.xlane.f32.xlu0 %v1223
    %v1225 = vpop.xlane.xlu0 %1224
    %v1226 = vsel %vm163, %v1222, 0.0
    %1227 = vadd.xlane.f32.xlu0 %v1226
    %v1228 = vpop.xlane.xlu0 %1227
    %v1229 = vmul.f32 %v1225, %v170
    %v1230 = vmul.f32 %v1228, %v170
    %v1231 = vadd.f32 %v1229, 1e-06
    %v1232 = vadd.f32 %v1230, 1e-06
    %v1233 = vrsqrt.pop %v1231
    %v1234 = vrsqrt.pop %v1232
    %v1235 = vmul.f32 %v1219, %v1233
    %v1236 = vmul.f32 %v1220, %v1234
    %v1237 = vlaneseq
    %v1238 = vshrl.u32 %v1237, 7
    %v1239 = vsub.s32 1, %v1238
    %v1240 = vrot.slane %v160, %v1239
    %v1241 = vmul.f32 %v1235, %v1240
    %v1242 = vmul.f32 %v1236, %v1240
    %v1243 = vpack.c.bf16 %v1242, %v1241
    %v1244 = vunpack.c.h.b16 %v155
    %v1245 = vunpack.c.h.b16 %v156
    %v1246 = vunpack.c.h.b16 %v157
    %v1247 = vunpack.c.h.b16 %v158
    %v1248 = vpack.c.b16 %v1245, %v1244
    %v1249 = vpack.c.b16 %v1247, %v1246
    %v1253 = vsel %vm163, %v1243, 0
    %1255 = vmatprep.subr.bf16.mxu0 0
    %1256 = vmatpush1.bf16.msra.mxu0 %v1248
    %1257 = vmatprep.subr.bf16.mxu0 0
    %1258 = vmatpush1.bf16.msra.mxu0 %v1249
    %1259 = vmatprep.subr.bf16.mxu0 0
    %1260 = vmatpush1.bf16.msra.mxu0 0
    %1261 = vmatprep.subr.bf16.mxu0 0
    %1262 = vmatpush1.bf16.msra.mxu0 0
    %1263 = vmatprep.subr.bf16.mxu0 0
    %1264 = vmatpush1.bf16.msra.mxu0 0
    %1265 = vmatprep.subr.bf16.mxu0 0
    %1266 = vmatpush1.bf16.msra.mxu0 0
    %1267 = vmatprep.subr.bf16.mxu0 0
    %1268 = vmatpush1.bf16.msra.mxu0 0
    %1269 = vmatprep.subr.bf16.mxu0 0
    %1270 = vmatpush1.bf16.msra.mxu0 0
    %1271 = vmatprep.subr.bf16.mxu0 0
    %1272 = vmatpush1.bf16.msra.mxu0 0
    %1273 = vmatprep.subr.bf16.mxu0 0
    %1274 = vmatpush1.bf16.msra.mxu0 0
    %1275 = vmatprep.subr.bf16.mxu0 0
    %1276 = vmatpush1.bf16.msra.mxu0 0
    %1277 = vmatprep.subr.bf16.mxu0 0
    %1278 = vmatpush1.bf16.msra.mxu0 0
    %1279 = vmatprep.subr.bf16.mxu0 0
    %1280 = vmatpush1.bf16.msra.mxu0 0
    %1281 = vmatprep.subr.bf16.mxu0 0
    %1282 = vmatpush1.bf16.msra.mxu0 0
    %1283 = vmatprep.subr.bf16.mxu0 0
    %1284 = vmatpush1.bf16.msra.mxu0 0
    %1285 = vmatprep.subr.bf16.mxu0 0
    %1286 = vmatpush1.bf16.msra.mxu0 0
    %1287 = vmatprep.mubr.bf16.mxu0 0
    %1288 = vmatmul.mubr.bf16.gmra.mrb[0].mxu0 %v1253
    %v1289 = vpop.f32.mrb[0].mxu0
    %v1290 = vadd.f32 0.0, %v1289
    %v1291 = vpop.f32.mrb[0].mxu0
    %v1292 = vpop.f32.mrb[0].mxu0
    %v1293 = vadd.f32 0.0, %v1292
    %v1294 = vpop.f32.mrb[0].mxu0
    %1295 = vdwg.mxu0
    %v1296 = vmax.f32 %v1290, 0.0
    %v1297 = vmax.f32 %v1293, 0.0
    %v1298 = vpack.c.bf16 %v1297, %v1296
    %1299 = vrot.lane.b32.xlu0 %v1248, 64
    %v1300 = vpop.permute.xlu0 %1299
    %1301 = vrot.lane.b32.xlu0 %v1249, 64
    %v1302 = vpop.permute.xlu0 %1301
    %vm1303 = vcmask 523264
    %v1305 = vsel %vm1303, %v1298, 0
    %v1308 = vsel %vm1303, %v1300, 0
    %v1311 = vsel %vm1303, %v1302, 0
    %1313 = vmatprep.subr.bf16.mxu0 0
    %1314 = vmatpush1.bf16.xpose.msra.mxu0 %v1308
    %1315 = vmatprep.subr.bf16.mxu0 0
    %1316 = vmatpush1.bf16.xpose.msra.mxu0 %v1311
    %1317 = vmatprep.subr.bf16.mxu0 0
    %1318 = vmatpush1.bf16.xpose.msra.mxu0 0
    %1319 = vmatprep.subr.bf16.mxu0 0
    %1320 = vmatpush1.bf16.xpose.msra.mxu0 0
    %1321 = vmatprep.subr.bf16.mxu0 0
    %1322 = vmatpush1.bf16.xpose.msra.mxu0 0
    %1323 = vmatprep.subr.bf16.mxu0 0
    %1324 = vmatpush1.bf16.xpose.msra.mxu0 0
    %1325 = vmatprep.subr.bf16.mxu0 0
    %1326 = vmatpush1.bf16.xpose.msra.mxu0 0
    %1327 = vmatprep.subr.bf16.mxu0 0
    %1328 = vmatpush1.bf16.xpose.msra.mxu0 0
    %1329 = vmatprep.subr.bf16.mxu0 0
    %1330 = vmatpush1.bf16.xpose.msra.mxu0 0
    %1331 = vmatprep.subr.bf16.mxu0 0
    %1332 = vmatpush1.bf16.xpose.msra.mxu0 0
    %1333 = vmatprep.subr.bf16.mxu0 0
    %1334 = vmatpush1.bf16.xpose.msra.mxu0 0
    %1335 = vmatprep.subr.bf16.mxu0 0
    %1336 = vmatpush1.bf16.xpose.msra.mxu0 0
    %1337 = vmatprep.subr.bf16.mxu0 0
    %1338 = vmatpush1.bf16.xpose.msra.mxu0 0
    %1339 = vmatprep.subr.bf16.mxu0 0
    %1340 = vmatpush1.bf16.xpose.msra.mxu0 0
    %1341 = vmatprep.subr.bf16.mxu0 0
    %1342 = vmatpush1.bf16.xpose.msra.mxu0 0
    %1343 = vmatprep.subr.bf16.mxu0 0
    %1344 = vmatpush1.bf16.xpose.msra.mxu0 0
    %1345 = vmatprep.mubr.bf16.mxu0 0
    %1346 = vmatmul.mubr.bf16.gmra.mrb[0].mxu0 %v1305
    %v1347 = vpop.f32.mrb[0].mxu0
    %v1348 = vadd.f32 0.0, %v1347
    %v1349 = vpop.f32.mrb[0].mxu0
    %v1350 = vpop.f32.mrb[0].mxu0
    %v1351 = vadd.f32 0.0, %v1350
    %v1352 = vpop.f32.mrb[0].mxu0
    %1353 = vdwg.mxu0
    %v1354 = vadd.f32 %v1219, %v1348
    %v1355 = vadd.f32 %v1220, %v1351
    %s1356 = scalar_lea.vmem %s3, 32
    %v1357 = vld [vmem:[%s1356] sm:$0xff]
    %v1358 = vld [vmem:[%s1356 + $0x8] sm:$0xff]
    %v1359 = vld [vmem:[%s1356 + $0x10] sm:$0xff]
    %v1360 = vld [vmem:[%s1356 + $0x18] sm:$0xff]
    %v1361 = vld [vmem:[%s4] sm:$0x2]
    %v1362 = vunpack.c.l.bf16 %v1361
    %v1363 = vmul.f32 %v1354, %v1354
    %v1364 = vmul.f32 %v1355, %v1355
    %v1365 = vsel %vm163, %v1363, 0.0
    %1366 = vadd.xlane.f32.xlu0 %v1365
    %v1367 = vpop.xlane.xlu0 %1366
    %v1368 = vsel %vm163, %v1364, 0.0
    %1369 = vadd.xlane.f32.xlu0 %v1368
    %v1370 = vpop.xlane.xlu0 %1369
    %v1371 = vmul.f32 %v1367, %v170
    %v1372 = vmul.f32 %v1370, %v170
    %v1373 = vadd.f32 %v1371, 1e-06
    %v1374 = vadd.f32 %v1372, 1e-06
    %v1375 = vrsqrt.pop %v1373
    %v1376 = vrsqrt.pop %v1374
    %v1377 = vmul.f32 %v1354, %v1375
    %v1378 = vmul.f32 %v1355, %v1376
    %v1379 = vlaneseq
    %v1380 = vshrl.u32 %v1379, 7
    %v1381 = vsub.s32 2, %v1380
    %v1382 = vrot.slane %v1362, %v1381
    %v1383 = vmul.f32 %v1377, %v1382
    %v1384 = vmul.f32 %v1378, %v1382
    %v1385 = vpack.c.bf16 %v1384, %v1383
    %v1390 = vunpack.c.l.b16 %v1357
    %v1391 = vunpack.c.l.b16 %v1358
    %v1392 = vunpack.c.l.b16 %v1359
    %v1393 = vunpack.c.l.b16 %v1360
    %v1394 = vpack.c.b16 %v1391, %v1390
    %v1395 = vpack.c.b16 %v1393, %v1392
    %v1399 = vsel %vm163, %v1385, 0
    %1401 = vmatprep.subr.bf16.mxu0 0
    %1402 = vmatpush1.bf16.msra.mxu0 %v1394
    %1403 = vmatprep.subr.bf16.mxu0 0
    %1404 = vmatpush1.bf16.msra.mxu0 %v1395
    %1405 = vmatprep.subr.bf16.mxu0 0
    %1406 = vmatpush1.bf16.msra.mxu0 0
    %1407 = vmatprep.subr.bf16.mxu0 0
    %1408 = vmatpush1.bf16.msra.mxu0 0
    %1409 = vmatprep.subr.bf16.mxu0 0
    %1410 = vmatpush1.bf16.msra.mxu0 0
    %1411 = vmatprep.subr.bf16.mxu0 0
    %1412 = vmatpush1.bf16.msra.mxu0 0
    %1413 = vmatprep.subr.bf16.mxu0 0
    %1414 = vmatpush1.bf16.msra.mxu0 0
    %1415 = vmatprep.subr.bf16.mxu0 0
    %1416 = vmatpush1.bf16.msra.mxu0 0
    %1417 = vmatprep.subr.bf16.mxu0 0
    %1418 = vmatpush1.bf16.msra.mxu0 0
    %1419 = vmatprep.subr.bf16.mxu0 0
    %1420 = vmatpush1.bf16.msra.mxu0 0
    %1421 = vmatprep.subr.bf16.mxu0 0
    %1422 = vmatpush1.bf16.msra.mxu0 0
    %1423 = vmatprep.subr.bf16.mxu0 0
    %1424 = vmatpush1.bf16.msra.mxu0 0
    %1425 = vmatprep.subr.bf16.mxu0 0
    %1426 = vmatpush1.bf16.msra.mxu0 0
    %1427 = vmatprep.subr.bf16.mxu0 0
    %1428 = vmatpush1.bf16.msra.mxu0 0
    %1429 = vmatprep.subr.bf16.mxu0 0
    %1430 = vmatpush1.bf16.msra.mxu0 0
    %1431 = vmatprep.subr.bf16.mxu0 0
    %1432 = vmatpush1.bf16.msra.mxu0 0
    %1433 = vmatprep.mubr.bf16.mxu0 0
    %1434 = vmatmul.mubr.bf16.gmra.mrb[0].mxu0 %v1399
    %v1435 = vpop.f32.mrb[0].mxu0
    %v1436 = vadd.f32 0.0, %v1435
    %v1437 = vpop.f32.mrb[0].mxu0
    %v1438 = vpop.f32.mrb[0].mxu0
    %v1439 = vadd.f32 0.0, %v1438
    %v1440 = vpop.f32.mrb[0].mxu0
    %1441 = vdwg.mxu0
    %v1442 = vpack.c.bf16 %v1436, %v1436
    %1444 = vrot.lane.b32.xlu0 %v1442, 96
    %v1445 = vpop.permute.xlu0 %1444
    %v1447 = vsel %vm246, %v1442, 0
    %v1450 = vsel %vm246, %v1445, 0
    %1452 = vmatprep.subr.bf16.mxu0 0
    %1453 = vmatpush1.bf16.xpose.msra.mxu0 %v1450
    %1454 = vmatprep.subr.bf16.mxu0 0
    %1455 = vmatpush1.bf16.xpose.msra.mxu0 0
    %1456 = vmatprep.subr.bf16.mxu0 0
    %1457 = vmatpush1.bf16.xpose.msra.mxu0 0
    %1458 = vmatprep.subr.bf16.mxu0 0
    %1459 = vmatpush1.bf16.xpose.msra.mxu0 0
    %1460 = vmatprep.subr.bf16.mxu0 0
    %1461 = vmatpush1.bf16.xpose.msra.mxu0 0
    %1462 = vmatprep.subr.bf16.mxu0 0
    %1463 = vmatpush1.bf16.xpose.msra.mxu0 0
    %1464 = vmatprep.subr.bf16.mxu0 0
    %1465 = vmatpush1.bf16.xpose.msra.mxu0 0
    %1466 = vmatprep.subr.bf16.mxu0 0
    %1467 = vmatpush1.bf16.xpose.msra.mxu0 0
    %1468 = vmatprep.subr.bf16.mxu0 0
    %1469 = vmatpush1.bf16.xpose.msra.mxu0 0
    %1470 = vmatprep.subr.bf16.mxu0 0
    %1471 = vmatpush1.bf16.xpose.msra.mxu0 0
    %1472 = vmatprep.subr.bf16.mxu0 0
    %1473 = vmatpush1.bf16.xpose.msra.mxu0 0
    %1474 = vmatprep.subr.bf16.mxu0 0
    %1475 = vmatpush1.bf16.xpose.msra.mxu0 0
    %1476 = vmatprep.subr.bf16.mxu0 0
    %1477 = vmatpush1.bf16.xpose.msra.mxu0 0
    %1478 = vmatprep.subr.bf16.mxu0 0
    %1479 = vmatpush1.bf16.xpose.msra.mxu0 0
    %1480 = vmatprep.subr.bf16.mxu0 0
    %1481 = vmatpush1.bf16.xpose.msra.mxu0 0
    %1482 = vmatprep.subr.bf16.mxu0 0
    %1483 = vmatpush1.bf16.xpose.msra.mxu0 0
    %1484 = vmatprep.mubr.bf16.mxu0 0
    %1485 = vmatmul.mubr.bf16.gmra.mrb[0].mxu0 %v1447
    %v1486 = vpop.f32.mrb[0].mxu0
    %v1487 = vadd.f32 0.0, %v1486
    %v1488 = vpop.f32.mrb[0].mxu0
    %v1489 = vpop.f32.mrb[0].mxu0
    %v1490 = vpop.f32.mrb[0].mxu0
    %1491 = vdwg.mxu0
    %1492 = vrot.lane.b32.xlu0 %v1442, 120
    %v1493 = vpop.permute.xlu0 %1492
    %1494 = vrot.lane.b32.xlu0 %v1442, 88
    %v1495 = vpop.permute.xlu0 %1494
    %v1497 = vsel %vm246, %v1493, 0
    %v1500 = vsel %vm246, %v1495, 0
    %1502 = vmatprep.subr.bf16.mxu0 0
    %1503 = vmatpush1.bf16.xpose.msra.mxu0 %v1500
    %1504 = vmatprep.subr.bf16.mxu0 0
    %1505 = vmatpush1.bf16.xpose.msra.mxu0 0
    %1506 = vmatprep.subr.bf16.mxu0 0
    %1507 = vmatpush1.bf16.xpose.msra.mxu0 0
    %1508 = vmatprep.subr.bf16.mxu0 0
    %1509 = vmatpush1.bf16.xpose.msra.mxu0 0
    %1510 = vmatprep.subr.bf16.mxu0 0
    %1511 = vmatpush1.bf16.xpose.msra.mxu0 0
    %1512 = vmatprep.subr.bf16.mxu0 0
    %1513 = vmatpush1.bf16.xpose.msra.mxu0 0
    %1514 = vmatprep.subr.bf16.mxu0 0
    %1515 = vmatpush1.bf16.xpose.msra.mxu0 0
    %1516 = vmatprep.subr.bf16.mxu0 0
    %1517 = vmatpush1.bf16.xpose.msra.mxu0 0
    %1518 = vmatprep.subr.bf16.mxu0 0
    %1519 = vmatpush1.bf16.xpose.msra.mxu0 0
    %1520 = vmatprep.subr.bf16.mxu0 0
    %1521 = vmatpush1.bf16.xpose.msra.mxu0 0
    %1522 = vmatprep.subr.bf16.mxu0 0
    %1523 = vmatpush1.bf16.xpose.msra.mxu0 0
    %1524 = vmatprep.subr.bf16.mxu0 0
    %1525 = vmatpush1.bf16.xpose.msra.mxu0 0
    %1526 = vmatprep.subr.bf16.mxu0 0
    %1527 = vmatpush1.bf16.xpose.msra.mxu0 0
    %1528 = vmatprep.subr.bf16.mxu0 0
    %1529 = vmatpush1.bf16.xpose.msra.mxu0 0
    %1530 = vmatprep.subr.bf16.mxu0 0
    %1531 = vmatpush1.bf16.xpose.msra.mxu0 0
    %1532 = vmatprep.subr.bf16.mxu0 0
    %1533 = vmatpush1.bf16.xpose.msra.mxu0 0
    %1534 = vmatprep.mubr.bf16.mxu0 0
    %1535 = vmatmul.mubr.bf16.gmra.mrb[0].mxu0 %v1497
    %v1536 = vpop.f32.mrb[0].mxu0
    %v1537 = vadd.f32 0.0, %v1536
    %v1538 = vpop.f32.mrb[0].mxu0
    %v1539 = vpop.f32.mrb[0].mxu0
    %v1540 = vpop.f32.mrb[0].mxu0
    %1541 = vdwg.mxu0
    %1542 = vrot.lane.b32.xlu0 %v1442, 112
    %v1543 = vpop.permute.xlu0 %1542
    %1544 = vrot.lane.b32.xlu0 %v1442, 80
    %v1545 = vpop.permute.xlu0 %1544
    %v1547 = vsel %vm246, %v1543, 0
    %v1550 = vsel %vm246, %v1545, 0
    %1552 = vmatprep.subr.bf16.mxu0 0
    %1553 = vmatpush1.bf16.xpose.msra.mxu0 %v1550
    %1554 = vmatprep.subr.bf16.mxu0 0
    %1555 = vmatpush1.bf16.xpose.msra.mxu0 0
    %1556 = vmatprep.subr.bf16.mxu0 0
    %1557 = vmatpush1.bf16.xpose.msra.mxu0 0
    %1558 = vmatprep.subr.bf16.mxu0 0
    %1559 = vmatpush1.bf16.xpose.msra.mxu0 0
    %1560 = vmatprep.subr.bf16.mxu0 0
    %1561 = vmatpush1.bf16.xpose.msra.mxu0 0
    %1562 = vmatprep.subr.bf16.mxu0 0
    %1563 = vmatpush1.bf16.xpose.msra.mxu0 0
    %1564 = vmatprep.subr.bf16.mxu0 0
    %1565 = vmatpush1.bf16.xpose.msra.mxu0 0
    %1566 = vmatprep.subr.bf16.mxu0 0
    %1567 = vmatpush1.bf16.xpose.msra.mxu0 0
    %1568 = vmatprep.subr.bf16.mxu0 0
    %1569 = vmatpush1.bf16.xpose.msra.mxu0 0
    %1570 = vmatprep.subr.bf16.mxu0 0
    %1571 = vmatpush1.bf16.xpose.msra.mxu0 0
    %1572 = vmatprep.subr.bf16.mxu0 0
    %1573 = vmatpush1.bf16.xpose.msra.mxu0 0
    %1574 = vmatprep.subr.bf16.mxu0 0
    %1575 = vmatpush1.bf16.xpose.msra.mxu0 0
    %1576 = vmatprep.subr.bf16.mxu0 0
    %1577 = vmatpush1.bf16.xpose.msra.mxu0 0
    %1578 = vmatprep.subr.bf16.mxu0 0
    %1579 = vmatpush1.bf16.xpose.msra.mxu0 0
    %1580 = vmatprep.subr.bf16.mxu0 0
    %1581 = vmatpush1.bf16.xpose.msra.mxu0 0
    %1582 = vmatprep.subr.bf16.mxu0 0
    %1583 = vmatpush1.bf16.xpose.msra.mxu0 0
    %1584 = vmatprep.mubr.bf16.mxu0 0
    %1585 = vmatmul.mubr.bf16.gmra.mrb[0].mxu0 %v1547
    %v1586 = vpop.f32.mrb[0].mxu0
    %v1587 = vadd.f32 0.0, %v1586
    %v1588 = vpop.f32.mrb[0].mxu0
    %v1589 = vpop.f32.mrb[0].mxu0
    %v1590 = vpop.f32.mrb[0].mxu0
    %1591 = vdwg.mxu0
    %1592 = vrot.lane.b32.xlu0 %v1442, 104
    %v1593 = vpop.permute.xlu0 %1592
    %1594 = vrot.lane.b32.xlu0 %v1442, 72
    %v1595 = vpop.permute.xlu0 %1594
    %v1597 = vsel %vm246, %v1593, 0
    %v1600 = vsel %vm246, %v1595, 0
    %1602 = vmatprep.subr.bf16.mxu0 0
    %1603 = vmatpush1.bf16.xpose.msra.mxu0 %v1600
    %1604 = vmatprep.subr.bf16.mxu0 0
    %1605 = vmatpush1.bf16.xpose.msra.mxu0 0
    %1606 = vmatprep.subr.bf16.mxu0 0
    %1607 = vmatpush1.bf16.xpose.msra.mxu0 0
    %1608 = vmatprep.subr.bf16.mxu0 0
    %1609 = vmatpush1.bf16.xpose.msra.mxu0 0
    %1610 = vmatprep.subr.bf16.mxu0 0
    %1611 = vmatpush1.bf16.xpose.msra.mxu0 0
    %1612 = vmatprep.subr.bf16.mxu0 0
    %1613 = vmatpush1.bf16.xpose.msra.mxu0 0
    %1614 = vmatprep.subr.bf16.mxu0 0
    %1615 = vmatpush1.bf16.xpose.msra.mxu0 0
    %1616 = vmatprep.subr.bf16.mxu0 0
    %1617 = vmatpush1.bf16.xpose.msra.mxu0 0
    %1618 = vmatprep.subr.bf16.mxu0 0
    %1619 = vmatpush1.bf16.xpose.msra.mxu0 0
    %1620 = vmatprep.subr.bf16.mxu0 0
    %1621 = vmatpush1.bf16.xpose.msra.mxu0 0
    %1622 = vmatprep.subr.bf16.mxu0 0
    %1623 = vmatpush1.bf16.xpose.msra.mxu0 0
    %1624 = vmatprep.subr.bf16.mxu0 0
    %1625 = vmatpush1.bf16.xpose.msra.mxu0 0
    %1626 = vmatprep.subr.bf16.mxu0 0
    %1627 = vmatpush1.bf16.xpose.msra.mxu0 0
    %1628 = vmatprep.subr.bf16.mxu0 0
    %1629 = vmatpush1.bf16.xpose.msra.mxu0 0
    %1630 = vmatprep.subr.bf16.mxu0 0
    %1631 = vmatpush1.bf16.xpose.msra.mxu0 0
    %1632 = vmatprep.subr.bf16.mxu0 0
    %1633 = vmatpush1.bf16.xpose.msra.mxu0 0
    %1634 = vmatprep.mubr.bf16.mxu0 0
    %1635 = vmatmul.mubr.bf16.gmra.mrb[0].mxu0 %v1597
    %v1636 = vpop.f32.mrb[0].mxu0
    %v1637 = vadd.f32 0.0, %v1636
    %v1638 = vpop.f32.mrb[0].mxu0
    %v1639 = vpop.f32.mrb[0].mxu0
    %v1640 = vpop.f32.mrb[0].mxu0
    %1641 = vdwg.mxu0
    %v1642 = vpack.c.bf16 %v1439, %v1439
    %1644 = vrot.lane.b32.xlu0 %v1642, 96
    %v1645 = vpop.permute.xlu0 %1644
    %v1647 = vsel %vm246, %v1642, 0
    %v1650 = vsel %vm246, %v1645, 0
    %1652 = vmatprep.subr.bf16.mxu0 0
    %1653 = vmatpush1.bf16.xpose.msra.mxu0 %v1650
    %1654 = vmatprep.subr.bf16.mxu0 0
    %1655 = vmatpush1.bf16.xpose.msra.mxu0 0
    %1656 = vmatprep.subr.bf16.mxu0 0
    %1657 = vmatpush1.bf16.xpose.msra.mxu0 0
    %1658 = vmatprep.subr.bf16.mxu0 0
    %1659 = vmatpush1.bf16.xpose.msra.mxu0 0
    %1660 = vmatprep.subr.bf16.mxu0 0
    %1661 = vmatpush1.bf16.xpose.msra.mxu0 0
    %1662 = vmatprep.subr.bf16.mxu0 0
    %1663 = vmatpush1.bf16.xpose.msra.mxu0 0
    %1664 = vmatprep.subr.bf16.mxu0 0
    %1665 = vmatpush1.bf16.xpose.msra.mxu0 0
    %1666 = vmatprep.subr.bf16.mxu0 0
    %1667 = vmatpush1.bf16.xpose.msra.mxu0 0
    %1668 = vmatprep.subr.bf16.mxu0 0
    %1669 = vmatpush1.bf16.xpose.msra.mxu0 0
    %1670 = vmatprep.subr.bf16.mxu0 0
    %1671 = vmatpush1.bf16.xpose.msra.mxu0 0
    %1672 = vmatprep.subr.bf16.mxu0 0
    %1673 = vmatpush1.bf16.xpose.msra.mxu0 0
    %1674 = vmatprep.subr.bf16.mxu0 0
    %1675 = vmatpush1.bf16.xpose.msra.mxu0 0
    %1676 = vmatprep.subr.bf16.mxu0 0
    %1677 = vmatpush1.bf16.xpose.msra.mxu0 0
    %1678 = vmatprep.subr.bf16.mxu0 0
    %1679 = vmatpush1.bf16.xpose.msra.mxu0 0
    %1680 = vmatprep.subr.bf16.mxu0 0
    %1681 = vmatpush1.bf16.xpose.msra.mxu0 0
    %1682 = vmatprep.subr.bf16.mxu0 0
    %1683 = vmatpush1.bf16.xpose.msra.mxu0 0
    %1684 = vmatprep.mubr.bf16.mxu0 0
    %1685 = vmatmul.mubr.bf16.gmra.mrb[0].mxu0 %v1647
    %v1686 = vpop.f32.mrb[0].mxu0
    %v1687 = vadd.f32 0.0, %v1686
    %v1688 = vpop.f32.mrb[0].mxu0
    %v1689 = vpop.f32.mrb[0].mxu0
    %v1690 = vpop.f32.mrb[0].mxu0
    %1691 = vdwg.mxu0
    %1692 = vrot.lane.b32.xlu0 %v1642, 120
    %v1693 = vpop.permute.xlu0 %1692
    %1694 = vrot.lane.b32.xlu0 %v1642, 88
    %v1695 = vpop.permute.xlu0 %1694
    %v1697 = vsel %vm246, %v1693, 0
    %v1700 = vsel %vm246, %v1695, 0
    %1702 = vmatprep.subr.bf16.mxu0 0
    %1703 = vmatpush1.bf16.xpose.msra.mxu0 %v1700
    %1704 = vmatprep.subr.bf16.mxu0 0
    %1705 = vmatpush1.bf16.xpose.msra.mxu0 0
    %1706 = vmatprep.subr.bf16.mxu0 0
    %1707 = vmatpush1.bf16.xpose.msra.mxu0 0
    %1708 = vmatprep.subr.bf16.mxu0 0
    %1709 = vmatpush1.bf16.xpose.msra.mxu0 0
    %1710 = vmatprep.subr.bf16.mxu0 0
    %1711 = vmatpush1.bf16.xpose.msra.mxu0 0
    %1712 = vmatprep.subr.bf16.mxu0 0
    %1713 = vmatpush1.bf16.xpose.msra.mxu0 0
    %1714 = vmatprep.subr.bf16.mxu0 0
    %1715 = vmatpush1.bf16.xpose.msra.mxu0 0
    %1716 = vmatprep.subr.bf16.mxu0 0
    %1717 = vmatpush1.bf16.xpose.msra.mxu0 0
    %1718 = vmatprep.subr.bf16.mxu0 0
    %1719 = vmatpush1.bf16.xpose.msra.mxu0 0
    %1720 = vmatprep.subr.bf16.mxu0 0
    %1721 = vmatpush1.bf16.xpose.msra.mxu0 0
    %1722 = vmatprep.subr.bf16.mxu0 0
    %1723 = vmatpush1.bf16.xpose.msra.mxu0 0
    %1724 = vmatprep.subr.bf16.mxu0 0
    %1725 = vmatpush1.bf16.xpose.msra.mxu0 0
    %1726 = vmatprep.subr.bf16.mxu0 0
    %1727 = vmatpush1.bf16.xpose.msra.mxu0 0
    %1728 = vmatprep.subr.bf16.mxu0 0
    %1729 = vmatpush1.bf16.xpose.msra.mxu0 0
    %1730 = vmatprep.subr.bf16.mxu0 0
    %1731 = vmatpush1.bf16.xpose.msra.mxu0 0
    %1732 = vmatprep.subr.bf16.mxu0 0
    %1733 = vmatpush1.bf16.xpose.msra.mxu0 0
    %1734 = vmatprep.mubr.bf16.mxu0 0
    %1735 = vmatmul.mubr.bf16.gmra.mrb[0].mxu0 %v1697
    %v1736 = vpop.f32.mrb[0].mxu0
    %v1737 = vadd.f32 0.0, %v1736
    %v1738 = vpop.f32.mrb[0].mxu0
    %v1739 = vpop.f32.mrb[0].mxu0
    %v1740 = vpop.f32.mrb[0].mxu0
    %1741 = vdwg.mxu0
    %1742 = vrot.lane.b32.xlu0 %v1642, 112
    %v1743 = vpop.permute.xlu0 %1742
    %1744 = vrot.lane.b32.xlu0 %v1642, 80
    %v1745 = vpop.permute.xlu0 %1744
    %v1747 = vsel %vm246, %v1743, 0
    %v1750 = vsel %vm246, %v1745, 0
    %1752 = vmatprep.subr.bf16.mxu0 0
    %1753 = vmatpush1.bf16.xpose.msra.mxu0 %v1750
    %1754 = vmatprep.subr.bf16.mxu0 0
    %1755 = vmatpush1.bf16.xpose.msra.mxu0 0
    %1756 = vmatprep.subr.bf16.mxu0 0
    %1757 = vmatpush1.bf16.xpose.msra.mxu0 0
    %1758 = vmatprep.subr.bf16.mxu0 0
    %1759 = vmatpush1.bf16.xpose.msra.mxu0 0
    %1760 = vmatprep.subr.bf16.mxu0 0
    %1761 = vmatpush1.bf16.xpose.msra.mxu0 0
    %1762 = vmatprep.subr.bf16.mxu0 0
    %1763 = vmatpush1.bf16.xpose.msra.mxu0 0
    %1764 = vmatprep.subr.bf16.mxu0 0
    %1765 = vmatpush1.bf16.xpose.msra.mxu0 0
    %1766 = vmatprep.subr.bf16.mxu0 0
    %1767 = vmatpush1.bf16.xpose.msra.mxu0 0
    %1768 = vmatprep.subr.bf16.mxu0 0
    %1769 = vmatpush1.bf16.xpose.msra.mxu0 0
    %1770 = vmatprep.subr.bf16.mxu0 0
    %1771 = vmatpush1.bf16.xpose.msra.mxu0 0
    %1772 = vmatprep.subr.bf16.mxu0 0
    %1773 = vmatpush1.bf16.xpose.msra.mxu0 0
    %1774 = vmatprep.subr.bf16.mxu0 0
    %1775 = vmatpush1.bf16.xpose.msra.mxu0 0
    %1776 = vmatprep.subr.bf16.mxu0 0
    %1777 = vmatpush1.bf16.xpose.msra.mxu0 0
    %1778 = vmatprep.subr.bf16.mxu0 0
    %1779 = vmatpush1.bf16.xpose.msra.mxu0 0
    %1780 = vmatprep.subr.bf16.mxu0 0
    %1781 = vmatpush1.bf16.xpose.msra.mxu0 0
    %1782 = vmatprep.subr.bf16.mxu0 0
    %1783 = vmatpush1.bf16.xpose.msra.mxu0 0
    %1784 = vmatprep.mubr.bf16.mxu0 0
    %1785 = vmatmul.mubr.bf16.gmra.mrb[0].mxu0 %v1747
    %v1786 = vpop.f32.mrb[0].mxu0
    %v1787 = vadd.f32 0.0, %v1786
    %v1788 = vpop.f32.mrb[0].mxu0
    %v1789 = vpop.f32.mrb[0].mxu0
    %v1790 = vpop.f32.mrb[0].mxu0
    %1791 = vdwg.mxu0
    %1792 = vrot.lane.b32.xlu0 %v1642, 104
    %v1793 = vpop.permute.xlu0 %1792
    %1794 = vrot.lane.b32.xlu0 %v1642, 72
    %v1795 = vpop.permute.xlu0 %1794
    %v1797 = vsel %vm246, %v1793, 0
    %v1800 = vsel %vm246, %v1795, 0
    %1802 = vmatprep.subr.bf16.mxu0 0
    %1803 = vmatpush1.bf16.xpose.msra.mxu0 %v1800
    %1804 = vmatprep.subr.bf16.mxu0 0
    %1805 = vmatpush1.bf16.xpose.msra.mxu0 0
    %1806 = vmatprep.subr.bf16.mxu0 0
    %1807 = vmatpush1.bf16.xpose.msra.mxu0 0
    %1808 = vmatprep.subr.bf16.mxu0 0
    %1809 = vmatpush1.bf16.xpose.msra.mxu0 0
    %1810 = vmatprep.subr.bf16.mxu0 0
    %1811 = vmatpush1.bf16.xpose.msra.mxu0 0
    %1812 = vmatprep.subr.bf16.mxu0 0
    %1813 = vmatpush1.bf16.xpose.msra.mxu0 0
    %1814 = vmatprep.subr.bf16.mxu0 0
    %1815 = vmatpush1.bf16.xpose.msra.mxu0 0
    %1816 = vmatprep.subr.bf16.mxu0 0
    %1817 = vmatpush1.bf16.xpose.msra.mxu0 0
    %1818 = vmatprep.subr.bf16.mxu0 0
    %1819 = vmatpush1.bf16.xpose.msra.mxu0 0
    %1820 = vmatprep.subr.bf16.mxu0 0
    %1821 = vmatpush1.bf16.xpose.msra.mxu0 0
    %1822 = vmatprep.subr.bf16.mxu0 0
    %1823 = vmatpush1.bf16.xpose.msra.mxu0 0
    %1824 = vmatprep.subr.bf16.mxu0 0
    %1825 = vmatpush1.bf16.xpose.msra.mxu0 0
    %1826 = vmatprep.subr.bf16.mxu0 0
    %1827 = vmatpush1.bf16.xpose.msra.mxu0 0
    %1828 = vmatprep.subr.bf16.mxu0 0
    %1829 = vmatpush1.bf16.xpose.msra.mxu0 0
    %1830 = vmatprep.subr.bf16.mxu0 0
    %1831 = vmatpush1.bf16.xpose.msra.mxu0 0
    %1832 = vmatprep.subr.bf16.mxu0 0
    %1833 = vmatpush1.bf16.xpose.msra.mxu0 0
    %1834 = vmatprep.mubr.bf16.mxu0 0
    %1835 = vmatmul.mubr.bf16.gmra.mrb[0].mxu0 %v1797
    %v1836 = vpop.f32.mrb[0].mxu0
    %v1837 = vadd.f32 0.0, %v1836
    %v1838 = vpop.f32.mrb[0].mxu0
    %v1839 = vpop.f32.mrb[0].mxu0
    %v1840 = vpop.f32.mrb[0].mxu0
    %1841 = vdwg.mxu0
    %v1842 = vadd.f32 %v1487, %v150
    %v1843 = vadd.f32 %v1537, %v150
    %v1844 = vadd.f32 %v1587, %v150
    %v1845 = vadd.f32 %v1637, %v150
    %v1846 = vadd.f32 %v1687, %v154
    %v1847 = vadd.f32 %v1737, %v154
    %v1848 = vadd.f32 %v1787, %v154
    %v1849 = vadd.f32 %v1837, %v154
    %v1850 = vsel %vm246, %v1842, -inf
    %1851 = vmax.xlane.f32.xlu0 %v1850
    %v1852 = vpop.xlane.xlu0 %1851
    %v1853 = vsel %vm246, %v1843, -inf
    %1854 = vmax.xlane.f32.xlu0 %v1853
    %v1855 = vpop.xlane.xlu0 %1854
    %v1856 = vsel %vm246, %v1844, -inf
    %1857 = vmax.xlane.f32.xlu0 %v1856
    %v1858 = vpop.xlane.xlu0 %1857
    %v1859 = vsel %vm246, %v1845, -inf
    %1860 = vmax.xlane.f32.xlu0 %v1859
    %v1861 = vpop.xlane.xlu0 %1860
    %v1862 = vsel %vm246, %v1846, -inf
    %1863 = vmax.xlane.f32.xlu0 %v1862
    %v1864 = vpop.xlane.xlu0 %1863
    %v1865 = vsel %vm246, %v1847, -inf
    %1866 = vmax.xlane.f32.xlu0 %v1865
    %v1867 = vpop.xlane.xlu0 %1866
    %v1868 = vsel %vm246, %v1848, -inf
    %1869 = vmax.xlane.f32.xlu0 %v1868
    %v1870 = vpop.xlane.xlu0 %1869
    %v1871 = vsel %vm246, %v1849, -inf
    %1872 = vmax.xlane.f32.xlu0 %v1871
    %v1873 = vpop.xlane.xlu0 %1872
    %v1874 = vsub.f32 %v1842, %v1852
    %v1875 = vsub.f32 %v1843, %v1855
    %v1876 = vsub.f32 %v1844, %v1858
    %v1877 = vsub.f32 %v1845, %v1861
    %v1878 = vsub.f32 %v1846, %v1864
    %v1879 = vsub.f32 %v1847, %v1867
    %v1880 = vsub.f32 %v1848, %v1870
    %v1881 = vsub.f32 %v1849, %v1873
    %v1882 = vmul.f32 %v1874, 1.442695
    %v1883 = vpow.pop %v1882
    %v1884 = vmul.f32 %v1875, 1.442695
    %v1885 = vpow.pop %v1884
    %v1886 = vmul.f32 %v1876, 1.442695
    %v1887 = vpow.pop %v1886
    %v1888 = vmul.f32 %v1877, 1.442695
    %v1889 = vpow.pop %v1888
    %v1890 = vmul.f32 %v1878, 1.442695
    %v1891 = vpow.pop %v1890
    %v1892 = vmul.f32 %v1879, 1.442695
    %v1893 = vpow.pop %v1892
    %v1894 = vmul.f32 %v1880, 1.442695
    %v1895 = vpow.pop %v1894
    %v1896 = vmul.f32 %v1881, 1.442695
    %v1897 = vpow.pop %v1896
    %v1898 = vsel %vm246, %v1883, 0.0
    %1899 = vadd.xlane.f32.xlu0 %v1898
    %v1900 = vpop.xlane.xlu0 %1899
    %v1901 = vsel %vm246, %v1885, 0.0
    %1902 = vadd.xlane.f32.xlu0 %v1901
    %v1903 = vpop.xlane.xlu0 %1902
    %v1904 = vsel %vm246, %v1887, 0.0
    %1905 = vadd.xlane.f32.xlu0 %v1904
    %v1906 = vpop.xlane.xlu0 %1905
    %v1907 = vsel %vm246, %v1889, 0.0
    %1908 = vadd.xlane.f32.xlu0 %v1907
    %v1909 = vpop.xlane.xlu0 %1908
    %v1910 = vsel %vm246, %v1891, 0.0
    %1911 = vadd.xlane.f32.xlu0 %v1910
    %v1912 = vpop.xlane.xlu0 %1911
    %v1913 = vsel %vm246, %v1893, 0.0
    %1914 = vadd.xlane.f32.xlu0 %v1913
    %v1915 = vpop.xlane.xlu0 %1914
    %v1916 = vsel %vm246, %v1895, 0.0
    %1917 = vadd.xlane.f32.xlu0 %v1916
    %v1918 = vpop.xlane.xlu0 %1917
    %v1919 = vsel %vm246, %v1897, 0.0
    %1920 = vadd.xlane.f32.xlu0 %v1919
    %v1921 = vpop.xlane.xlu0 %1920
    %v1922 = vrcp.pop %v1900
    %v1923 = vmul.f32 %v1883, %v1922
    %v1924 = vrcp.pop %v1903
    %v1925 = vmul.f32 %v1885, %v1924
    %v1926 = vrcp.pop %v1906
    %v1927 = vmul.f32 %v1887, %v1926
    %v1928 = vrcp.pop %v1909
    %v1929 = vmul.f32 %v1889, %v1928
    %v1930 = vrcp.pop %v1912
    %v1931 = vmul.f32 %v1891, %v1930
    %v1932 = vrcp.pop %v1915
    %v1933 = vmul.f32 %v1893, %v1932
    %v1934 = vrcp.pop %v1918
    %v1935 = vmul.f32 %v1895, %v1934
    %v1936 = vrcp.pop %v1921
    %v1937 = vmul.f32 %v1897, %v1936
    %v1938 = vpack.c.bf16 %v1925, %v1923
    %v1939 = vpack.c.bf16 %v1929, %v1927
    %v1940 = vpack.c.bf16 %v1933, %v1931
    %v1941 = vpack.c.bf16 %v1937, %v1935
    %1942 = vrot.lane.b32.xlu0 %v1442, 64
    %v1943 = vpop.permute.xlu0 %1942
    %v1945 = vsel %vm246, %v1938, 0
    %v1948 = vsel %vm748, %v1943, 0
    %1950 = vmatprep.subr.bf16.mxu0 0
    %1951 = vmatpush1.bf16.msra.mxu0 %v1948
    %1952 = vmatprep.subr.bf16.mxu0 0
    %1953 = vmatpush1.bf16.msra.mxu0 0
    %1954 = vmatprep.subr.bf16.mxu0 0
    %1955 = vmatpush1.bf16.msra.mxu0 0
    %1956 = vmatprep.subr.bf16.mxu0 0
    %1957 = vmatpush1.bf16.msra.mxu0 0
    %1958 = vmatprep.subr.bf16.mxu0 0
    %1959 = vmatpush1.bf16.msra.mxu0 0
    %1960 = vmatprep.subr.bf16.mxu0 0
    %1961 = vmatpush1.bf16.msra.mxu0 0
    %1962 = vmatprep.subr.bf16.mxu0 0
    %1963 = vmatpush1.bf16.msra.mxu0 0
    %1964 = vmatprep.subr.bf16.mxu0 0
    %1965 = vmatpush1.bf16.msra.mxu0 0
    %1966 = vmatprep.subr.bf16.mxu0 0
    %1967 = vmatpush1.bf16.msra.mxu0 0
    %1968 = vmatprep.subr.bf16.mxu0 0
    %1969 = vmatpush1.bf16.msra.mxu0 0
    %1970 = vmatprep.subr.bf16.mxu0 0
    %1971 = vmatpush1.bf16.msra.mxu0 0
    %1972 = vmatprep.subr.bf16.mxu0 0
    %1973 = vmatpush1.bf16.msra.mxu0 0
    %1974 = vmatprep.subr.bf16.mxu0 0
    %1975 = vmatpush1.bf16.msra.mxu0 0
    %1976 = vmatprep.subr.bf16.mxu0 0
    %1977 = vmatpush1.bf16.msra.mxu0 0
    %1978 = vmatprep.subr.bf16.mxu0 0
    %1979 = vmatpush1.bf16.msra.mxu0 0
    %1980 = vmatprep.subr.bf16.mxu0 0
    %1981 = vmatpush1.bf16.msra.mxu0 0
    %1982 = vmatprep.mubr.bf16.mxu0 0
    %1983 = vmatmul.mubr.bf16.gmra.mrb[0].mxu0 %v1945
    %v1984 = vpop.f32.mrb[0].mxu0
    %v1985 = vadd.f32 0.0, %v1984
    %v1986 = vpop.f32.mrb[0].mxu0
    %v1987 = vpop.f32.mrb[0].mxu0
    %v1988 = vpop.f32.mrb[0].mxu0
    %1989 = vdwg.mxu0
    %v1991 = vrot.slane %v1938, 4
    %1992 = vrot.lane.b32.xlu0 %v1442, 56
    %v1993 = vpop.permute.xlu0 %1992
    %v1995 = vsel %vm246, %v1991, 0
    %v1998 = vsel %vm748, %v1993, 0
    %2000 = vmatprep.subr.bf16.mxu0 0
    %2001 = vmatpush1.bf16.msra.mxu0 %v1998
    %2002 = vmatprep.subr.bf16.mxu0 0
    %2003 = vmatpush1.bf16.msra.mxu0 0
    %2004 = vmatprep.subr.bf16.mxu0 0
    %2005 = vmatpush1.bf16.msra.mxu0 0
    %2006 = vmatprep.subr.bf16.mxu0 0
    %2007 = vmatpush1.bf16.msra.mxu0 0
    %2008 = vmatprep.subr.bf16.mxu0 0
    %2009 = vmatpush1.bf16.msra.mxu0 0
    %2010 = vmatprep.subr.bf16.mxu0 0
    %2011 = vmatpush1.bf16.msra.mxu0 0
    %2012 = vmatprep.subr.bf16.mxu0 0
    %2013 = vmatpush1.bf16.msra.mxu0 0
    %2014 = vmatprep.subr.bf16.mxu0 0
    %2015 = vmatpush1.bf16.msra.mxu0 0
    %2016 = vmatprep.subr.bf16.mxu0 0
    %2017 = vmatpush1.bf16.msra.mxu0 0
    %2018 = vmatprep.subr.bf16.mxu0 0
    %2019 = vmatpush1.bf16.msra.mxu0 0
    %2020 = vmatprep.subr.bf16.mxu0 0
    %2021 = vmatpush1.bf16.msra.mxu0 0
    %2022 = vmatprep.subr.bf16.mxu0 0
    %2023 = vmatpush1.bf16.msra.mxu0 0
    %2024 = vmatprep.subr.bf16.mxu0 0
    %2025 = vmatpush1.bf16.msra.mxu0 0
    %2026 = vmatprep.subr.bf16.mxu0 0
    %2027 = vmatpush1.bf16.msra.mxu0 0
    %2028 = vmatprep.subr.bf16.mxu0 0
    %2029 = vmatpush1.bf16.msra.mxu0 0
    %2030 = vmatprep.subr.bf16.mxu0 0
    %2031 = vmatpush1.bf16.msra.mxu0 0
    %2032 = vmatprep.mubr.bf16.mxu0 0
    %2033 = vmatmul.mubr.bf16.gmra.mrb[0].mxu0 %v1995
    %v2034 = vpop.f32.mrb[0].mxu0
    %v2035 = vadd.f32 0.0, %v2034
    %v2036 = vpop.f32.mrb[0].mxu0
    %v2037 = vpop.f32.mrb[0].mxu0
    %v2038 = vpop.f32.mrb[0].mxu0
    %2039 = vdwg.mxu0
    %2040 = vrot.lane.b32.xlu0 %v1442, 48
    %v2041 = vpop.permute.xlu0 %2040
    %v2043 = vsel %vm246, %v1939, 0
    %v2046 = vsel %vm748, %v2041, 0
    %2048 = vmatprep.subr.bf16.mxu0 0
    %2049 = vmatpush1.bf16.msra.mxu0 %v2046
    %2050 = vmatprep.subr.bf16.mxu0 0
    %2051 = vmatpush1.bf16.msra.mxu0 0
    %2052 = vmatprep.subr.bf16.mxu0 0
    %2053 = vmatpush1.bf16.msra.mxu0 0
    %2054 = vmatprep.subr.bf16.mxu0 0
    %2055 = vmatpush1.bf16.msra.mxu0 0
    %2056 = vmatprep.subr.bf16.mxu0 0
    %2057 = vmatpush1.bf16.msra.mxu0 0
    %2058 = vmatprep.subr.bf16.mxu0 0
    %2059 = vmatpush1.bf16.msra.mxu0 0
    %2060 = vmatprep.subr.bf16.mxu0 0
    %2061 = vmatpush1.bf16.msra.mxu0 0
    %2062 = vmatprep.subr.bf16.mxu0 0
    %2063 = vmatpush1.bf16.msra.mxu0 0
    %2064 = vmatprep.subr.bf16.mxu0 0
    %2065 = vmatpush1.bf16.msra.mxu0 0
    %2066 = vmatprep.subr.bf16.mxu0 0
    %2067 = vmatpush1.bf16.msra.mxu0 0
    %2068 = vmatprep.subr.bf16.mxu0 0
    %2069 = vmatpush1.bf16.msra.mxu0 0
    %2070 = vmatprep.subr.bf16.mxu0 0
    %2071 = vmatpush1.bf16.msra.mxu0 0
    %2072 = vmatprep.subr.bf16.mxu0 0
    %2073 = vmatpush1.bf16.msra.mxu0 0
    %2074 = vmatprep.subr.bf16.mxu0 0
    %2075 = vmatpush1.bf16.msra.mxu0 0
    %2076 = vmatprep.subr.bf16.mxu0 0
    %2077 = vmatpush1.bf16.msra.mxu0 0
    %2078 = vmatprep.subr.bf16.mxu0 0
    %2079 = vmatpush1.bf16.msra.mxu0 0
    %2080 = vmatprep.mubr.bf16.mxu0 0
    %2081 = vmatmul.mubr.bf16.gmra.mrb[0].mxu0 %v2043
    %v2082 = vpop.f32.mrb[0].mxu0
    %v2083 = vadd.f32 0.0, %v2082
    %v2084 = vpop.f32.mrb[0].mxu0
    %v2085 = vpop.f32.mrb[0].mxu0
    %v2086 = vpop.f32.mrb[0].mxu0
    %2087 = vdwg.mxu0
    %v2089 = vrot.slane %v1939, 4
    %2090 = vrot.lane.b32.xlu0 %v1442, 40
    %v2091 = vpop.permute.xlu0 %2090
    %v2093 = vsel %vm246, %v2089, 0
    %v2096 = vsel %vm748, %v2091, 0
    %2098 = vmatprep.subr.bf16.mxu0 0
    %2099 = vmatpush1.bf16.msra.mxu0 %v2096
    %2100 = vmatprep.subr.bf16.mxu0 0
    %2101 = vmatpush1.bf16.msra.mxu0 0
    %2102 = vmatprep.subr.bf16.mxu0 0
    %2103 = vmatpush1.bf16.msra.mxu0 0
    %2104 = vmatprep.subr.bf16.mxu0 0
    %2105 = vmatpush1.bf16.msra.mxu0 0
    %2106 = vmatprep.subr.bf16.mxu0 0
    %2107 = vmatpush1.bf16.msra.mxu0 0
    %2108 = vmatprep.subr.bf16.mxu0 0
    %2109 = vmatpush1.bf16.msra.mxu0 0
    %2110 = vmatprep.subr.bf16.mxu0 0
    %2111 = vmatpush1.bf16.msra.mxu0 0
    %2112 = vmatprep.subr.bf16.mxu0 0
    %2113 = vmatpush1.bf16.msra.mxu0 0
    %2114 = vmatprep.subr.bf16.mxu0 0
    %2115 = vmatpush1.bf16.msra.mxu0 0
    %2116 = vmatprep.subr.bf16.mxu0 0
    %2117 = vmatpush1.bf16.msra.mxu0 0
    %2118 = vmatprep.subr.bf16.mxu0 0
    %2119 = vmatpush1.bf16.msra.mxu0 0
    %2120 = vmatprep.subr.bf16.mxu0 0
    %2121 = vmatpush1.bf16.msra.mxu0 0
    %2122 = vmatprep.subr.bf16.mxu0 0
    %2123 = vmatpush1.bf16.msra.mxu0 0
    %2124 = vmatprep.subr.bf16.mxu0 0
    %2125 = vmatpush1.bf16.msra.mxu0 0
    %2126 = vmatprep.subr.bf16.mxu0 0
    %2127 = vmatpush1.bf16.msra.mxu0 0
    %2128 = vmatprep.subr.bf16.mxu0 0
    %2129 = vmatpush1.bf16.msra.mxu0 0
    %2130 = vmatprep.mubr.bf16.mxu0 0
    %2131 = vmatmul.mubr.bf16.gmra.mrb[0].mxu0 %v2093
    %v2132 = vpop.f32.mrb[0].mxu0
    %v2133 = vadd.f32 0.0, %v2132
    %v2134 = vpop.f32.mrb[0].mxu0
    %v2135 = vpop.f32.mrb[0].mxu0
    %v2136 = vpop.f32.mrb[0].mxu0
    %2137 = vdwg.mxu0
    %2139 = vrot.lane.b32.xlu0 %v2035, 8
    %v2140 = vpop.permute.xlu0 %2139
    %2143 = vrot.lane.b32.xlu0 %v2083, 16
    %v2144 = vpop.permute.xlu0 %2143
    %2147 = vrot.lane.b32.xlu0 %v2133, 24
    %v2148 = vpop.permute.xlu0 %2147
    %v2150 = vsel %vm246, %v1985, %v2140
    %v2151 = vsel %vm953, %v2150, %v2144
    %v2152 = vsel %vm955, %v2151, %v2148
    %2153 = vrot.lane.b32.xlu0 %v1642, 64
    %v2154 = vpop.permute.xlu0 %2153
    %v2156 = vsel %vm246, %v1940, 0
    %v2159 = vsel %vm748, %v2154, 0
    %2161 = vmatprep.subr.bf16.mxu0 0
    %2162 = vmatpush1.bf16.msra.mxu0 %v2159
    %2163 = vmatprep.subr.bf16.mxu0 0
    %2164 = vmatpush1.bf16.msra.mxu0 0
    %2165 = vmatprep.subr.bf16.mxu0 0
    %2166 = vmatpush1.bf16.msra.mxu0 0
    %2167 = vmatprep.subr.bf16.mxu0 0
    %2168 = vmatpush1.bf16.msra.mxu0 0
    %2169 = vmatprep.subr.bf16.mxu0 0
    %2170 = vmatpush1.bf16.msra.mxu0 0
    %2171 = vmatprep.subr.bf16.mxu0 0
    %2172 = vmatpush1.bf16.msra.mxu0 0
    %2173 = vmatprep.subr.bf16.mxu0 0
    %2174 = vmatpush1.bf16.msra.mxu0 0
    %2175 = vmatprep.subr.bf16.mxu0 0
    %2176 = vmatpush1.bf16.msra.mxu0 0
    %2177 = vmatprep.subr.bf16.mxu0 0
    %2178 = vmatpush1.bf16.msra.mxu0 0
    %2179 = vmatprep.subr.bf16.mxu0 0
    %2180 = vmatpush1.bf16.msra.mxu0 0
    %2181 = vmatprep.subr.bf16.mxu0 0
    %2182 = vmatpush1.bf16.msra.mxu0 0
    %2183 = vmatprep.subr.bf16.mxu0 0
    %2184 = vmatpush1.bf16.msra.mxu0 0
    %2185 = vmatprep.subr.bf16.mxu0 0
    %2186 = vmatpush1.bf16.msra.mxu0 0
    %2187 = vmatprep.subr.bf16.mxu0 0
    %2188 = vmatpush1.bf16.msra.mxu0 0
    %2189 = vmatprep.subr.bf16.mxu0 0
    %2190 = vmatpush1.bf16.msra.mxu0 0
    %2191 = vmatprep.subr.bf16.mxu0 0
    %2192 = vmatpush1.bf16.msra.mxu0 0
    %2193 = vmatprep.mubr.bf16.mxu0 0
    %2194 = vmatmul.mubr.bf16.gmra.mrb[0].mxu0 %v2156
    %v2195 = vpop.f32.mrb[0].mxu0
    %v2196 = vadd.f32 0.0, %v2195
    %v2197 = vpop.f32.mrb[0].mxu0
    %v2198 = vpop.f32.mrb[0].mxu0
    %v2199 = vpop.f32.mrb[0].mxu0
    %2200 = vdwg.mxu0
    %v2202 = vrot.slane %v1940, 4
    %2203 = vrot.lane.b32.xlu0 %v1642, 56
    %v2204 = vpop.permute.xlu0 %2203
    %v2206 = vsel %vm246, %v2202, 0
    %v2209 = vsel %vm748, %v2204, 0
    %2211 = vmatprep.subr.bf16.mxu0 0
    %2212 = vmatpush1.bf16.msra.mxu0 %v2209
    %2213 = vmatprep.subr.bf16.mxu0 0
    %2214 = vmatpush1.bf16.msra.mxu0 0
    %2215 = vmatprep.subr.bf16.mxu0 0
    %2216 = vmatpush1.bf16.msra.mxu0 0
    %2217 = vmatprep.subr.bf16.mxu0 0
    %2218 = vmatpush1.bf16.msra.mxu0 0
    %2219 = vmatprep.subr.bf16.mxu0 0
    %2220 = vmatpush1.bf16.msra.mxu0 0
    %2221 = vmatprep.subr.bf16.mxu0 0
    %2222 = vmatpush1.bf16.msra.mxu0 0
    %2223 = vmatprep.subr.bf16.mxu0 0
    %2224 = vmatpush1.bf16.msra.mxu0 0
    %2225 = vmatprep.subr.bf16.mxu0 0
    %2226 = vmatpush1.bf16.msra.mxu0 0
    %2227 = vmatprep.subr.bf16.mxu0 0
    %2228 = vmatpush1.bf16.msra.mxu0 0
    %2229 = vmatprep.subr.bf16.mxu0 0
    %2230 = vmatpush1.bf16.msra.mxu0 0
    %2231 = vmatprep.subr.bf16.mxu0 0
    %2232 = vmatpush1.bf16.msra.mxu0 0
    %2233 = vmatprep.subr.bf16.mxu0 0
    %2234 = vmatpush1.bf16.msra.mxu0 0
    %2235 = vmatprep.subr.bf16.mxu0 0
    %2236 = vmatpush1.bf16.msra.mxu0 0
    %2237 = vmatprep.subr.bf16.mxu0 0
    %2238 = vmatpush1.bf16.msra.mxu0 0
    %2239 = vmatprep.subr.bf16.mxu0 0
    %2240 = vmatpush1.bf16.msra.mxu0 0
    %2241 = vmatprep.subr.bf16.mxu0 0
    %2242 = vmatpush1.bf16.msra.mxu0 0
    %2243 = vmatprep.mubr.bf16.mxu0 0
    %2244 = vmatmul.mubr.bf16.gmra.mrb[0].mxu0 %v2206
    %v2245 = vpop.f32.mrb[0].mxu0
    %v2246 = vadd.f32 0.0, %v2245
    %v2247 = vpop.f32.mrb[0].mxu0
    %v2248 = vpop.f32.mrb[0].mxu0
    %v2249 = vpop.f32.mrb[0].mxu0
    %2250 = vdwg.mxu0
    %2251 = vrot.lane.b32.xlu0 %v1642, 48
    %v2252 = vpop.permute.xlu0 %2251
    %v2254 = vsel %vm246, %v1941, 0
    %v2257 = vsel %vm748, %v2252, 0
    %2259 = vmatprep.subr.bf16.mxu0 0
    %2260 = vmatpush1.bf16.msra.mxu0 %v2257
    %2261 = vmatprep.subr.bf16.mxu0 0
    %2262 = vmatpush1.bf16.msra.mxu0 0
    %2263 = vmatprep.subr.bf16.mxu0 0
    %2264 = vmatpush1.bf16.msra.mxu0 0
    %2265 = vmatprep.subr.bf16.mxu0 0
    %2266 = vmatpush1.bf16.msra.mxu0 0
    %2267 = vmatprep.subr.bf16.mxu0 0
    %2268 = vmatpush1.bf16.msra.mxu0 0
    %2269 = vmatprep.subr.bf16.mxu0 0
    %2270 = vmatpush1.bf16.msra.mxu0 0
    %2271 = vmatprep.subr.bf16.mxu0 0
    %2272 = vmatpush1.bf16.msra.mxu0 0
    %2273 = vmatprep.subr.bf16.mxu0 0
    %2274 = vmatpush1.bf16.msra.mxu0 0
    %2275 = vmatprep.subr.bf16.mxu0 0
    %2276 = vmatpush1.bf16.msra.mxu0 0
    %2277 = vmatprep.subr.bf16.mxu0 0
    %2278 = vmatpush1.bf16.msra.mxu0 0
    %2279 = vmatprep.subr.bf16.mxu0 0
    %2280 = vmatpush1.bf16.msra.mxu0 0
    %2281 = vmatprep.subr.bf16.mxu0 0
    %2282 = vmatpush1.bf16.msra.mxu0 0
    %2283 = vmatprep.subr.bf16.mxu0 0
    %2284 = vmatpush1.bf16.msra.mxu0 0
    %2285 = vmatprep.subr.bf16.mxu0 0
    %2286 = vmatpush1.bf16.msra.mxu0 0
    %2287 = vmatprep.subr.bf16.mxu0 0
    %2288 = vmatpush1.bf16.msra.mxu0 0
    %2289 = vmatprep.subr.bf16.mxu0 0
    %2290 = vmatpush1.bf16.msra.mxu0 0
    %2291 = vmatprep.mubr.bf16.mxu0 0
    %2292 = vmatmul.mubr.bf16.gmra.mrb[0].mxu0 %v2254
    %v2293 = vpop.f32.mrb[0].mxu0
    %v2294 = vadd.f32 0.0, %v2293
    %v2295 = vpop.f32.mrb[0].mxu0
    %v2296 = vpop.f32.mrb[0].mxu0
    %v2297 = vpop.f32.mrb[0].mxu0
    %2298 = vdwg.mxu0
    %v2300 = vrot.slane %v1941, 4
    %2301 = vrot.lane.b32.xlu0 %v1642, 40
    %v2302 = vpop.permute.xlu0 %2301
    %v2304 = vsel %vm246, %v2300, 0
    %v2307 = vsel %vm748, %v2302, 0
    %2309 = vmatprep.subr.bf16.mxu0 0
    %2310 = vmatpush1.bf16.msra.mxu0 %v2307
    %2311 = vmatprep.subr.bf16.mxu0 0
    %2312 = vmatpush1.bf16.msra.mxu0 0
    %2313 = vmatprep.subr.bf16.mxu0 0
    %2314 = vmatpush1.bf16.msra.mxu0 0
    %2315 = vmatprep.subr.bf16.mxu0 0
    %2316 = vmatpush1.bf16.msra.mxu0 0
    %2317 = vmatprep.subr.bf16.mxu0 0
    %2318 = vmatpush1.bf16.msra.mxu0 0
    %2319 = vmatprep.subr.bf16.mxu0 0
    %2320 = vmatpush1.bf16.msra.mxu0 0
    %2321 = vmatprep.subr.bf16.mxu0 0
    %2322 = vmatpush1.bf16.msra.mxu0 0
    %2323 = vmatprep.subr.bf16.mxu0 0
    %2324 = vmatpush1.bf16.msra.mxu0 0
    %2325 = vmatprep.subr.bf16.mxu0 0
    %2326 = vmatpush1.bf16.msra.mxu0 0
    %2327 = vmatprep.subr.bf16.mxu0 0
    %2328 = vmatpush1.bf16.msra.mxu0 0
    %2329 = vmatprep.subr.bf16.mxu0 0
    %2330 = vmatpush1.bf16.msra.mxu0 0
    %2331 = vmatprep.subr.bf16.mxu0 0
    %2332 = vmatpush1.bf16.msra.mxu0 0
    %2333 = vmatprep.subr.bf16.mxu0 0
    %2334 = vmatpush1.bf16.msra.mxu0 0
    %2335 = vmatprep.subr.bf16.mxu0 0
    %2336 = vmatpush1.bf16.msra.mxu0 0
    %2337 = vmatprep.subr.bf16.mxu0 0
    %2338 = vmatpush1.bf16.msra.mxu0 0
    %2339 = vmatprep.subr.bf16.mxu0 0
    %2340 = vmatpush1.bf16.msra.mxu0 0
    %2341 = vmatprep.mubr.bf16.mxu0 0
    %2342 = vmatmul.mubr.bf16.gmra.mrb[0].mxu0 %v2304
    %v2343 = vpop.f32.mrb[0].mxu0
    %v2344 = vadd.f32 0.0, %v2343
    %v2345 = vpop.f32.mrb[0].mxu0
    %v2346 = vpop.f32.mrb[0].mxu0
    %v2347 = vpop.f32.mrb[0].mxu0
    %2348 = vdwg.mxu0
    %2350 = vrot.lane.b32.xlu0 %v2246, 8
    %v2351 = vpop.permute.xlu0 %2350
    %2354 = vrot.lane.b32.xlu0 %v2294, 16
    %v2355 = vpop.permute.xlu0 %2354
    %2358 = vrot.lane.b32.xlu0 %v2344, 24
    %v2359 = vpop.permute.xlu0 %2358
    %v2361 = vsel %vm246, %v2196, %v2351
    %v2362 = vsel %vm953, %v2361, %v2355
    %v2363 = vsel %vm955, %v2362, %v2359
    %v2364 = vpack.c.bf16 %v2363, %v2152
    %2365 = vrot.lane.b32.xlu0 %v1394, 32
    %v2366 = vpop.permute.xlu0 %2365
    %2367 = vrot.lane.b32.xlu0 %v1395, 32
    %v2368 = vpop.permute.xlu0 %2367
    %v2372 = vsel %vm163, %v2364, 0
    %2374 = vmatprep.subr.bf16.mxu0 0
    %2375 = vmatpush1.bf16.msra.mxu0 %v2366
    %2376 = vmatprep.subr.bf16.mxu0 0
    %2377 = vmatpush1.bf16.msra.mxu0 %v2368
    %2378 = vmatprep.subr.bf16.mxu0 0
    %2379 = vmatpush1.bf16.msra.mxu0 0
    %2380 = vmatprep.subr.bf16.mxu0 0
    %2381 = vmatpush1.bf16.msra.mxu0 0
    %2382 = vmatprep.subr.bf16.mxu0 0
    %2383 = vmatpush1.bf16.msra.mxu0 0
    %2384 = vmatprep.subr.bf16.mxu0 0
    %2385 = vmatpush1.bf16.msra.mxu0 0
    %2386 = vmatprep.subr.bf16.mxu0 0
    %2387 = vmatpush1.bf16.msra.mxu0 0
    %2388 = vmatprep.subr.bf16.mxu0 0
    %2389 = vmatpush1.bf16.msra.mxu0 0
    %2390 = vmatprep.subr.bf16.mxu0 0
    %2391 = vmatpush1.bf16.msra.mxu0 0
    %2392 = vmatprep.subr.bf16.mxu0 0
    %2393 = vmatpush1.bf16.msra.mxu0 0
    %2394 = vmatprep.subr.bf16.mxu0 0
    %2395 = vmatpush1.bf16.msra.mxu0 0
    %2396 = vmatprep.subr.bf16.mxu0 0
    %2397 = vmatpush1.bf16.msra.mxu0 0
    %2398 = vmatprep.subr.bf16.mxu0 0
    %2399 = vmatpush1.bf16.msra.mxu0 0
    %2400 = vmatprep.subr.bf16.mxu0 0
    %2401 = vmatpush1.bf16.msra.mxu0 0
    %2402 = vmatprep.subr.bf16.mxu0 0
    %2403 = vmatpush1.bf16.msra.mxu0 0
    %2404 = vmatprep.subr.bf16.mxu0 0
    %2405 = vmatpush1.bf16.msra.mxu0 0
    %2406 = vmatprep.mubr.bf16.mxu0 0
    %2407 = vmatmul.mubr.bf16.gmra.mrb[0].mxu0 %v2372
    %v2408 = vpop.f32.mrb[0].mxu0
    %v2409 = vadd.f32 0.0, %v2408
    %v2410 = vpop.f32.mrb[0].mxu0
    %v2411 = vpop.f32.mrb[0].mxu0
    %v2412 = vadd.f32 0.0, %v2411
    %v2413 = vpop.f32.mrb[0].mxu0
    %2414 = vdwg.mxu0
    %v2415 = vadd.f32 %v1354, %v2409
    %v2416 = vadd.f32 %v1355, %v2412
    %v2417 = vmul.f32 %v2415, %v2415
    %v2418 = vmul.f32 %v2416, %v2416
    %v2419 = vsel %vm163, %v2417, 0.0
    %2420 = vadd.xlane.f32.xlu0 %v2419
    %v2421 = vpop.xlane.xlu0 %2420
    %v2422 = vsel %vm163, %v2418, 0.0
    %2423 = vadd.xlane.f32.xlu0 %v2422
    %v2424 = vpop.xlane.xlu0 %2423
    %v2425 = vmul.f32 %v2421, %v170
    %v2426 = vmul.f32 %v2424, %v170
    %v2427 = vadd.f32 %v2425, 1e-06
    %v2428 = vadd.f32 %v2426, 1e-06
    %v2429 = vrsqrt.pop %v2427
    %v2430 = vrsqrt.pop %v2428
    %v2431 = vmul.f32 %v2415, %v2429
    %v2432 = vmul.f32 %v2416, %v2430
    %v2433 = vlaneseq
    %v2434 = vshrl.u32 %v2433, 7
    %v2435 = vsub.s32 3, %v2434
    %v2436 = vrot.slane %v1362, %v2435
    %v2437 = vmul.f32 %v2431, %v2436
    %v2438 = vmul.f32 %v2432, %v2436
    %v2439 = vpack.c.bf16 %v2438, %v2437
    %v2440 = vunpack.c.h.b16 %v1357
    %v2441 = vunpack.c.h.b16 %v1358
    %v2442 = vunpack.c.h.b16 %v1359
    %v2443 = vunpack.c.h.b16 %v1360
    %v2444 = vpack.c.b16 %v2441, %v2440
    %v2445 = vpack.c.b16 %v2443, %v2442
    %v2449 = vsel %vm163, %v2439, 0
    %2451 = vmatprep.subr.bf16.mxu0 0
    %2452 = vmatpush1.bf16.msra.mxu0 %v2444
    %2453 = vmatprep.subr.bf16.mxu0 0
    %2454 = vmatpush1.bf16.msra.mxu0 %v2445
    %2455 = vmatprep.subr.bf16.mxu0 0
    %2456 = vmatpush1.bf16.msra.mxu0 0
    %2457 = vmatprep.subr.bf16.mxu0 0
    %2458 = vmatpush1.bf16.msra.mxu0 0
    %2459 = vmatprep.subr.bf16.mxu0 0
    %2460 = vmatpush1.bf16.msra.mxu0 0
    %2461 = vmatprep.subr.bf16.mxu0 0
    %2462 = vmatpush1.bf16.msra.mxu0 0
    %2463 = vmatprep.subr.bf16.mxu0 0
    %2464 = vmatpush1.bf16.msra.mxu0 0
    %2465 = vmatprep.subr.bf16.mxu0 0
    %2466 = vmatpush1.bf16.msra.mxu0 0
    %2467 = vmatprep.subr.bf16.mxu0 0
    %2468 = vmatpush1.bf16.msra.mxu0 0
    %2469 = vmatprep.subr.bf16.mxu0 0
    %2470 = vmatpush1.bf16.msra.mxu0 0
    %2471 = vmatprep.subr.bf16.mxu0 0
    %2472 = vmatpush1.bf16.msra.mxu0 0
    %2473 = vmatprep.subr.bf16.mxu0 0
    %2474 = vmatpush1.bf16.msra.mxu0 0
    %2475 = vmatprep.subr.bf16.mxu0 0
    %2476 = vmatpush1.bf16.msra.mxu0 0
    %2477 = vmatprep.subr.bf16.mxu0 0
    %2478 = vmatpush1.bf16.msra.mxu0 0
    %2479 = vmatprep.subr.bf16.mxu0 0
    %2480 = vmatpush1.bf16.msra.mxu0 0
    %2481 = vmatprep.subr.bf16.mxu0 0
    %2482 = vmatpush1.bf16.msra.mxu0 0
    %2483 = vmatprep.mubr.bf16.mxu0 0
    %2484 = vmatmul.mubr.bf16.gmra.mrb[0].mxu0 %v2449
    %v2485 = vpop.f32.mrb[0].mxu0
    %v2486 = vadd.f32 0.0, %v2485
    %v2487 = vpop.f32.mrb[0].mxu0
    %v2488 = vpop.f32.mrb[0].mxu0
    %v2489 = vadd.f32 0.0, %v2488
    %v2490 = vpop.f32.mrb[0].mxu0
    %2491 = vdwg.mxu0
    %v2492 = vmax.f32 %v2486, 0.0
    %v2493 = vmax.f32 %v2489, 0.0
    %v2494 = vpack.c.bf16 %v2493, %v2492
    %2495 = vrot.lane.b32.xlu0 %v2444, 64
    %v2496 = vpop.permute.xlu0 %2495
    %2497 = vrot.lane.b32.xlu0 %v2445, 64
    %v2498 = vpop.permute.xlu0 %2497
    %v2500 = vsel %vm1303, %v2494, 0
    %v2503 = vsel %vm1303, %v2496, 0
    %v2506 = vsel %vm1303, %v2498, 0
    %2508 = vmatprep.subr.bf16.mxu0 0
    %2509 = vmatpush1.bf16.xpose.msra.mxu0 %v2503
    %2510 = vmatprep.subr.bf16.mxu0 0
    %2511 = vmatpush1.bf16.xpose.msra.mxu0 %v2506
    %2512 = vmatprep.subr.bf16.mxu0 0
    %2513 = vmatpush1.bf16.xpose.msra.mxu0 0
    %2514 = vmatprep.subr.bf16.mxu0 0
    %2515 = vmatpush1.bf16.xpose.msra.mxu0 0
    %2516 = vmatprep.subr.bf16.mxu0 0
    %2517 = vmatpush1.bf16.xpose.msra.mxu0 0
    %2518 = vmatprep.subr.bf16.mxu0 0
    %2519 = vmatpush1.bf16.xpose.msra.mxu0 0
    %2520 = vmatprep.subr.bf16.mxu0 0
    %2521 = vmatpush1.bf16.xpose.msra.mxu0 0
    %2522 = vmatprep.subr.bf16.mxu0 0
    %2523 = vmatpush1.bf16.xpose.msra.mxu0 0
    %2524 = vmatprep.subr.bf16.mxu0 0
    %2525 = vmatpush1.bf16.xpose.msra.mxu0 0
    %2526 = vmatprep.subr.bf16.mxu0 0
    %2527 = vmatpush1.bf16.xpose.msra.mxu0 0
    %2528 = vmatprep.subr.bf16.mxu0 0
    %2529 = vmatpush1.bf16.xpose.msra.mxu0 0
    %2530 = vmatprep.subr.bf16.mxu0 0
    %2531 = vmatpush1.bf16.xpose.msra.mxu0 0
    %2532 = vmatprep.subr.bf16.mxu0 0
    %2533 = vmatpush1.bf16.xpose.msra.mxu0 0
    %2534 = vmatprep.subr.bf16.mxu0 0
    %2535 = vmatpush1.bf16.xpose.msra.mxu0 0
    %2536 = vmatprep.subr.bf16.mxu0 0
    %2537 = vmatpush1.bf16.xpose.msra.mxu0 0
    %2538 = vmatprep.subr.bf16.mxu0 0
    %2539 = vmatpush1.bf16.xpose.msra.mxu0 0
    %2540 = vmatprep.mubr.bf16.mxu0 0
    %2541 = vmatmul.mubr.bf16.gmra.mrb[0].mxu0 %v2500
    %v2542 = vpop.f32.mrb[0].mxu0
    %v2543 = vadd.f32 0.0, %v2542
    %v2544 = vpop.f32.mrb[0].mxu0
    %v2545 = vpop.f32.mrb[0].mxu0
    %v2546 = vadd.f32 0.0, %v2545
    %v2547 = vpop.f32.mrb[0].mxu0
    %2548 = vdwg.mxu0
    %v2549 = vadd.f32 %v2415, %v2543
    %v2550 = vadd.f32 %v2416, %v2546
    %v2551 = vld [vmem:[%s4] sm:$0x4]
    %v2552 = vunpack.c.l.bf16 %v2551
    %v2553 = vmul.f32 %v2549, %v2549
    %v2554 = vmul.f32 %v2550, %v2550
    %v2555 = vsel %vm163, %v2553, 0.0
    %2556 = vadd.xlane.f32.xlu0 %v2555
    %v2557 = vpop.xlane.xlu0 %2556
    %v2558 = vsel %vm163, %v2554, 0.0
    %2559 = vadd.xlane.f32.xlu0 %v2558
    %v2560 = vpop.xlane.xlu0 %2559
    %v2561 = vmul.f32 %v2557, %v170
    %v2562 = vmul.f32 %v2560, %v170
    %v2563 = vadd.f32 %v2561, 1e-06
    %v2564 = vadd.f32 %v2562, 1e-06
    %v2565 = vrsqrt.pop %v2563
    %v2566 = vrsqrt.pop %v2564
    %v2567 = vmul.f32 %v2549, %v2565
    %v2568 = vmul.f32 %v2550, %v2566
    %v2569 = vlaneseq
    %v2570 = vshrl.u32 %v2569, 7
    %v2571 = vsub.s32 4, %v2570
    %v2572 = vrot.slane %v2552, %v2571
    %v2573 = vmul.f32 %v2567, %v2572
    %v2574 = vmul.f32 %v2568, %v2572
    %2575 = vst.msk [vmem:[#allocation2] sm:$0xff] %vm163, %v2573
    %2576 = vst.msk [vmem:[#allocation2 + $0x8] sm:$0xff] %vm163, %v2574
    // Predicated region
    $region22: #{word_encoder_forward.1} parent=1 // pred_check
      _
    $region23: #{word_encoder_forward.1} parent=1 // pred_check_branch
      %2578 = sbr.rel (0) target = $region25
    $region24: #{word_encoder_forward.1} parent=1 // pred_region
      %s2580 = ssub.s32 256, 256
      %2581 = vsyncadd [#allocation3], %s2580
      %s2582 = sshll.u32 [#allocation2], 4
      %s2583 = int_to_ptr.vmem [resolvable:$true] %s2582
      %2588 = dma.vmem_to_hbm [thread:$0]  %s2583, 256, %s5, [#allocation3], 128, 128, 8
    $region25: #{word_encoder_forward.1} parent=1 // pred_fallthru
      _
    // Predicated region
    $region26: #{word_encoder_forward.1} parent=1 // pred_check
      _
    $region27: #{word_encoder_forward.1} parent=1 // pred_check_branch
      %2590 = sbr.rel (0) target = $region29
    $region28: #{word_encoder_forward.1} parent=1 // pred_region
      %2591 = dma.done [#allocation3], 256
    $region29: #{word_encoder_forward.1} parent=1 // pred_fallthru
      _
    %2592 = vsyncpa [#allocation3], 1

</llo_original>
